<compile_context>
chip_gen: v6e
topology: v6e:2x2x1
jax: 0.10.0
libtpu: 0.0.40
codegen_flags: <defaults>
</compile_context>

<pallas_src>
import math

import jax
import jax.numpy as jnp
from jax.experimental import pallas as pl
from jax.experimental.pallas import tpu as pltpu


_SQRT1_2 = 0.7071067811865475


def _gelu(y):
    # exact (erf-based) GELU, matching torch.nn.GELU() default
    return 0.5 * y * (1.0 + jax.lax.erf(y * _SQRT1_2))


# ---------------------------------------------------------------------------
# Fused Pallas kernel: one grid step = one image (all stages, VMEM-resident)
# ---------------------------------------------------------------------------
def _make_fused_kernel(c1, c2, c, H, W, padl):
    M = H * W

    def kernel(x_ref, mask_l_ref, mask_r_ref,
               wd_ref, bd_ref,
               w1a_ref, b1a_ref, w1b_ref, b1b_ref,
               wm1_ref, bm1_ref, wm2_ref, bm2_ref,
               w2a_ref, w2b_ref, w2c_ref, b2_ref,
               o_ref, pad_ref):
        f32 = jnp.float32
        x = x_ref[0]                                            # (c1, M)
        mask_l = mask_l_ref[...]                                # (1, M)
        mask_r = mask_r_ref[...]                                # (1, M)

        # --- downconv: 1x1 conv (BN scale folded into weight) + GELU ------
        y0 = _gelu(jnp.dot(wd_ref[...], x, preferred_element_type=f32)
                   + bd_ref[...])                               # (c2, M)

        # --- C2f.cv1: 1x1 conv + GELU, pre-split into the two chunks ------
        ya = _gelu(jnp.dot(w1a_ref[...], y0, preferred_element_type=f32)
                   + b1a_ref[...])                              # (c, M)
        yb = _gelu(jnp.dot(w1b_ref[...], y0, preferred_element_type=f32)
                   + b1b_ref[...])                              # (c, M)

        # Zero only the halo slices (static, lane-aligned stores).  The centre
        # region is fully overwritten by each conv3x3; halos stay zero.
        pad_ref[:, :padl] = jnp.zeros((c, padl), f32)
        pad_ref[:, padl + M:] = jnp.zeros((c, padl), f32)

        def conv3x3(inp, w_taps_ref, b_ref):
            # 3x3 "same" conv on the flattened [c, M] map via 9 shifted taps.
            pad_ref[:, padl:padl + M] = inp                     # aligned store
            acc = jnp.zeros((c, M), f32)
            for t in range(9):                                  # unrolled
                dh, dw = t // 3 - 1, t % 3 - 1
                s = dh * W + dw
                xs = pad_ref[:, padl + s:padl + s + M]          # (c, M)
                if dw == -1:
                    xs = xs * mask_l                            # kill row wrap
                elif dw == 1:
                    xs = xs * mask_r
                acc = acc + jnp.dot(w_taps_ref[t], xs,
                                    preferred_element_type=f32)
            return _gelu(acc + b_ref[...])

        h1 = conv3x3(yb, wm1_ref, bm1_ref)                      # Bottleneck.cv1
        h2 = conv3x3(h1, wm2_ref, bm2_ref)                      # Bottleneck.cv2

        # --- C2f.cv2 over concat([ya, yb, h2]) without materializing it ---
        out = _gelu(jnp.dot(w2a_ref[...], ya, preferred_element_type=f32)
                    + jnp.dot(w2b_ref[...], yb, preferred_element_type=f32)
                    + jnp.dot(w2c_ref[...], h2, preferred_element_type=f32)
                    + b2_ref[...])                              # (c2, M)
        o_ref[0] = out.astype(o_ref.dtype)

    return kernel


# ---------------------------------------------------------------------------
# Trace-time glue: BN folding, weight splitting, masks, pallas_call
# ---------------------------------------------------------------------------
def _fold_scale(w, scale):
    # fold inference-mode BatchNorm scale into the conv weight (free, static)
    return w * scale[:, None, None, None]


def crack_bottleneck_forward(x_nchw, params):
    B, c1, H, W = x_nchw.shape
    M = H * W
    c2 = params["down"][0].shape[0]
    c = params["cv1"][0].shape[0] // 2              # C2f hidden channels (e=0.5)
    padl = ((max(W + 1, 128) + 127) // 128) * 128   # halo size, lane-aligned

    wd, sd, bd = params["down"]
    w1, s1, b1 = params["cv1"]
    wm1, sm1, bm1 = params["m0_cv1"]
    wm2, sm2, bm2 = params["m0_cv2"]
    w2, s2, b2 = params["cv2"]

    # 1x1 convs -> [cout, cin] matrices (BN scale folded)
    wd2 = _fold_scale(wd, sd)[:, :, 0, 0]                       # (c2, c1)
    w1f = _fold_scale(w1, s1)[:, :, 0, 0]                       # (2c, c2)
    w1a, w1b = w1f[:c], w1f[c:]
    b1a, b1b = b1[:c].reshape(c, 1), b1[c:].reshape(c, 1)

    # 3x3 convs -> 9 taps of [cout, cin]
    def taps(w4, s):
        return jnp.transpose(_fold_scale(w4, s), (2, 3, 0, 1)).reshape(
            9, w4.shape[0], w4.shape[1])

    wm1t, wm2t = taps(wm1, sm1), taps(wm2, sm2)                 # (9, c, c)

    # cv2 split along its input-channel blocks [ya | yb | bottleneck]
    w2f = _fold_scale(w2, s2)[:, :, 0, 0]                       # (c2, 3c)
    w2a, w2b, w2c = w2f[:, :c], w2f[:, c:2 * c], w2f[:, 2 * c:]

    bd2 = bd.reshape(c2, 1)
    bm1_2, bm2_2 = bm1.reshape(c, 1), bm2.reshape(c, 1)
    b2_2 = b2.reshape(c2, 1)

    # masks killing horizontal wrap-around of the flattened +-1 column taps
    col = jnp.arange(M, dtype=jnp.int32) % W
    mask_l = (col != 0).astype(jnp.float32).reshape(1, M)
    mask_r = (col != W - 1).astype(jnp.float32).reshape(1, M)

    x3 = x_nchw.reshape(B, c1, M)                               # free reshape

    def const_spec(shape):
        zeros = (0,) * len(shape)
        return pl.BlockSpec(shape, lambda b, _z=zeros: _z)

    kernel = _make_fused_kernel(c1, c2, c, H, W, padl)

    out3 = pl.pallas_call(
        kernel,
        out_shape=jax.ShapeDtypeStruct((B, c2, M), jnp.float32),
        grid=(B,),
        in_specs=[
            pl.BlockSpec((1, c1, M), lambda b: (b, 0, 0)),      # x (per image)
            const_spec((1, M)), const_spec((1, M)),             # masks
            const_spec((c2, c1)), const_spec((c2, 1)),          # downconv
            const_spec((c, c2)), const_spec((c, 1)),            # cv1 chunk a
            const_spec((c, c2)), const_spec((c, 1)),            # cv1 chunk b
            const_spec((9, c, c)), const_spec((c, 1)),          # m0.cv1 taps
            const_spec((9, c, c)), const_spec((c, 1)),          # m0.cv2 taps
            const_spec((c2, c)), const_spec((c2, c)),           # cv2 splits
            const_spec((c2, c)), const_spec((c2, 1)),
        ],
        out_specs=pl.BlockSpec((1, c2, M), lambda b: (b, 0, 0)),
        scratch_shapes=[pltpu.VMEM((c, M + 2 * padl), jnp.float32)],
        compiler_params=pltpu.CompilerParams(
            dimension_semantics=("parallel",),
            vmem_limit_bytes=16 * 1024 * 1024,
        ),
    )(x3, mask_l, mask_r,
      wd2, bd2, w1a, b1a, w1b, b1b,
      wm1t, bm1_2, wm2t, bm2_2,
      w2a, w2b, w2c, b2_2)

    return out3.reshape(B, c2, H, W)


# ---------------------------------------------------------------------------
# Pure-JAX reference (same math, XLA convs) — used as a sanity check in main.
# ---------------------------------------------------------------------------
def _ref_forward(x_nchw, params):
    def conv_bn_act(x, wsb, pad):
        w, scale, bias = wsb
        wf = _fold_scale(w, scale)
        y = jax.lax.conv_general_dilated(
            x, wf, (1, 1), [(pad, pad), (pad, pad)],
            dimension_numbers=("NCHW", "OIHW", "NCHW"),
            precision=jax.lax.Precision.HIGHEST)
        y = y + bias[None, :, None, None]
        return jax.nn.gelu(y, approximate=False)

    c = params["m0_cv1"][0].shape[0]
    y0 = conv_bn_act(x_nchw, params["down"], 0)
    y1 = conv_bn_act(y0, params["cv1"], 0)
    ya, yb = y1[:, :c], y1[:, c:]
    h1 = conv_bn_act(yb, params["m0_cv1"], 1)
    h2 = conv_bn_act(h1, params["m0_cv2"], 1)
    cat = jnp.concatenate([ya, yb, h2], axis=1)
    return conv_bn_act(cat, params["cv2"], 0)


# ---------------------------------------------------------------------------
# Deterministic parameter init (conv weight + folded BatchNorm scale/bias)
# ---------------------------------------------------------------------------
def _init_conv_bn(key, cin, cout, k):
    k1, k2, k3, k4, k5 = jax.random.split(key, 5)
    fan_in = cin * k * k
    w = jax.random.normal(k1, (cout, cin, k, k), jnp.float32) / math.sqrt(fan_in)
    gamma = 1.0 + 0.1 * jax.random.normal(k2, (cout,), jnp.float32)
    beta = 0.1 * jax.random.normal(k3, (cout,), jnp.float32)
    mean = 0.1 * jax.random.normal(k4, (cout,), jnp.float32)
    var = jax.random.uniform(k5, (cout,), jnp.float32, minval=0.5, maxval=1.5)
    eps = 1e-5
    scale = gamma / jnp.sqrt(var + eps)
    bias = beta - mean * scale
    return w, scale, bias


if __name__ == "__main__":
    key = jax.random.PRNGKey(0)
    B, c1, c2, H, W = 2, 4, 8, 16, 16
    n = 1
    c = c2 // 2  # C2f hidden channels (e=0.5)

    ks = jax.random.split(key, 6)
    x = jax.random.normal(ks[0], (B, c1, H, W), jnp.float32)

    params = {
        "down":   _init_conv_bn(ks[1], c1, c2, 1),          # Conv(c1, c2, 1)
        "cv1":    _init_conv_bn(ks[2], c2, 2 * c, 1),        # C2f.cv1
        "m0_cv1": _init_conv_bn(ks[3], c, c, 3),             # Bottleneck.cv1 (3x3)
        "m0_cv2": _init_conv_bn(ks[4], c, c, 3),             # Bottleneck.cv2 (3x3)
        "cv2":    _init_conv_bn(ks[5], (2 + n) * c, c2, 1),  # C2f.cv2
    }

    out = jax.jit(crack_bottleneck_forward)(x, params)
    out = jax.block_until_ready(out)
    assert out.shape == (B, c2, H, W), out.shape
    assert bool(jnp.all(jnp.isfinite(out)))

    # loose sanity check vs pure-JAX reference (catches structural errors only)
    ref = jax.block_until_ready(jax.jit(_ref_forward)(x, params))
    max_err = float(jnp.max(jnp.abs(out - ref)))
    assert max_err < 5e-2, f"max abs error vs reference too large: {max_err}"

    print("KERNEL_OK")
</pallas_src>

<mosaic_0001>
module attributes {stable_mosaic.version = 11 : i64} {
  func.func @kernel(%arg0: i32, %arg1: memref<1x4x256xf32, #tpu.memory_space<vmem>>, %arg2: memref<1x256xf32, #tpu.memory_space<vmem>>, %arg3: memref<1x256xf32, #tpu.memory_space<vmem>>, %arg4: memref<8x4xf32, #tpu.memory_space<vmem>>, %arg5: memref<8x1xf32, #tpu.memory_space<vmem>>, %arg6: memref<4x8xf32, #tpu.memory_space<vmem>>, %arg7: memref<4x1xf32, #tpu.memory_space<vmem>>, %arg8: memref<4x8xf32, #tpu.memory_space<vmem>>, %arg9: memref<4x1xf32, #tpu.memory_space<vmem>>, %arg10: memref<9x4x4xf32, #tpu.memory_space<vmem>>, %arg11: memref<4x1xf32, #tpu.memory_space<vmem>>, %arg12: memref<9x4x4xf32, #tpu.memory_space<vmem>>, %arg13: memref<4x1xf32, #tpu.memory_space<vmem>>, %arg14: memref<8x4xf32, #tpu.memory_space<vmem>>, %arg15: memref<8x4xf32, #tpu.memory_space<vmem>>, %arg16: memref<8x4xf32, #tpu.memory_space<vmem>>, %arg17: memref<8x1xf32, #tpu.memory_space<vmem>>, %arg18: memref<1x8x256xf32, #tpu.memory_space<vmem>>, %arg19: memref<4x512xf32, #tpu.memory_space<vmem>>) attributes {dimension_semantics = [#tpu.dimension_semantics<parallel>], iteration_bounds = array<i64: 2>, scalar_prefetch = 0 : i64, scratch_operands = 1 : i64, tpu.core_type = #tpu.core_type<tc>, window_params = [{transform_indices = @transform_0, window_bounds = array<i64: 1, 4, 256>}, {pipeline_mode = #tpu.pipeline_mode<synchronous>, transform_indices = @transform_1, window_bounds = array<i64: 1, 256>}, {pipeline_mode = #tpu.pipeline_mode<synchronous>, transform_indices = @transform_2, window_bounds = array<i64: 1, 256>}, {pipeline_mode = #tpu.pipeline_mode<synchronous>, transform_indices = @transform_3, window_bounds = array<i64: 8, 4>}, {pipeline_mode = #tpu.pipeline_mode<synchronous>, transform_indices = @transform_4, window_bounds = array<i64: 8, 1>}, {pipeline_mode = #tpu.pipeline_mode<synchronous>, transform_indices = @transform_5, window_bounds = array<i64: 4, 8>}, {pipeline_mode = #tpu.pipeline_mode<synchronous>, transform_indices = @transform_6, window_bounds = array<i64: 4, 1>}, {pipeline_mode = #tpu.pipeline_mode<synchronous>, transform_indices = @transform_7, window_bounds = array<i64: 4, 8>}, {pipeline_mode = #tpu.pipeline_mode<synchronous>, transform_indices = @transform_8, window_bounds = array<i64: 4, 1>}, {pipeline_mode = #tpu.pipeline_mode<synchronous>, transform_indices = @transform_9, window_bounds = array<i64: 9, 4, 4>}, {pipeline_mode = #tpu.pipeline_mode<synchronous>, transform_indices = @transform_10, window_bounds = array<i64: 4, 1>}, {pipeline_mode = #tpu.pipeline_mode<synchronous>, transform_indices = @transform_11, window_bounds = array<i64: 9, 4, 4>}, {pipeline_mode = #tpu.pipeline_mode<synchronous>, transform_indices = @transform_12, window_bounds = array<i64: 4, 1>}, {pipeline_mode = #tpu.pipeline_mode<synchronous>, transform_indices = @transform_13, window_bounds = array<i64: 8, 4>}, {pipeline_mode = #tpu.pipeline_mode<synchronous>, transform_indices = @transform_14, window_bounds = array<i64: 8, 4>}, {pipeline_mode = #tpu.pipeline_mode<synchronous>, transform_indices = @transform_15, window_bounds = array<i64: 8, 4>}, {pipeline_mode = #tpu.pipeline_mode<synchronous>, transform_indices = @transform_16, window_bounds = array<i64: 8, 1>}, {transform_indices = @transform_17, window_bounds = array<i64: 1, 8, 256>}]} {
    %c0 = arith.constant 0 : index
    %c0_0 = arith.constant 0 : index
    %c0_1 = arith.constant 0 : index
    %0 = vector.load %arg1[%c0, %c0_0, %c0_1] : memref<1x4x256xf32, #tpu.memory_space<vmem>>, vector<1x4x256xf32>
    %1 = vector.shape_cast %0 : vector<1x4x256xf32> to vector<4x256xf32>
    %c0_2 = arith.constant 0 : index
    %c0_3 = arith.constant 0 : index
    %2 = vector.load %arg2[%c0_2, %c0_3] : memref<1x256xf32, #tpu.memory_space<vmem>>, vector<1x256xf32>
    %c0_4 = arith.constant 0 : index
    %c0_5 = arith.constant 0 : index
    %3 = vector.load %arg3[%c0_4, %c0_5] : memref<1x256xf32, #tpu.memory_space<vmem>>, vector<1x256xf32>
    %c0_6 = arith.constant 0 : index
    %c0_7 = arith.constant 0 : index
    %4 = vector.load %arg4[%c0_6, %c0_7] : memref<8x4xf32, #tpu.memory_space<vmem>>, vector<8x4xf32>
    %cst = arith.constant dense<0.000000e+00> : vector<8x256xf32>
    %5 = tpu.matmul %4, %1, %cst {dimension_numbers = #tpu.dot_dimension_numbers<[1], [0], [0], [1], [0, 0, 1, 1], [], []>} : vector<8x4xf32>, vector<4x256xf32>, vector<8x256xf32> -> vector<8x256xf32>
    %c0_8 = arith.constant 0 : index
    %c0_9 = arith.constant 0 : index
    %6 = vector.load %arg5[%c0_8, %c0_9] : memref<8x1xf32, #tpu.memory_space<vmem>>, vector<8x1xf32>
    %7 = vector.broadcast %6 : vector<8x1xf32> to vector<8x256xf32>
    %8 = arith.addf %5, %7 : vector<8x256xf32>
    %cst_10 = arith.constant 5.000000e-01 : f32
    %9 = vector.broadcast %cst_10 : f32 to vector<8x256xf32>
    %10 = arith.mulf %9, %8 : vector<8x256xf32>
    %cst_11 = arith.constant 0.707106769 : f32
    %11 = vector.broadcast %cst_11 : f32 to vector<8x256xf32>
    %12 = arith.mulf %8, %11 : vector<8x256xf32>
    %13 = math.erf %12 : vector<8x256xf32>
    %cst_12 = arith.constant 1.000000e+00 : f32
    %14 = vector.broadcast %cst_12 : f32 to vector<8x256xf32>
    %15 = arith.addf %14, %13 : vector<8x256xf32>
    %16 = arith.mulf %10, %15 : vector<8x256xf32>
    %c0_13 = arith.constant 0 : index
    %c0_14 = arith.constant 0 : index
    %17 = vector.load %arg6[%c0_13, %c0_14] : memref<4x8xf32, #tpu.memory_space<vmem>>, vector<4x8xf32>
    %cst_15 = arith.constant dense<0.000000e+00> : vector<4x256xf32>
    %18 = tpu.matmul %17, %16, %cst_15 {dimension_numbers = #tpu.dot_dimension_numbers<[1], [0], [0], [1], [0, 0, 1, 1], [], []>} : vector<4x8xf32>, vector<8x256xf32>, vector<4x256xf32> -> vector<4x256xf32>
    %c0_16 = arith.constant 0 : index
    %c0_17 = arith.constant 0 : index
    %19 = vector.load %arg7[%c0_16, %c0_17] : memref<4x1xf32, #tpu.memory_space<vmem>>, vector<4x1xf32>
    %20 = vector.broadcast %19 : vector<4x1xf32> to vector<4x256xf32>
    %21 = arith.addf %18, %20 : vector<4x256xf32>
    %cst_18 = arith.constant 5.000000e-01 : f32
    %22 = vector.broadcast %cst_18 : f32 to vector<4x256xf32>
    %23 = arith.mulf %22, %21 : vector<4x256xf32>
    %cst_19 = arith.constant 0.707106769 : f32
    %24 = vector.broadcast %cst_19 : f32 to vector<4x256xf32>
    %25 = arith.mulf %21, %24 : vector<4x256xf32>
    %26 = math.erf %25 : vector<4x256xf32>
    %cst_20 = arith.constant 1.000000e+00 : f32
    %27 = vector.broadcast %cst_20 : f32 to vector<4x256xf32>
    %28 = arith.addf %27, %26 : vector<4x256xf32>
    %29 = arith.mulf %23, %28 : vector<4x256xf32>
    %c0_21 = arith.constant 0 : index
    %c0_22 = arith.constant 0 : index
    %30 = vector.load %arg8[%c0_21, %c0_22] : memref<4x8xf32, #tpu.memory_space<vmem>>, vector<4x8xf32>
    %cst_23 = arith.constant dense<0.000000e+00> : vector<4x256xf32>
    %31 = tpu.matmul %30, %16, %cst_23 {dimension_numbers = #tpu.dot_dimension_numbers<[1], [0], [0], [1], [0, 0, 1, 1], [], []>} : vector<4x8xf32>, vector<8x256xf32>, vector<4x256xf32> -> vector<4x256xf32>
    %c0_24 = arith.constant 0 : index
    %c0_25 = arith.constant 0 : index
    %32 = vector.load %arg9[%c0_24, %c0_25] : memref<4x1xf32, #tpu.memory_space<vmem>>, vector<4x1xf32>
    %33 = vector.broadcast %32 : vector<4x1xf32> to vector<4x256xf32>
    %34 = arith.addf %31, %33 : vector<4x256xf32>
    %cst_26 = arith.constant 5.000000e-01 : f32
    %35 = vector.broadcast %cst_26 : f32 to vector<4x256xf32>
    %36 = arith.mulf %35, %34 : vector<4x256xf32>
    %cst_27 = arith.constant 0.707106769 : f32
    %37 = vector.broadcast %cst_27 : f32 to vector<4x256xf32>
    %38 = arith.mulf %34, %37 : vector<4x256xf32>
    %39 = math.erf %38 : vector<4x256xf32>
    %cst_28 = arith.constant 1.000000e+00 : f32
    %40 = vector.broadcast %cst_28 : f32 to vector<4x256xf32>
    %41 = arith.addf %40, %39 : vector<4x256xf32>
    %42 = arith.mulf %36, %41 : vector<4x256xf32>
    %cst_29 = arith.constant 0.000000e+00 : f32
    %43 = vector.broadcast %cst_29 : f32 to vector<4x128xf32>
    %c0_30 = arith.constant 0 : index
    %c0_31 = arith.constant 0 : index
    %44 = vector.load %arg19[%c0_30, %c0_31] : memref<4x512xf32, #tpu.memory_space<vmem>>, vector<4x128xf32>
    tpu.vector_store %arg19[%c0_30, %c0_31], %43 {strides = array<i32>} : memref<4x512xf32, #tpu.memory_space<vmem>>, vector<4x128xf32>,
    %cst_32 = arith.constant 0.000000e+00 : f32
    %45 = vector.broadcast %cst_32 : f32 to vector<4x128xf32>
    %c0_33 = arith.constant 0 : index
    %c384 = arith.constant 384 : index
    %46 = vector.load %arg19[%c0_33, %c384] : memref<4x512xf32, #tpu.memory_space<vmem>>, vector<4x128xf32>
    tpu.vector_store %arg19[%c0_33, %c384], %45 {strides = array<i32>} : memref<4x512xf32, #tpu.memory_space<vmem>>, vector<4x128xf32>,
    %c0_34 = arith.constant 0 : index
    %c128 = arith.constant 128 : index
    %47 = vector.load %arg19[%c0_34, %c128] : memref<4x512xf32, #tpu.memory_space<vmem>>, vector<4x256xf32>
    tpu.vector_store %arg19[%c0_34, %c128], %42 {strides = array<i32>} : memref<4x512xf32, #tpu.memory_space<vmem>>, vector<4x256xf32>,
    %cst_35 = arith.constant 0.000000e+00 : f32
    %48 = vector.broadcast %cst_35 : f32 to vector<4x256xf32>
    %c0_36 = arith.constant 0 : index
    %c111 = arith.constant 111 : index
    %49 = vector.load %arg19[%c0_36, %c111] : memref<4x512xf32, #tpu.memory_space<vmem>>, vector<4x256xf32>
    %50 = vector.broadcast %2 : vector<1x256xf32> to vector<4x256xf32>
    %51 = arith.mulf %49, %50 : vector<4x256xf32>
    %c0_37 = arith.constant 0 : index
    %c0_38 = arith.constant 0 : index
    %c0_39 = arith.constant 0 : index
    %52 = vector.load %arg10[%c0_37, %c0_38, %c0_39] : memref<9x4x4xf32, #tpu.memory_space<vmem>>, vector<1x4x4xf32>
    %53 = vector.shape_cast %52 : vector<1x4x4xf32> to vector<4x4xf32>
    %cst_40 = arith.constant dense<0.000000e+00> : vector<4x256xf32>
    %54 = tpu.matmul %53, %51, %cst_40 {dimension_numbers = #tpu.dot_dimension_numbers<[1], [0], [0], [1], [0, 0, 1, 1], [], []>} : vector<4x4xf32>, vector<4x256xf32>, vector<4x256xf32> -> vector<4x256xf32>
    %55 = arith.addf %48, %54 : vector<4x256xf32>
    %c0_41 = arith.constant 0 : index
    %c112 = arith.constant 112 : index
    %56 = vector.load %arg19[%c0_41, %c112] : memref<4x512xf32, #tpu.memory_space<vmem>>, vector<4x256xf32>
    %c1 = arith.constant 1 : index
    %c0_42 = arith.constant 0 : index
    %c0_43 = arith.constant 0 : index
    %57 = vector.load %arg10[%c1, %c0_42, %c0_43] : memref<9x4x4xf32, #tpu.memory_space<vmem>>, vector<1x4x4xf32>
    %58 = vector.shape_cast %57 : vector<1x4x4xf32> to vector<4x4xf32>
    %cst_44 = arith.constant dense<0.000000e+00> : vector<4x256xf32>
    %59 = tpu.matmul %58, %56, %cst_44 {dimension_numbers = #tpu.dot_dimension_numbers<[1], [0], [0], [1], [0, 0, 1, 1], [], []>} : vector<4x4xf32>, vector<4x256xf32>, vector<4x256xf32> -> vector<4x256xf32>
    %60 = arith.addf %55, %59 : vector<4x256xf32>
    %c0_45 = arith.constant 0 : index
    %c113 = arith.constant 113 : index
    %61 = vector.load %arg19[%c0_45, %c113] : memref<4x512xf32, #tpu.memory_space<vmem>>, vector<4x256xf32>
    %62 = vector.broadcast %3 : vector<1x256xf32> to vector<4x256xf32>
    %63 = arith.mulf %61, %62 : vector<4x256xf32>
    %c2 = arith.constant 2 : index
    %c0_46 = arith.constant 0 : index
    %c0_47 = arith.constant 0 : index
    %64 = vector.load %arg10[%c2, %c0_46, %c0_47] : memref<9x4x4xf32, #tpu.memory_space<vmem>>, vector<1x4x4xf32>
    %65 = vector.shape_cast %64 : vector<1x4x4xf32> to vector<4x4xf32>
    %cst_48 = arith.constant dense<0.000000e+00> : vector<4x256xf32>
    %66 = tpu.matmul %65, %63, %cst_48 {dimension_numbers = #tpu.dot_dimension_numbers<[1], [0], [0], [1], [0, 0, 1, 1], [], []>} : vector<4x4xf32>, vector<4x256xf32>, vector<4x256xf32> -> vector<4x256xf32>
    %67 = arith.addf %60, %66 : vector<4x256xf32>
    %c0_49 = arith.constant 0 : index
    %c127 = arith.constant 127 : index
    %68 = vector.load %arg19[%c0_49, %c127] : memref<4x512xf32, #tpu.memory_space<vmem>>, vector<4x256xf32>
    %69 = vector.broadcast %2 : vector<1x256xf32> to vector<4x256xf32>
    %70 = arith.mulf %68, %69 : vector<4x256xf32>
    %c3 = arith.constant 3 : index
    %c0_50 = arith.constant 0 : index
    %c0_51 = arith.constant 0 : index
    %71 = vector.load %arg10[%c3, %c0_50, %c0_51] : memref<9x4x4xf32, #tpu.memory_space<vmem>>, vector<1x4x4xf32>
    %72 = vector.shape_cast %71 : vector<1x4x4xf32> to vector<4x4xf32>
    %cst_52 = arith.constant dense<0.000000e+00> : vector<4x256xf32>
    %73 = tpu.matmul %72, %70, %cst_52 {dimension_numbers = #tpu.dot_dimension_numbers<[1], [0], [0], [1], [0, 0, 1, 1], [], []>} : vector<4x4xf32>, vector<4x256xf32>, vector<4x256xf32> -> vector<4x256xf32>
    %74 = arith.addf %67, %73 : vector<4x256xf32>
    %c0_53 = arith.constant 0 : index
    %c128_54 = arith.constant 128 : index
    %75 = vector.load %arg19[%c0_53, %c128_54] : memref<4x512xf32, #tpu.memory_space<vmem>>, vector<4x256xf32>
    %c4 = arith.constant 4 : index
    %c0_55 = arith.constant 0 : index
    %c0_56 = arith.constant 0 : index
    %76 = vector.load %arg10[%c4, %c0_55, %c0_56] : memref<9x4x4xf32, #tpu.memory_space<vmem>>, vector<1x4x4xf32>
    %77 = vector.shape_cast %76 : vector<1x4x4xf32> to vector<4x4xf32>
    %cst_57 = arith.constant dense<0.000000e+00> : vector<4x256xf32>
    %78 = tpu.matmul %77, %75, %cst_57 {dimension_numbers = #tpu.dot_dimension_numbers<[1], [0], [0], [1], [0, 0, 1, 1], [], []>} : vector<4x4xf32>, vector<4x256xf32>, vector<4x256xf32> -> vector<4x256xf32>
    %79 = arith.addf %74, %78 : vector<4x256xf32>
    %c0_58 = arith.constant 0 : index
    %c129 = arith.constant 129 : index
    %80 = vector.load %arg19[%c0_58, %c129] : memref<4x512xf32, #tpu.memory_space<vmem>>, vector<4x256xf32>
    %81 = vector.broadcast %3 : vector<1x256xf32> to vector<4x256xf32>
    %82 = arith.mulf %80, %81 : vector<4x256xf32>
    %c5 = arith.constant 5 : index
    %c0_59 = arith.constant 0 : index
    %c0_60 = arith.constant 0 : index
    %83 = vector.load %arg10[%c5, %c0_59, %c0_60] : memref<9x4x4xf32, #tpu.memory_space<vmem>>, vector<1x4x4xf32>
    %84 = vector.shape_cast %83 : vector<1x4x4xf32> to vector<4x4xf32>
    %cst_61 = arith.constant dense<0.000000e+00> : vector<4x256xf32>
    %85 = tpu.matmul %84, %82, %cst_61 {dimension_numbers = #tpu.dot_dimension_numbers<[1], [0], [0], [1], [0, 0, 1, 1], [], []>} : vector<4x4xf32>, vector<4x256xf32>, vector<4x256xf32> -> vector<4x256xf32>
    %86 = arith.addf %79, %85 : vector<4x256xf32>
    %c0_62 = arith.constant 0 : index
    %c143 = arith.constant 143 : index
    %87 = vector.load %arg19[%c0_62, %c143] : memref<4x512xf32, #tpu.memory_space<vmem>>, vector<4x256xf32>
    %88 = vector.broadcast %2 : vector<1x256xf32> to vector<4x256xf32>
    %89 = arith.mulf %87, %88 : vector<4x256xf32>
    %c6 = arith.constant 6 : index
    %c0_63 = arith.constant 0 : index
    %c0_64 = arith.constant 0 : index
    %90 = vector.load %arg10[%c6, %c0_63, %c0_64] : memref<9x4x4xf32, #tpu.memory_space<vmem>>, vector<1x4x4xf32>
    %91 = vector.shape_cast %90 : vector<1x4x4xf32> to vector<4x4xf32>
    %cst_65 = arith.constant dense<0.000000e+00> : vector<4x256xf32>
    %92 = tpu.matmul %91, %89, %cst_65 {dimension_numbers = #tpu.dot_dimension_numbers<[1], [0], [0], [1], [0, 0, 1, 1], [], []>} : vector<4x4xf32>, vector<4x256xf32>, vector<4x256xf32> -> vector<4x256xf32>
    %93 = arith.addf %86, %92 : vector<4x256xf32>
    %c0_66 = arith.constant 0 : index
    %c144 = arith.constant 144 : index
    %94 = vector.load %arg19[%c0_66, %c144] : memref<4x512xf32, #tpu.memory_space<vmem>>, vector<4x256xf32>
    %c7 = arith.constant 7 : index
    %c0_67 = arith.constant 0 : index
    %c0_68 = arith.constant 0 : index
    %95 = vector.load %arg10[%c7, %c0_67, %c0_68] : memref<9x4x4xf32, #tpu.memory_space<vmem>>, vector<1x4x4xf32>
    %96 = vector.shape_cast %95 : vector<1x4x4xf32> to vector<4x4xf32>
    %cst_69 = arith.constant dense<0.000000e+00> : vector<4x256xf32>
    %97 = tpu.matmul %96, %94, %cst_69 {dimension_numbers = #tpu.dot_dimension_numbers<[1], [0], [0], [1], [0, 0, 1, 1], [], []>} : vector<4x4xf32>, vector<4x256xf32>, vector<4x256xf32> -> vector<4x256xf32>
    %98 = arith.addf %93, %97 : vector<4x256xf32>
    %c0_70 = arith.constant 0 : index
    %c145 = arith.constant 145 : index
    %99 = vector.load %arg19[%c0_70, %c145] : memref<4x512xf32, #tpu.memory_space<vmem>>, vector<4x256xf32>
    %100 = vector.broadcast %3 : vector<1x256xf32> to vector<4x256xf32>
    %101 = arith.mulf %99, %100 : vector<4x256xf32>
    %c8 = arith.constant 8 : index
    %c0_71 = arith.constant 0 : index
    %c0_72 = arith.constant 0 : index
    %102 = vector.load %arg10[%c8, %c0_71, %c0_72] : memref<9x4x4xf32, #tpu.memory_space<vmem>>, vector<1x4x4xf32>
    %103 = vector.shape_cast %102 : vector<1x4x4xf32> to vector<4x4xf32>
    %cst_73 = arith.constant dense<0.000000e+00> : vector<4x256xf32>
    %104 = tpu.matmul %103, %101, %cst_73 {dimension_numbers = #tpu.dot_dimension_numbers<[1], [0], [0], [1], [0, 0, 1, 1], [], []>} : vector<4x4xf32>, vector<4x256xf32>, vector<4x256xf32> -> vector<4x256xf32>
    %105 = arith.addf %98, %104 : vector<4x256xf32>
    %c0_74 = arith.constant 0 : index
    %c0_75 = arith.constant 0 : index
    %106 = vector.load %arg11[%c0_74, %c0_75] : memref<4x1xf32, #tpu.memory_space<vmem>>, vector<4x1xf32>
    %107 = vector.broadcast %106 : vector<4x1xf32> to vector<4x256xf32>
    %108 = arith.addf %105, %107 : vector<4x256xf32>
    %cst_76 = arith.constant 5.000000e-01 : f32
    %109 = vector.broadcast %cst_76 : f32 to vector<4x256xf32>
    %110 = arith.mulf %109, %108 : vector<4x256xf32>
    %cst_77 = arith.constant 0.707106769 : f32
    %111 = vector.broadcast %cst_77 : f32 to vector<4x256xf32>
    %112 = arith.mulf %108, %111 : vector<4x256xf32>
    %113 = math.erf %112 : vector<4x256xf32>
    %cst_78 = arith.constant 1.000000e+00 : f32
    %114 = vector.broadcast %cst_78 : f32 to vector<4x256xf32>
    %115 = arith.addf %114, %113 : vector<4x256xf32>
    %116 = arith.mulf %110, %115 : vector<4x256xf32>
    %c0_79 = arith.constant 0 : index
    %c128_80 = arith.constant 128 : index
    %117 = vector.load %arg19[%c0_79, %c128_80] : memref<4x512xf32, #tpu.memory_space<vmem>>, vector<4x256xf32>
    tpu.vector_store %arg19[%c0_79, %c128_80], %116 {strides = array<i32>} : memref<4x512xf32, #tpu.memory_space<vmem>>, vector<4x256xf32>,
    %cst_81 = arith.constant 0.000000e+00 : f32
    %118 = vector.broadcast %cst_81 : f32 to vector<4x256xf32>
    %c0_82 = arith.constant 0 : index
    %c111_83 = arith.constant 111 : index
    %119 = vector.load %arg19[%c0_82, %c111_83] : memref<4x512xf32, #tpu.memory_space<vmem>>, vector<4x256xf32>
    %120 = vector.broadcast %2 : vector<1x256xf32> to vector<4x256xf32>
    %121 = arith.mulf %119, %120 : vector<4x256xf32>
    %c0_84 = arith.constant 0 : index
    %c0_85 = arith.constant 0 : index
    %c0_86 = arith.constant 0 : index
    %122 = vector.load %arg12[%c0_84, %c0_85, %c0_86] : memref<9x4x4xf32, #tpu.memory_space<vmem>>, vector<1x4x4xf32>
    %123 = vector.shape_cast %122 : vector<1x4x4xf32> to vector<4x4xf32>
    %cst_87 = arith.constant dense<0.000000e+00> : vector<4x256xf32>
    %124 = tpu.matmul %123, %121, %cst_87 {dimension_numbers = #tpu.dot_dimension_numbers<[1], [0], [0], [1], [0, 0, 1, 1], [], []>} : vector<4x4xf32>, vector<4x256xf32>, vector<4x256xf32> -> vector<4x256xf32>
    %125 = arith.addf %118, %124 : vector<4x256xf32>
    %c0_88 = arith.constant 0 : index
    %c112_89 = arith.constant 112 : index
    %126 = vector.load %arg19[%c0_88, %c112_89] : memref<4x512xf32, #tpu.memory_space<vmem>>, vector<4x256xf32>
    %c1_90 = arith.constant 1 : index
    %c0_91 = arith.constant 0 : index
    %c0_92 = arith.constant 0 : index
    %127 = vector.load %arg12[%c1_90, %c0_91, %c0_92] : memref<9x4x4xf32, #tpu.memory_space<vmem>>, vector<1x4x4xf32>
    %128 = vector.shape_cast %127 : vector<1x4x4xf32> to vector<4x4xf32>
    %cst_93 = arith.constant dense<0.000000e+00> : vector<4x256xf32>
    %129 = tpu.matmul %128, %126, %cst_93 {dimension_numbers = #tpu.dot_dimension_numbers<[1], [0], [0], [1], [0, 0, 1, 1], [], []>} : vector<4x4xf32>, vector<4x256xf32>, vector<4x256xf32> -> vector<4x256xf32>
    %130 = arith.addf %125, %129 : vector<4x256xf32>
    %c0_94 = arith.constant 0 : index
    %c113_95 = arith.constant 113 : index
    %131 = vector.load %arg19[%c0_94, %c113_95] : memref<4x512xf32, #tpu.memory_space<vmem>>, vector<4x256xf32>
    %132 = vector.broadcast %3 : vector<1x256xf32> to vector<4x256xf32>
    %133 = arith.mulf %131, %132 : vector<4x256xf32>
    %c2_96 = arith.constant 2 : index
    %c0_97 = arith.constant 0 : index
    %c0_98 = arith.constant 0 : index
    %134 = vector.load %arg12[%c2_96, %c0_97, %c0_98] : memref<9x4x4xf32, #tpu.memory_space<vmem>>, vector<1x4x4xf32>
    %135 = vector.shape_cast %134 : vector<1x4x4xf32> to vector<4x4xf32>
    %cst_99 = arith.constant dense<0.000000e+00> : vector<4x256xf32>
    %136 = tpu.matmul %135, %133, %cst_99 {dimension_numbers = #tpu.dot_dimension_numbers<[1], [0], [0], [1], [0, 0, 1, 1], [], []>} : vector<4x4xf32>, vector<4x256xf32>, vector<4x256xf32> -> vector<4x256xf32>
    %137 = arith.addf %130, %136 : vector<4x256xf32>
    %c0_100 = arith.constant 0 : index
    %c127_101 = arith.constant 127 : index
    %138 = vector.load %arg19[%c0_100, %c127_101] : memref<4x512xf32, #tpu.memory_space<vmem>>, vector<4x256xf32>
    %139 = vector.broadcast %2 : vector<1x256xf32> to vector<4x256xf32>
    %140 = arith.mulf %138, %139 : vector<4x256xf32>
    %c3_102 = arith.constant 3 : index
    %c0_103 = arith.constant 0 : index
    %c0_104 = arith.constant 0 : index
    %141 = vector.load %arg12[%c3_102, %c0_103, %c0_104] : memref<9x4x4xf32, #tpu.memory_space<vmem>>, vector<1x4x4xf32>
    %142 = vector.shape_cast %141 : vector<1x4x4xf32> to vector<4x4xf32>
    %cst_105 = arith.constant dense<0.000000e+00> : vector<4x256xf32>
    %143 = tpu.matmul %142, %140, %cst_105 {dimension_numbers = #tpu.dot_dimension_numbers<[1], [0], [0], [1], [0, 0, 1, 1], [], []>} : vector<4x4xf32>, vector<4x256xf32>, vector<4x256xf32> -> vector<4x256xf32>
    %144 = arith.addf %137, %143 : vector<4x256xf32>
    %c0_106 = arith.constant 0 : index
    %c128_107 = arith.constant 128 : index
    %145 = vector.load %arg19[%c0_106, %c128_107] : memref<4x512xf32, #tpu.memory_space<vmem>>, vector<4x256xf32>
    %c4_108 = arith.constant 4 : index
    %c0_109 = arith.constant 0 : index
    %c0_110 = arith.constant 0 : index
    %146 = vector.load %arg12[%c4_108, %c0_109, %c0_110] : memref<9x4x4xf32, #tpu.memory_space<vmem>>, vector<1x4x4xf32>
    %147 = vector.shape_cast %146 : vector<1x4x4xf32> to vector<4x4xf32>
    %cst_111 = arith.constant dense<0.000000e+00> : vector<4x256xf32>
    %148 = tpu.matmul %147, %145, %cst_111 {dimension_numbers = #tpu.dot_dimension_numbers<[1], [0], [0], [1], [0, 0, 1, 1], [], []>} : vector<4x4xf32>, vector<4x256xf32>, vector<4x256xf32> -> vector<4x256xf32>
    %149 = arith.addf %144, %148 : vector<4x256xf32>
    %c0_112 = arith.constant 0 : index
    %c129_113 = arith.constant 129 : index
    %150 = vector.load %arg19[%c0_112, %c129_113] : memref<4x512xf32, #tpu.memory_space<vmem>>, vector<4x256xf32>
    %151 = vector.broadcast %3 : vector<1x256xf32> to vector<4x256xf32>
    %152 = arith.mulf %150, %151 : vector<4x256xf32>
    %c5_114 = arith.constant 5 : index
    %c0_115 = arith.constant 0 : index
    %c0_116 = arith.constant 0 : index
    %153 = vector.load %arg12[%c5_114, %c0_115, %c0_116] : memref<9x4x4xf32, #tpu.memory_space<vmem>>, vector<1x4x4xf32>
    %154 = vector.shape_cast %153 : vector<1x4x4xf32> to vector<4x4xf32>
    %cst_117 = arith.constant dense<0.000000e+00> : vector<4x256xf32>
    %155 = tpu.matmul %154, %152, %cst_117 {dimension_numbers = #tpu.dot_dimension_numbers<[1], [0], [0], [1], [0, 0, 1, 1], [], []>} : vector<4x4xf32>, vector<4x256xf32>, vector<4x256xf32> -> vector<4x256xf32>
    %156 = arith.addf %149, %155 : vector<4x256xf32>
    %c0_118 = arith.constant 0 : index
    %c143_119 = arith.constant 143 : index
    %157 = vector.load %arg19[%c0_118, %c143_119] : memref<4x512xf32, #tpu.memory_space<vmem>>, vector<4x256xf32>
    %158 = vector.broadcast %2 : vector<1x256xf32> to vector<4x256xf32>
    %159 = arith.mulf %157, %158 : vector<4x256xf32>
    %c6_120 = arith.constant 6 : index
    %c0_121 = arith.constant 0 : index
    %c0_122 = arith.constant 0 : index
    %160 = vector.load %arg12[%c6_120, %c0_121, %c0_122] : memref<9x4x4xf32, #tpu.memory_space<vmem>>, vector<1x4x4xf32>
    %161 = vector.shape_cast %160 : vector<1x4x4xf32> to vector<4x4xf32>
    %cst_123 = arith.constant dense<0.000000e+00> : vector<4x256xf32>
    %162 = tpu.matmul %161, %159, %cst_123 {dimension_numbers = #tpu.dot_dimension_numbers<[1], [0], [0], [1], [0, 0, 1, 1], [], []>} : vector<4x4xf32>, vector<4x256xf32>, vector<4x256xf32> -> vector<4x256xf32>
    %163 = arith.addf %156, %162 : vector<4x256xf32>
    %c0_124 = arith.constant 0 : index
    %c144_125 = arith.constant 144 : index
    %164 = vector.load %arg19[%c0_124, %c144_125] : memref<4x512xf32, #tpu.memory_space<vmem>>, vector<4x256xf32>
    %c7_126 = arith.constant 7 : index
    %c0_127 = arith.constant 0 : index
    %c0_128 = arith.constant 0 : index
    %165 = vector.load %arg12[%c7_126, %c0_127, %c0_128] : memref<9x4x4xf32, #tpu.memory_space<vmem>>, vector<1x4x4xf32>
    %166 = vector.shape_cast %165 : vector<1x4x4xf32> to vector<4x4xf32>
    %cst_129 = arith.constant dense<0.000000e+00> : vector<4x256xf32>
    %167 = tpu.matmul %166, %164, %cst_129 {dimension_numbers = #tpu.dot_dimension_numbers<[1], [0], [0], [1], [0, 0, 1, 1], [], []>} : vector<4x4xf32>, vector<4x256xf32>, vector<4x256xf32> -> vector<4x256xf32>
    %168 = arith.addf %163, %167 : vector<4x256xf32>
    %c0_130 = arith.constant 0 : index
    %c145_131 = arith.constant 145 : index
    %169 = vector.load %arg19[%c0_130, %c145_131] : memref<4x512xf32, #tpu.memory_space<vmem>>, vector<4x256xf32>
    %170 = vector.broadcast %3 : vector<1x256xf32> to vector<4x256xf32>
    %171 = arith.mulf %169, %170 : vector<4x256xf32>
    %c8_132 = arith.constant 8 : index
    %c0_133 = arith.constant 0 : index
    %c0_134 = arith.constant 0 : index
    %172 = vector.load %arg12[%c8_132, %c0_133, %c0_134] : memref<9x4x4xf32, #tpu.memory_space<vmem>>, vector<1x4x4xf32>
    %173 = vector.shape_cast %172 : vector<1x4x4xf32> to vector<4x4xf32>
    %cst_135 = arith.constant dense<0.000000e+00> : vector<4x256xf32>
    %174 = tpu.matmul %173, %171, %cst_135 {dimension_numbers = #tpu.dot_dimension_numbers<[1], [0], [0], [1], [0, 0, 1, 1], [], []>} : vector<4x4xf32>, vector<4x256xf32>, vector<4x256xf32> -> vector<4x256xf32>
    %175 = arith.addf %168, %174 : vector<4x256xf32>
    %c0_136 = arith.constant 0 : index
    %c0_137 = arith.constant 0 : index
    %176 = vector.load %arg13[%c0_136, %c0_137] : memref<4x1xf32, #tpu.memory_space<vmem>>, vector<4x1xf32>
    %177 = vector.broadcast %176 : vector<4x1xf32> to vector<4x256xf32>
    %178 = arith.addf %175, %177 : vector<4x256xf32>
    %cst_138 = arith.constant 5.000000e-01 : f32
    %179 = vector.broadcast %cst_138 : f32 to vector<4x256xf32>
    %180 = arith.mulf %179, %178 : vector<4x256xf32>
    %cst_139 = arith.constant 0.707106769 : f32
    %181 = vector.broadcast %cst_139 : f32 to vector<4x256xf32>
    %182 = arith.mulf %178, %181 : vector<4x256xf32>
    %183 = math.erf %182 : vector<4x256xf32>
    %cst_140 = arith.constant 1.000000e+00 : f32
    %184 = vector.broadcast %cst_140 : f32 to vector<4x256xf32>
    %185 = arith.addf %184, %183 : vector<4x256xf32>
    %186 = arith.mulf %180, %185 : vector<4x256xf32>
    %c0_141 = arith.constant 0 : index
    %c0_142 = arith.constant 0 : index
    %187 = vector.load %arg14[%c0_141, %c0_142] : memref<8x4xf32, #tpu.memory_space<vmem>>, vector<8x4xf32>
    %cst_143 = arith.constant dense<0.000000e+00> : vector<8x256xf32>
    %188 = tpu.matmul %187, %29, %cst_143 {dimension_numbers = #tpu.dot_dimension_numbers<[1], [0], [0], [1], [0, 0, 1, 1], [], []>} : vector<8x4xf32>, vector<4x256xf32>, vector<8x256xf32> -> vector<8x256xf32>
    %c0_144 = arith.constant 0 : index
    %c0_145 = arith.constant 0 : index
    %189 = vector.load %arg15[%c0_144, %c0_145] : memref<8x4xf32, #tpu.memory_space<vmem>>, vector<8x4xf32>
    %cst_146 = arith.constant dense<0.000000e+00> : vector<8x256xf32>
    %190 = tpu.matmul %189, %42, %cst_146 {dimension_numbers = #tpu.dot_dimension_numbers<[1], [0], [0], [1], [0, 0, 1, 1], [], []>} : vector<8x4xf32>, vector<4x256xf32>, vector<8x256xf32> -> vector<8x256xf32>
    %191 = arith.addf %188, %190 : vector<8x256xf32>
    %c0_147 = arith.constant 0 : index
    %c0_148 = arith.constant 0 : index
    %192 = vector.load %arg16[%c0_147, %c0_148] : memref<8x4xf32, #tpu.memory_space<vmem>>, vector<8x4xf32>
    %cst_149 = arith.constant dense<0.000000e+00> : vector<8x256xf32>
    %193 = tpu.matmul %192, %186, %cst_149 {dimension_numbers = #tpu.dot_dimension_numbers<[1], [0], [0], [1], [0, 0, 1, 1], [], []>} : vector<8x4xf32>, vector<4x256xf32>, vector<8x256xf32> -> vector<8x256xf32>
    %194 = arith.addf %191, %193 : vector<8x256xf32>
    %c0_150 = arith.constant 0 : index
    %c0_151 = arith.constant 0 : index
    %195 = vector.load %arg17[%c0_150, %c0_151] : memref<8x1xf32, #tpu.memory_space<vmem>>, vector<8x1xf32>
    %196 = vector.broadcast %195 : vector<8x1xf32> to vector<8x256xf32>
    %197 = arith.addf %194, %196 : vector<8x256xf32>
    %cst_152 = arith.constant 5.000000e-01 : f32
    %198 = vector.broadcast %cst_152 : f32 to vector<8x256xf32>
    %199 = arith.mulf %198, %197 : vector<8x256xf32>
    %cst_153 = arith.constant 0.707106769 : f32
    %200 = vector.broadcast %cst_153 : f32 to vector<8x256xf32>
    %201 = arith.mulf %197, %200 : vector<8x256xf32>
    %202 = math.erf %201 : vector<8x256xf32>
    %cst_154 = arith.constant 1.000000e+00 : f32
    %203 = vector.broadcast %cst_154 : f32 to vector<8x256xf32>
    %204 = arith.addf %203, %202 : vector<8x256xf32>
    %205 = arith.mulf %199, %204 : vector<8x256xf32>
    %c0_155 = arith.constant 0 : index
    %c0_156 = arith.constant 0 : index
    %c0_157 = arith.constant 0 : index
    %206 = vector.load %arg18[%c0_155, %c0_156, %c0_157] : memref<1x8x256xf32, #tpu.memory_space<vmem>>, vector<1x8x256xf32>
    %207 = vector.shape_cast %206 : vector<1x8x256xf32> to vector<8x256xf32>
    %208 = vector.shape_cast %205 : vector<8x256xf32> to vector<1x8x256xf32>
    tpu.vector_store %arg18[%c0_155, %c0_156, %c0_157], %208 {strides = array<i32>} : memref<1x8x256xf32, #tpu.memory_space<vmem>>, vector<1x8x256xf32>,
    return
  }
  func.func @transform_0(%arg0: i32) -> (i32, i32, i32) {
    %c0_i32 = arith.constant 0 : i32
    %c0_i32_0 = arith.constant 0 : i32
    %c0_i32_1 = arith.constant 0 : i32
    return %arg0, %c0_i32, %c0_i32_0 : i32, i32, i32
  }
  func.func @transform_1(%arg0: i32) -> (i32, i32) {
    %c0_i32 = arith.constant 0 : i32
    %c0_i32_0 = arith.constant 0 : i32
    %c0_i32_1 = arith.constant 0 : i32
    return %c0_i32, %c0_i32_0 : i32, i32
  }
  func.func @transform_2(%arg0: i32) -> (i32, i32) {
    %c0_i32 = arith.constant 0 : i32
    %c0_i32_0 = arith.constant 0 : i32
    %c0_i32_1 = arith.constant 0 : i32
    return %c0_i32, %c0_i32_0 : i32, i32
  }
  func.func @transform_3(%arg0: i32) -> (i32, i32) {
    %c0_i32 = arith.constant 0 : i32
    %c0_i32_0 = arith.constant 0 : i32
    %c0_i32_1 = arith.constant 0 : i32
    return %c0_i32, %c0_i32_0 : i32, i32
  }
  func.func @transform_4(%arg0: i32) -> (i32, i32) {
    %c0_i32 = arith.constant 0 : i32
    %c0_i32_0 = arith.constant 0 : i32
    %c0_i32_1 = arith.constant 0 : i32
    return %c0_i32, %c0_i32_0 : i32, i32
  }
  func.func @transform_5(%arg0: i32) -> (i32, i32) {
    %c0_i32 = arith.constant 0 : i32
    %c0_i32_0 = arith.constant 0 : i32
    %c0_i32_1 = arith.constant 0 : i32
    return %c0_i32, %c0_i32_0 : i32, i32
  }
  func.func @transform_6(%arg0: i32) -> (i32, i32) {
    %c0_i32 = arith.constant 0 : i32
    %c0_i32_0 = arith.constant 0 : i32
    %c0_i32_1 = arith.constant 0 : i32
    return %c0_i32, %c0_i32_0 : i32, i32
  }
  func.func @transform_7(%arg0: i32) -> (i32, i32) {
    %c0_i32 = arith.constant 0 : i32
    %c0_i32_0 = arith.constant 0 : i32
    %c0_i32_1 = arith.constant 0 : i32
    return %c0_i32, %c0_i32_0 : i32, i32
  }
  func.func @transform_8(%arg0: i32) -> (i32, i32) {
    %c0_i32 = arith.constant 0 : i32
    %c0_i32_0 = arith.constant 0 : i32
    %c0_i32_1 = arith.constant 0 : i32
    return %c0_i32, %c0_i32_0 : i32, i32
  }
  func.func @transform_9(%arg0: i32) -> (i32, i32, i32) {
    %c0_i32 = arith.constant 0 : i32
    %c0_i32_0 = arith.constant 0 : i32
    %c0_i32_1 = arith.constant 0 : i32
    %c0_i32_2 = arith.constant 0 : i32
    return %c0_i32, %c0_i32_0, %c0_i32_1 : i32, i32, i32
  }
  func.func @transform_10(%arg0: i32) -> (i32, i32) {
    %c0_i32 = arith.constant 0 : i32
    %c0_i32_0 = arith.constant 0 : i32
    %c0_i32_1 = arith.constant 0 : i32
    return %c0_i32, %c0_i32_0 : i32, i32
  }
  func.func @transform_11(%arg0: i32) -> (i32, i32, i32) {
    %c0_i32 = arith.constant 0 : i32
    %c0_i32_0 = arith.constant 0 : i32
    %c0_i32_1 = arith.constant 0 : i32
    %c0_i32_2 = arith.constant 0 : i32
    return %c0_i32, %c0_i32_0, %c0_i32_1 : i32, i32, i32
  }
  func.func @transform_12(%arg0: i32) -> (i32, i32) {
    %c0_i32 = arith.constant 0 : i32
    %c0_i32_0 = arith.constant 0 : i32
    %c0_i32_1 = arith.constant 0 : i32
    return %c0_i32, %c0_i32_0 : i32, i32
  }
  func.func @transform_13(%arg0: i32) -> (i32, i32) {
    %c0_i32 = arith.constant 0 : i32
    %c0_i32_0 = arith.constant 0 : i32
    %c0_i32_1 = arith.constant 0 : i32
    return %c0_i32, %c0_i32_0 : i32, i32
  }
  func.func @transform_14(%arg0: i32) -> (i32, i32) {
    %c0_i32 = arith.constant 0 : i32
    %c0_i32_0 = arith.constant 0 : i32
    %c0_i32_1 = arith.constant 0 : i32
    return %c0_i32, %c0_i32_0 : i32, i32
  }
  func.func @transform_15(%arg0: i32) -> (i32, i32) {
    %c0_i32 = arith.constant 0 : i32
    %c0_i32_0 = arith.constant 0 : i32
    %c0_i32_1 = arith.constant 0 : i32
    return %c0_i32, %c0_i32_0 : i32, i32
  }
  func.func @transform_16(%arg0: i32) -> (i32, i32) {
    %c0_i32 = arith.constant 0 : i32
    %c0_i32_0 = arith.constant 0 : i32
    %c0_i32_1 = arith.constant 0 : i32
    return %c0_i32, %c0_i32_0 : i32, i32
  }
  func.func @transform_17(%arg0: i32) -> (i32, i32, i32) {
    %c0_i32 = arith.constant 0 : i32
    %c0_i32_0 = arith.constant 0 : i32
    %c0_i32_1 = arith.constant 0 : i32
    return %arg0, %c0_i32, %c0_i32_0 : i32, i32, i32
  }
}

</mosaic_0001>

<llo_original>
// kernel: crack_bottleneck_forward.1
$region0: #{crack_bottleneck_forward.1}
  #allocation0 [shape = 'u32[]', space=smem, size = 0x4, offset = 0x4, fixed_abs, tag = 'smem constant byte address 0x4 - core index']
  #allocation1 [shape = 'u32[144,128]{1,0:T(1,128)}', space=vmem, size = 0x12000, scoped, tag = 'internal scratch']
  #allocation2 [shape = 'f32[4,512]{1,0:T(4,128)}', space=vmem, size = 0x2000, scoped, tag = 'scratch operand']
  %s0 = inlined_call_operand.vmem [shape: f32[2,4,256], index: 0, kind: input, shape index: {}]
  %s1 = inlined_call_operand.vmem [shape: f32[1,256], index: 1, kind: input, shape index: {}]
  %s2 = inlined_call_operand.vmem [shape: f32[1,256], index: 2, kind: input, shape index: {}]
  %s3 = inlined_call_operand.vmem [shape: f32[8,4], index: 3, kind: input, shape index: {}]
  %s4 = inlined_call_operand.vmem [shape: f32[8,1], index: 4, kind: input, shape index: {}]
  %s5 = inlined_call_operand.vmem [shape: f32[4,8], index: 5, kind: input, shape index: {}]
  %s6 = inlined_call_operand.vmem [shape: f32[4,1], index: 6, kind: input, shape index: {}]
  %s7 = inlined_call_operand.vmem [shape: f32[4,8], index: 7, kind: input, shape index: {}]
  %s8 = inlined_call_operand.vmem [shape: f32[4,1], index: 8, kind: input, shape index: {}]
  %s9 = inlined_call_operand.vmem [shape: f32[9,4,4], index: 9, kind: input, shape index: {}]
  %s10 = inlined_call_operand.vmem [shape: f32[4,1], index: 10, kind: input, shape index: {}]
  %s11 = inlined_call_operand.vmem [shape: f32[9,4,4], index: 11, kind: input, shape index: {}]
  %s12 = inlined_call_operand.vmem [shape: f32[4,1], index: 12, kind: input, shape index: {}]
  %s13 = inlined_call_operand.vmem [shape: f32[8,4], index: 13, kind: input, shape index: {}]
  %s14 = inlined_call_operand.vmem [shape: f32[8,4], index: 14, kind: input, shape index: {}]
  %s15 = inlined_call_operand.vmem [shape: f32[8,4], index: 15, kind: input, shape index: {}]
  %s16 = inlined_call_operand.vmem [shape: f32[8,1], index: 16, kind: input, shape index: {}]
  %s17 = inlined_call_operand.vmem [shape: f32[2,8,256], index: 17, kind: output, shape index: {}]
  %s18 = sld [smem:[#allocation0]]
  $region101: #{crack_bottleneck_forward.1} parent=0
    _
  %s20 = ssub.s32 1, %s18
  %s21 = scalar_select 0, %s20, %s18
  loop: start=0, step=1, limit=4
  $region2: #{crack_bottleneck_forward.1} parent=0 // loop_pre_header
    _
  $region3: #{crack_bottleneck_forward.1} parent=0 // loop_header
    %s23 = sphi 0, %s27
    %p24 = scmp.ge.s32.totalorder %s23, 4
    %s33 = sphi 0, %s35
    %s36 = sphi 0, %s33
    %s37 = sphi 0, %s36
    %s53 = sphi 0, %s37
    %s57 = sphi 0, %s57
    %s59 = sphi 0, %s57
    %s60 = sphi 0, %s59
    %s74 = sphi 0, %s60
    %s78 = sphi 0, %s78
    %s80 = sphi 0, %s78
    %s81 = sphi 0, %s80
    %s95 = sphi 0, %s81
    %s99 = sphi 0, %s99
    %s101 = sphi 0, %s99
    %s102 = sphi 0, %s101
    %s116 = sphi 0, %s102
    %s120 = sphi 0, %s120
    %s122 = sphi 0, %s120
    %s123 = sphi 0, %s122
    %s137 = sphi 0, %s123
    %s141 = sphi 0, %s141
    %s143 = sphi 0, %s141
    %s144 = sphi 0, %s143
    %s158 = sphi 0, %s144
    %s162 = sphi 0, %s162
    %s164 = sphi 0, %s162
    %s165 = sphi 0, %s164
    %s179 = sphi 0, %s165
    %s183 = sphi 0, %s183
    %s185 = sphi 0, %s183
    %s186 = sphi 0, %s185
    %s200 = sphi 0, %s186
    %s204 = sphi 0, %s204
    %s206 = sphi 0, %s204
    %s207 = sphi 0, %s206
    %s221 = sphi 0, %s207
    %s225 = sphi 0, %s225
    %s227 = sphi 0, %s225
    %s228 = sphi 0, %s227
    %s242 = sphi 0, %s228
    %s246 = sphi 0, %s246
    %s248 = sphi 0, %s246
    %s249 = sphi 0, %s248
    %s263 = sphi 0, %s249
    %s267 = sphi 0, %s267
    %s269 = sphi 0, %s267
    %s270 = sphi 0, %s269
    %s284 = sphi 0, %s270
    %s288 = sphi 0, %s288
    %s290 = sphi 0, %s288
    %s291 = sphi 0, %s290
    %s305 = sphi 0, %s291
    %s309 = sphi 0, %s309
    %s311 = sphi 0, %s309
    %s312 = sphi 0, %s311
    %s326 = sphi 0, %s312
    %s330 = sphi 0, %s330
    %s332 = sphi 0, %s330
    %s333 = sphi 0, %s332
    %s347 = sphi 0, %s333
    %s351 = sphi 0, %s351
    %s353 = sphi 0, %s351
    %s354 = sphi 0, %s353
    %s368 = sphi 0, %s354
    %s372 = sphi 0, %s372
    %s374 = sphi 0, %s372
    %s375 = sphi 0, %s374
    %s389 = sphi 0, %s375
    %s395 = sphi 0, %s397
    %s398 = sphi 0, %s395
    %s399 = sphi 0, %s398
    %s415 = sphi 0, %s399
  $region4: #{crack_bottleneck_forward.1} parent=0 // loop_header_branch
    %26 = sbr.rel (%p24) target = $region8
  $region5: #{crack_bottleneck_forward.1} parent=0 // loop_body
    %s28 = ssub.s32 %s23, 1
    %s29 = ssub.s32 %s23, 2
    %s30 = sadd.s32 %s23, 1
    %s31 = ssub.s32 %s23, %s30
    %p32 = scmp.eq.s32.totalorder %s31, 0
    %s34 = sadd.s32 %s33, 1
    %s35 = scalar_select %p32, %s33, %s34
    %p38 = pneg %p32
    %p39 = scmp.eq.s32.totalorder %s23, 1
    %p40 = por %p38, %p39
    %p41 = scmp.ne.s32.totalorder %s33, %s36
    %p42 = scmp.eq.s32.totalorder %s23, 0
    %p43 = por %p41, %p42
    %p44 = scmp.ne.s32.totalorder %s33, %s36
    %p45 = scmp.eq.s32.totalorder %s28, 1
    %p46 = por %p44, %p45
    %p47 = scmp.ne.s32.totalorder %s36, %s37
    %p48 = scmp.eq.s32.totalorder %s28, 0
    %p49 = por %p47, %p48
    %p50 = scmp.ne.s32.totalorder %s36, %s37
    %p51 = scmp.eq.s32.totalorder %s29, 1
    %p52 = por %p50, %p51
    %p54 = scmp.ne.s32.totalorder %s37, %s53
    %p55 = scmp.eq.s32.totalorder %s29, 0
    %p56 = por %p54, %p55
    %s58 = sadd.s32 %s57, 1
    %p61 = scmp.eq.s32.totalorder %s23, 1
    %p62 = scmp.ne.s32.totalorder %s57, %s59
    %p63 = scmp.eq.s32.totalorder %s23, 0
    %p64 = por %p62, %p63
    %p65 = scmp.ne.s32.totalorder %s57, %s59
    %p66 = scmp.eq.s32.totalorder %s28, 1
    %p67 = por %p65, %p66
    %p68 = scmp.ne.s32.totalorder %s59, %s60
    %p69 = scmp.eq.s32.totalorder %s28, 0
    %p70 = por %p68, %p69
    %p71 = scmp.ne.s32.totalorder %s59, %s60
    %p72 = scmp.eq.s32.totalorder %s29, 1
    %p73 = por %p71, %p72
    %p75 = scmp.ne.s32.totalorder %s60, %s74
    %p76 = scmp.eq.s32.totalorder %s29, 0
    %p77 = por %p75, %p76
    %s79 = sadd.s32 %s78, 1
    %p82 = scmp.eq.s32.totalorder %s23, 1
    %p83 = scmp.ne.s32.totalorder %s78, %s80
    %p84 = scmp.eq.s32.totalorder %s23, 0
    %p85 = por %p83, %p84
    %p86 = scmp.ne.s32.totalorder %s78, %s80
    %p87 = scmp.eq.s32.totalorder %s28, 1
    %p88 = por %p86, %p87
    %p89 = scmp.ne.s32.totalorder %s80, %s81
    %p90 = scmp.eq.s32.totalorder %s28, 0
    %p91 = por %p89, %p90
    %p92 = scmp.ne.s32.totalorder %s80, %s81
    %p93 = scmp.eq.s32.totalorder %s29, 1
    %p94 = por %p92, %p93
    %p96 = scmp.ne.s32.totalorder %s81, %s95
    %p97 = scmp.eq.s32.totalorder %s29, 0
    %p98 = por %p96, %p97
    %s100 = sadd.s32 %s99, 1
    %p103 = scmp.eq.s32.totalorder %s23, 1
    %p104 = scmp.ne.s32.totalorder %s99, %s101
    %p105 = scmp.eq.s32.totalorder %s23, 0
    %p106 = por %p104, %p105
    %p107 = scmp.ne.s32.totalorder %s99, %s101
    %p108 = scmp.eq.s32.totalorder %s28, 1
    %p109 = por %p107, %p108
    %p110 = scmp.ne.s32.totalorder %s101, %s102
    %p111 = scmp.eq.s32.totalorder %s28, 0
    %p112 = por %p110, %p111
    %p113 = scmp.ne.s32.totalorder %s101, %s102
    %p114 = scmp.eq.s32.totalorder %s29, 1
    %p115 = por %p113, %p114
    %p117 = scmp.ne.s32.totalorder %s102, %s116
    %p118 = scmp.eq.s32.totalorder %s29, 0
    %p119 = por %p117, %p118
    %s121 = sadd.s32 %s120, 1
    %p124 = scmp.eq.s32.totalorder %s23, 1
    %p125 = scmp.ne.s32.totalorder %s120, %s122
    %p126 = scmp.eq.s32.totalorder %s23, 0
    %p127 = por %p125, %p126
    %p128 = scmp.ne.s32.totalorder %s120, %s122
    %p129 = scmp.eq.s32.totalorder %s28, 1
    %p130 = por %p128, %p129
    %p131 = scmp.ne.s32.totalorder %s122, %s123
    %p132 = scmp.eq.s32.totalorder %s28, 0
    %p133 = por %p131, %p132
    %p134 = scmp.ne.s32.totalorder %s122, %s123
    %p135 = scmp.eq.s32.totalorder %s29, 1
    %p136 = por %p134, %p135
    %p138 = scmp.ne.s32.totalorder %s123, %s137
    %p139 = scmp.eq.s32.totalorder %s29, 0
    %p140 = por %p138, %p139
    %s142 = sadd.s32 %s141, 1
    %p145 = scmp.eq.s32.totalorder %s23, 1
    %p146 = scmp.ne.s32.totalorder %s141, %s143
    %p147 = scmp.eq.s32.totalorder %s23, 0
    %p148 = por %p146, %p147
    %p149 = scmp.ne.s32.totalorder %s141, %s143
    %p150 = scmp.eq.s32.totalorder %s28, 1
    %p151 = por %p149, %p150
    %p152 = scmp.ne.s32.totalorder %s143, %s144
    %p153 = scmp.eq.s32.totalorder %s28, 0
    %p154 = por %p152, %p153
    %p155 = scmp.ne.s32.totalorder %s143, %s144
    %p156 = scmp.eq.s32.totalorder %s29, 1
    %p157 = por %p155, %p156
    %p159 = scmp.ne.s32.totalorder %s144, %s158
    %p160 = scmp.eq.s32.totalorder %s29, 0
    %p161 = por %p159, %p160
    %s163 = sadd.s32 %s162, 1
    %p166 = scmp.eq.s32.totalorder %s23, 1
    %p167 = scmp.ne.s32.totalorder %s162, %s164
    %p168 = scmp.eq.s32.totalorder %s23, 0
    %p169 = por %p167, %p168
    %p170 = scmp.ne.s32.totalorder %s162, %s164
    %p171 = scmp.eq.s32.totalorder %s28, 1
    %p172 = por %p170, %p171
    %p173 = scmp.ne.s32.totalorder %s164, %s165
    %p174 = scmp.eq.s32.totalorder %s28, 0
    %p175 = por %p173, %p174
    %p176 = scmp.ne.s32.totalorder %s164, %s165
    %p177 = scmp.eq.s32.totalorder %s29, 1
    %p178 = por %p176, %p177
    %p180 = scmp.ne.s32.totalorder %s165, %s179
    %p181 = scmp.eq.s32.totalorder %s29, 0
    %p182 = por %p180, %p181
    %s184 = sadd.s32 %s183, 1
    %p187 = scmp.eq.s32.totalorder %s23, 1
    %p188 = scmp.ne.s32.totalorder %s183, %s185
    %p189 = scmp.eq.s32.totalorder %s23, 0
    %p190 = por %p188, %p189
    %p191 = scmp.ne.s32.totalorder %s183, %s185
    %p192 = scmp.eq.s32.totalorder %s28, 1
    %p193 = por %p191, %p192
    %p194 = scmp.ne.s32.totalorder %s185, %s186
    %p195 = scmp.eq.s32.totalorder %s28, 0
    %p196 = por %p194, %p195
    %p197 = scmp.ne.s32.totalorder %s185, %s186
    %p198 = scmp.eq.s32.totalorder %s29, 1
    %p199 = por %p197, %p198
    %p201 = scmp.ne.s32.totalorder %s186, %s200
    %p202 = scmp.eq.s32.totalorder %s29, 0
    %p203 = por %p201, %p202
    %s205 = sadd.s32 %s204, 1
    %p208 = scmp.eq.s32.totalorder %s23, 1
    %p209 = scmp.ne.s32.totalorder %s204, %s206
    %p210 = scmp.eq.s32.totalorder %s23, 0
    %p211 = por %p209, %p210
    %p212 = scmp.ne.s32.totalorder %s204, %s206
    %p213 = scmp.eq.s32.totalorder %s28, 1
    %p214 = por %p212, %p213
    %p215 = scmp.ne.s32.totalorder %s206, %s207
    %p216 = scmp.eq.s32.totalorder %s28, 0
    %p217 = por %p215, %p216
    %p218 = scmp.ne.s32.totalorder %s206, %s207
    %p219 = scmp.eq.s32.totalorder %s29, 1
    %p220 = por %p218, %p219
    %p222 = scmp.ne.s32.totalorder %s207, %s221
    %p223 = scmp.eq.s32.totalorder %s29, 0
    %p224 = por %p222, %p223
    %s226 = sadd.s32 %s225, 1
    %p229 = scmp.eq.s32.totalorder %s23, 1
    %p230 = scmp.ne.s32.totalorder %s225, %s227
    %p231 = scmp.eq.s32.totalorder %s23, 0
    %p232 = por %p230, %p231
    %p233 = scmp.ne.s32.totalorder %s225, %s227
    %p234 = scmp.eq.s32.totalorder %s28, 1
    %p235 = por %p233, %p234
    %p236 = scmp.ne.s32.totalorder %s227, %s228
    %p237 = scmp.eq.s32.totalorder %s28, 0
    %p238 = por %p236, %p237
    %p239 = scmp.ne.s32.totalorder %s227, %s228
    %p240 = scmp.eq.s32.totalorder %s29, 1
    %p241 = por %p239, %p240
    %p243 = scmp.ne.s32.totalorder %s228, %s242
    %p244 = scmp.eq.s32.totalorder %s29, 0
    %p245 = por %p243, %p244
    %s247 = sadd.s32 %s246, 1
    %p250 = scmp.eq.s32.totalorder %s23, 1
    %p251 = scmp.ne.s32.totalorder %s246, %s248
    %p252 = scmp.eq.s32.totalorder %s23, 0
    %p253 = por %p251, %p252
    %p254 = scmp.ne.s32.totalorder %s246, %s248
    %p255 = scmp.eq.s32.totalorder %s28, 1
    %p256 = por %p254, %p255
    %p257 = scmp.ne.s32.totalorder %s248, %s249
    %p258 = scmp.eq.s32.totalorder %s28, 0
    %p259 = por %p257, %p258
    %p260 = scmp.ne.s32.totalorder %s248, %s249
    %p261 = scmp.eq.s32.totalorder %s29, 1
    %p262 = por %p260, %p261
    %p264 = scmp.ne.s32.totalorder %s249, %s263
    %p265 = scmp.eq.s32.totalorder %s29, 0
    %p266 = por %p264, %p265
    %s268 = sadd.s32 %s267, 1
    %p271 = scmp.eq.s32.totalorder %s23, 1
    %p272 = scmp.ne.s32.totalorder %s267, %s269
    %p273 = scmp.eq.s32.totalorder %s23, 0
    %p274 = por %p272, %p273
    %p275 = scmp.ne.s32.totalorder %s267, %s269
    %p276 = scmp.eq.s32.totalorder %s28, 1
    %p277 = por %p275, %p276
    %p278 = scmp.ne.s32.totalorder %s269, %s270
    %p279 = scmp.eq.s32.totalorder %s28, 0
    %p280 = por %p278, %p279
    %p281 = scmp.ne.s32.totalorder %s269, %s270
    %p282 = scmp.eq.s32.totalorder %s29, 1
    %p283 = por %p281, %p282
    %p285 = scmp.ne.s32.totalorder %s270, %s284
    %p286 = scmp.eq.s32.totalorder %s29, 0
    %p287 = por %p285, %p286
    %s289 = sadd.s32 %s288, 1
    %p292 = scmp.eq.s32.totalorder %s23, 1
    %p293 = scmp.ne.s32.totalorder %s288, %s290
    %p294 = scmp.eq.s32.totalorder %s23, 0
    %p295 = por %p293, %p294
    %p296 = scmp.ne.s32.totalorder %s288, %s290
    %p297 = scmp.eq.s32.totalorder %s28, 1
    %p298 = por %p296, %p297
    %p299 = scmp.ne.s32.totalorder %s290, %s291
    %p300 = scmp.eq.s32.totalorder %s28, 0
    %p301 = por %p299, %p300
    %p302 = scmp.ne.s32.totalorder %s290, %s291
    %p303 = scmp.eq.s32.totalorder %s29, 1
    %p304 = por %p302, %p303
    %p306 = scmp.ne.s32.totalorder %s291, %s305
    %p307 = scmp.eq.s32.totalorder %s29, 0
    %p308 = por %p306, %p307
    %s310 = sadd.s32 %s309, 1
    %p313 = scmp.eq.s32.totalorder %s23, 1
    %p314 = scmp.ne.s32.totalorder %s309, %s311
    %p315 = scmp.eq.s32.totalorder %s23, 0
    %p316 = por %p314, %p315
    %p317 = scmp.ne.s32.totalorder %s309, %s311
    %p318 = scmp.eq.s32.totalorder %s28, 1
    %p319 = por %p317, %p318
    %p320 = scmp.ne.s32.totalorder %s311, %s312
    %p321 = scmp.eq.s32.totalorder %s28, 0
    %p322 = por %p320, %p321
    %p323 = scmp.ne.s32.totalorder %s311, %s312
    %p324 = scmp.eq.s32.totalorder %s29, 1
    %p325 = por %p323, %p324
    %p327 = scmp.ne.s32.totalorder %s312, %s326
    %p328 = scmp.eq.s32.totalorder %s29, 0
    %p329 = por %p327, %p328
    %s331 = sadd.s32 %s330, 1
    %p334 = scmp.eq.s32.totalorder %s23, 1
    %p335 = scmp.ne.s32.totalorder %s330, %s332
    %p336 = scmp.eq.s32.totalorder %s23, 0
    %p337 = por %p335, %p336
    %p338 = scmp.ne.s32.totalorder %s330, %s332
    %p339 = scmp.eq.s32.totalorder %s28, 1
    %p340 = por %p338, %p339
    %p341 = scmp.ne.s32.totalorder %s332, %s333
    %p342 = scmp.eq.s32.totalorder %s28, 0
    %p343 = por %p341, %p342
    %p344 = scmp.ne.s32.totalorder %s332, %s333
    %p345 = scmp.eq.s32.totalorder %s29, 1
    %p346 = por %p344, %p345
    %p348 = scmp.ne.s32.totalorder %s333, %s347
    %p349 = scmp.eq.s32.totalorder %s29, 0
    %p350 = por %p348, %p349
    %s352 = sadd.s32 %s351, 1
    %p355 = scmp.eq.s32.totalorder %s23, 1
    %p356 = scmp.ne.s32.totalorder %s351, %s353
    %p357 = scmp.eq.s32.totalorder %s23, 0
    %p358 = por %p356, %p357
    %p359 = scmp.ne.s32.totalorder %s351, %s353
    %p360 = scmp.eq.s32.totalorder %s28, 1
    %p361 = por %p359, %p360
    %p362 = scmp.ne.s32.totalorder %s353, %s354
    %p363 = scmp.eq.s32.totalorder %s28, 0
    %p364 = por %p362, %p363
    %p365 = scmp.ne.s32.totalorder %s353, %s354
    %p366 = scmp.eq.s32.totalorder %s29, 1
    %p367 = por %p365, %p366
    %p369 = scmp.ne.s32.totalorder %s354, %s368
    %p370 = scmp.eq.s32.totalorder %s29, 0
    %p371 = por %p369, %p370
    %s373 = sadd.s32 %s372, 1
    %p376 = scmp.eq.s32.totalorder %s23, 1
    %p377 = scmp.ne.s32.totalorder %s372, %s374
    %p378 = scmp.eq.s32.totalorder %s23, 0
    %p379 = por %p377, %p378
    %p380 = scmp.ne.s32.totalorder %s372, %s374
    %p381 = scmp.eq.s32.totalorder %s28, 1
    %p382 = por %p380, %p381
    %p383 = scmp.ne.s32.totalorder %s374, %s375
    %p384 = scmp.eq.s32.totalorder %s28, 0
    %p385 = por %p383, %p384
    %p386 = scmp.ne.s32.totalorder %s374, %s375
    %p387 = scmp.eq.s32.totalorder %s29, 1
    %p388 = por %p386, %p387
    %p390 = scmp.ne.s32.totalorder %s375, %s389
    %p391 = scmp.eq.s32.totalorder %s29, 0
    %p392 = por %p390, %p391
    %s393 = ssub.s32 %s23, %s30
    %p394 = scmp.eq.s32.totalorder %s393, 0
    %s396 = sadd.s32 %s395, 1
    %s397 = scalar_select %p394, %s395, %s396
    %p400 = pneg %p394
    %p401 = scmp.eq.s32.totalorder %s23, 1
    %p402 = por %p400, %p401
    %p403 = scmp.ne.s32.totalorder %s395, %s398
    %p404 = scmp.eq.s32.totalorder %s23, 0
    %p405 = por %p403, %p404
    %p406 = scmp.ne.s32.totalorder %s395, %s398
    %p407 = scmp.eq.s32.totalorder %s28, 1
    %p408 = por %p406, %p407
    %p409 = scmp.ne.s32.totalorder %s398, %s399
    %p410 = scmp.eq.s32.totalorder %s28, 0
    %p411 = por %p409, %p410
    %p412 = scmp.ne.s32.totalorder %s398, %s399
    %p413 = scmp.eq.s32.totalorder %s29, 1
    %p414 = por %p412, %p413
    %p416 = scmp.ne.s32.totalorder %s399, %s415
    %p417 = scmp.eq.s32.totalorder %s29, 0
    %p418 = por %p416, %p417
    %p419 = scmp.le.s32.totalorder 1, %s23
    %p420 = scmp.lt.s32.totalorder %s23, 3
    %p421 = pnand %p419, %p420
    %p422 = pneg %p421
    // Predicated region
    $region9: #{crack_bottleneck_forward.1} parent=5 // pred_check
      _
    $region10: #{crack_bottleneck_forward.1} parent=5 // pred_check_branch
      %424 = sbr.rel (%p421) target = $region12
    $region11: #{crack_bottleneck_forward.1} parent=5 // pred_region
      %s425 = ssub.s32 %s23, 1
      // Predicated region
      $region13: #{crack_bottleneck_forward.1} parent=11 // pred_check
        %p426 = pneg %p70
      $region14: #{crack_bottleneck_forward.1} parent=11 // pred_check_branch
        %428 = sbr.rel (%p426) target = $region16
      $region15: #{crack_bottleneck_forward.1} parent=11 // pred_region
        _
      $region16: #{crack_bottleneck_forward.1} parent=11 // pred_fallthru
        _
      // Predicated region
      $region17: #{crack_bottleneck_forward.1} parent=11 // pred_check
        %p429 = pneg %p91
      $region18: #{crack_bottleneck_forward.1} parent=11 // pred_check_branch
        %431 = sbr.rel (%p429) target = $region20
      $region19: #{crack_bottleneck_forward.1} parent=11 // pred_region
        _
      $region20: #{crack_bottleneck_forward.1} parent=11 // pred_fallthru
        _
      // Predicated region
      $region21: #{crack_bottleneck_forward.1} parent=11 // pred_check
        %p432 = pneg %p112
      $region22: #{crack_bottleneck_forward.1} parent=11 // pred_check_branch
        %434 = sbr.rel (%p432) target = $region24
      $region23: #{crack_bottleneck_forward.1} parent=11 // pred_region
        _
      $region24: #{crack_bottleneck_forward.1} parent=11 // pred_fallthru
        _
      // Predicated region
      $region25: #{crack_bottleneck_forward.1} parent=11 // pred_check
        %p435 = pneg %p133
      $region26: #{crack_bottleneck_forward.1} parent=11 // pred_check_branch
        %437 = sbr.rel (%p435) target = $region28
      $region27: #{crack_bottleneck_forward.1} parent=11 // pred_region
        _
      $region28: #{crack_bottleneck_forward.1} parent=11 // pred_fallthru
        _
      // Predicated region
      $region29: #{crack_bottleneck_forward.1} parent=11 // pred_check
        %p438 = pneg %p154
      $region30: #{crack_bottleneck_forward.1} parent=11 // pred_check_branch
        %440 = sbr.rel (%p438) target = $region32
      $region31: #{crack_bottleneck_forward.1} parent=11 // pred_region
        _
      $region32: #{crack_bottleneck_forward.1} parent=11 // pred_fallthru
        _
      // Predicated region
      $region33: #{crack_bottleneck_forward.1} parent=11 // pred_check
        %p441 = pneg %p175
      $region34: #{crack_bottleneck_forward.1} parent=11 // pred_check_branch
        %443 = sbr.rel (%p441) target = $region36
      $region35: #{crack_bottleneck_forward.1} parent=11 // pred_region
        _
      $region36: #{crack_bottleneck_forward.1} parent=11 // pred_fallthru
        _
      // Predicated region
      $region37: #{crack_bottleneck_forward.1} parent=11 // pred_check
        %p444 = pneg %p196
      $region38: #{crack_bottleneck_forward.1} parent=11 // pred_check_branch
        %446 = sbr.rel (%p444) target = $region40
      $region39: #{crack_bottleneck_forward.1} parent=11 // pred_region
        _
      $region40: #{crack_bottleneck_forward.1} parent=11 // pred_fallthru
        _
      // Predicated region
      $region41: #{crack_bottleneck_forward.1} parent=11 // pred_check
        %p447 = pneg %p217
      $region42: #{crack_bottleneck_forward.1} parent=11 // pred_check_branch
        %449 = sbr.rel (%p447) target = $region44
      $region43: #{crack_bottleneck_forward.1} parent=11 // pred_region
        _
      $region44: #{crack_bottleneck_forward.1} parent=11 // pred_fallthru
        _
      // Predicated region
      $region45: #{crack_bottleneck_forward.1} parent=11 // pred_check
        %p450 = pneg %p238
      $region46: #{crack_bottleneck_forward.1} parent=11 // pred_check_branch
        %452 = sbr.rel (%p450) target = $region48
      $region47: #{crack_bottleneck_forward.1} parent=11 // pred_region
        _
      $region48: #{crack_bottleneck_forward.1} parent=11 // pred_fallthru
        _
      // Predicated region
      $region49: #{crack_bottleneck_forward.1} parent=11 // pred_check
        %p453 = pneg %p259
      $region50: #{crack_bottleneck_forward.1} parent=11 // pred_check_branch
        %455 = sbr.rel (%p453) target = $region52
      $region51: #{crack_bottleneck_forward.1} parent=11 // pred_region
        _
      $region52: #{crack_bottleneck_forward.1} parent=11 // pred_fallthru
        _
      // Predicated region
      $region53: #{crack_bottleneck_forward.1} parent=11 // pred_check
        %p456 = pneg %p280
      $region54: #{crack_bottleneck_forward.1} parent=11 // pred_check_branch
        %458 = sbr.rel (%p456) target = $region56
      $region55: #{crack_bottleneck_forward.1} parent=11 // pred_region
        _
      $region56: #{crack_bottleneck_forward.1} parent=11 // pred_fallthru
        _
      // Predicated region
      $region57: #{crack_bottleneck_forward.1} parent=11 // pred_check
        %p459 = pneg %p301
      $region58: #{crack_bottleneck_forward.1} parent=11 // pred_check_branch
        %461 = sbr.rel (%p459) target = $region60
      $region59: #{crack_bottleneck_forward.1} parent=11 // pred_region
        _
      $region60: #{crack_bottleneck_forward.1} parent=11 // pred_fallthru
        _
      // Predicated region
      $region61: #{crack_bottleneck_forward.1} parent=11 // pred_check
        %p462 = pneg %p322
      $region62: #{crack_bottleneck_forward.1} parent=11 // pred_check_branch
        %464 = sbr.rel (%p462) target = $region64
      $region63: #{crack_bottleneck_forward.1} parent=11 // pred_region
        _
      $region64: #{crack_bottleneck_forward.1} parent=11 // pred_fallthru
        _
      // Predicated region
      $region65: #{crack_bottleneck_forward.1} parent=11 // pred_check
        %p465 = pneg %p343
      $region66: #{crack_bottleneck_forward.1} parent=11 // pred_check_branch
        %467 = sbr.rel (%p465) target = $region68
      $region67: #{crack_bottleneck_forward.1} parent=11 // pred_region
        _
      $region68: #{crack_bottleneck_forward.1} parent=11 // pred_fallthru
        _
      // Predicated region
      $region69: #{crack_bottleneck_forward.1} parent=11 // pred_check
        %p468 = pneg %p364
      $region70: #{crack_bottleneck_forward.1} parent=11 // pred_check_branch
        %470 = sbr.rel (%p468) target = $region72
      $region71: #{crack_bottleneck_forward.1} parent=11 // pred_region
        _
      $region72: #{crack_bottleneck_forward.1} parent=11 // pred_fallthru
        _
      // Predicated region
      $region73: #{crack_bottleneck_forward.1} parent=11 // pred_check
        %p471 = pneg %p385
      $region74: #{crack_bottleneck_forward.1} parent=11 // pred_check_branch
        %473 = sbr.rel (%p471) target = $region76
      $region75: #{crack_bottleneck_forward.1} parent=11 // pred_region
        _
      $region76: #{crack_bottleneck_forward.1} parent=11 // pred_fallthru
        _
    $region12: #{crack_bottleneck_forward.1} parent=5 // pred_fallthru
      _
    %p474 = scmp.lt.s32.totalorder %s23, 2
    // Predicated region
    $region77: #{crack_bottleneck_forward.1} parent=5 // pred_check
      %p475 = pneg %p474
    $region78: #{crack_bottleneck_forward.1} parent=5 // pred_check_branch
      %477 = sbr.rel (%p475) target = $region80
    $region79: #{crack_bottleneck_forward.1} parent=5 // pred_region
      // Predicated region
      $region81: #{crack_bottleneck_forward.1} parent=79 // pred_check
        %p478 = pneg %p43
      $region82: #{crack_bottleneck_forward.1} parent=79 // pred_check_branch
        %480 = sbr.rel (%p478) target = $region84
      $region83: #{crack_bottleneck_forward.1} parent=79 // pred_region
        %p481 = scmp.lt.s32.totalorder %s23, 1
        %s482 = scalar_select %p481, %s23, 1
        %s483 = smul.addr %s482, 2
        %s484 = smul.addr %s483, 4
        %s485 = scalar_lea.vmem %s0, %s484
      $region84: #{crack_bottleneck_forward.1} parent=79 // pred_fallthru
        _
    $region80: #{crack_bottleneck_forward.1} parent=5 // pred_fallthru
      _
    %p486 = scmp.le.s32.totalorder 1, %s23
    %p487 = scmp.lt.s32.totalorder %s23, 3
    %p488 = pnand %p486, %p487
    %p489 = pneg %p488
    // Predicated region
    $region85: #{crack_bottleneck_forward.1} parent=5 // pred_check
      _
    $region86: #{crack_bottleneck_forward.1} parent=5 // pred_check_branch
      %491 = sbr.rel (%p488) target = $region88
    $region87: #{crack_bottleneck_forward.1} parent=5 // pred_region
      %s492 = ssub.s32 %s23, 1
      %p493 = scmp.lt.s32.totalorder %s28, 1
      %s494 = scalar_select %p493, %s28, 1
      %s495 = smul.addr %s494, 2
      %s496 = smul.addr %s495, 4
      %s497 = scalar_lea.vmem %s0, %s496
      %p498 = pneg %p49
      %p499 = pneg %p46
      %p500 = pneg %p70
      %p501 = pneg %p67
      %p502 = pneg %p91
      %p503 = pneg %p88
      %p504 = pneg %p112
      %p505 = pneg %p109
      %p506 = pneg %p133
      %p507 = pneg %p130
      %p508 = pneg %p154
      %p509 = pneg %p151
      %p510 = pneg %p175
      %p511 = pneg %p172
      %p512 = pneg %p196
      %p513 = pneg %p193
      %p514 = pneg %p217
      %p515 = pneg %p214
      %p516 = pneg %p238
      %p517 = pneg %p235
      %p518 = pneg %p259
      %p519 = pneg %p256
      %p520 = pneg %p280
      %p521 = pneg %p277
      %p522 = pneg %p301
      %p523 = pneg %p298
      %p524 = pneg %p322
      %p525 = pneg %p319
      %p526 = pneg %p343
      %p527 = pneg %p340
      %p528 = pneg %p364
      %p529 = pneg %p361
      %p530 = pneg %p385
      %p531 = pneg %p382
      %p532 = pneg %p411
      %p533 = pneg %p408
      %p534 = scmp.lt.s32.totalorder %s28, 1
      %s535 = scalar_select %p534, %s28, 1
      %s536 = smul.addr %s535, 2
      %s537 = smul.addr %s536, 8
      %s538 = scalar_lea.vmem %s17, %s537
      %p539 = scmp.lt.s32.totalorder %s28, 1
      %s540 = scalar_select %p539, %s28, 1
      %s541 = smul.addr %s540, 2
      %s542 = smul.addr %s541, 4
      %s543 = scalar_lea.vmem %s0, %s542
      %p544 = scmp.lt.s32.totalorder %s28, 1
      %s545 = scalar_select %p544, %s28, 1
      %s546 = smul.addr %s545, 2
      %s547 = smul.addr %s546, 8
      %s548 = scalar_lea.vmem %s17, %s547
      %v549 = vld [vmem:[%s543] sm:$0xff]
      %v550 = vld [vmem:[%s1] sm:$0x3]
      %v551 = vld [vmem:[%s2] sm:$0x3]
      %v552 = vld [vmem:[%s3] sm:$0xff]
      %v553 = vld [vmem:[%s4] sm:$0xff]
      %555 = vset.pattern.permute.xlu0 0
      %556 = vperm.xlu0 %555, %v553
      %v557 = vpop.permute.xlu0 %556
      %v560 = vcombine.high %v549, %v549
      %vm561 = vcmask 31744
      %v563 = vsel %vm561, %v552, 0
      %vm565 = vcmask 1043456
      %v566 = vsel %vm565, %v549, 0
      %v568 = vsel %vm565, %v560, 0
      %570 = vmatprep.subr.mxu0 0.0
      %571 = vmatpush1.msra.mxu0 0.0
      %572 = vmatprep.subr.mxu0 0.0
      %573 = vmatpush1.msra.mxu0 0.0
      %574 = vmatprep.subr.mxu0 0.0
      %575 = vmatpush1.msra.mxu0 0.0
      %576 = vmatprep.subr.mxu0 0.0
      %577 = vmatpush1.msra.mxu0 0.0
      %578 = vmatprep.subr.mxu0 0.0
      %579 = vmatpush1.msra.mxu0 0.0
      %580 = vmatprep.subr.mxu0 0.0
      %581 = vmatpush1.msra.mxu0 0.0
      %582 = vmatprep.subr.mxu0 0.0
      %583 = vmatpush1.msra.mxu0 0.0
      %584 = vmatprep.subr.mxu0 0.0
      %585 = vmatpush1.msra.mxu0 0.0
      %586 = vmatprep.subr.mxu0 0.0
      %587 = vmatpush1.msra.mxu0 0.0
      %588 = vmatprep.subr.mxu0 0.0
      %589 = vmatpush1.msra.mxu0 0.0
      %590 = vmatprep.subr.mxu0 0.0
      %591 = vmatpush1.msra.mxu0 0.0
      %592 = vmatprep.subr.mxu0 0.0
      %593 = vmatpush1.msra.mxu0 0.0
      %594 = vmatprep.subr.mxu0 0.0
      %595 = vmatpush1.msra.mxu0 0.0
      %596 = vmatprep.subr.mxu0 0.0
      %597 = vmatpush1.msra.mxu0 0.0
      %598 = vmatprep.subr.mxu0 0.0
      %599 = vmatpush1.msra.mxu0 0.0
      %600 = vmatprep.subr.mxu0 %v568
      %601 = vmatpush1.msra.mxu0 %v566
      %602 = vmatprep.subr.mxu0 0.0
      %603 = vmatpush2.msra.mxu0 0.0
      %604 = vmatprep.subr.mxu0 0.0
      %605 = vmatpush2.msra.mxu0 0.0
      %606 = vmatprep.subr.mxu0 0.0
      %607 = vmatpush2.msra.mxu0 0.0
      %608 = vmatprep.subr.mxu0 0.0
      %609 = vmatpush2.msra.mxu0 0.0
      %610 = vmatprep.subr.mxu0 0.0
      %611 = vmatpush2.msra.mxu0 0.0
      %612 = vmatprep.subr.mxu0 0.0
      %613 = vmatpush2.msra.mxu0 0.0
      %614 = vmatprep.subr.mxu0 0.0
      %615 = vmatpush2.msra.mxu0 0.0
      %616 = vmatprep.subr.mxu0 0.0
      %617 = vmatpush2.msra.mxu0 0.0
      %618 = vmatprep.subr.mxu0 0.0
      %619 = vmatpush2.msra.mxu0 0.0
      %620 = vmatprep.subr.mxu0 0.0
      %621 = vmatpush2.msra.mxu0 0.0
      %622 = vmatprep.subr.mxu0 0.0
      %623 = vmatpush2.msra.mxu0 0.0
      %624 = vmatprep.subr.mxu0 0.0
      %625 = vmatpush2.msra.mxu0 0.0
      %626 = vmatprep.subr.mxu0 0.0
      %627 = vmatpush2.msra.mxu0 0.0
      %628 = vmatprep.subr.mxu0 0.0
      %629 = vmatpush2.msra.mxu0 0.0
      %630 = vmatprep.subr.mxu0 0.0
      %631 = vmatpush2.msra.mxu0 0.0
      %632 = vmatprep.subr.mxu0 0.0
      %633 = vmatpush2.msra.mxu0 0.0
      %634 = vmatprep.mubr.f32.mxu0 0.0
      %635 = vmatmul.mubr.f32.gmra.mxu0 %v563
      %v636 = vpop.f32.mrf.mxu0
      %v637 = vadd.f32 %v557, %v636
      %v638 = vpop.f32.mrf.mxu0
      %v639 = vadd.f32 %v557, %v638
      %640 = vdwg.mxu0
      %v641 = vmul.f32 %v637, 0.5
      %v642 = vmul.f32 %v639, 0.5
      %v643 = vmul.f32 %v637, 0.70710677
      %v644 = vmul.f32 %v639, 0.70710677
      %v645 = verf.f32.pop %v643
      %v646 = verf.f32.pop %v644
      %v647 = vadd.f32 %v645, 1.0
      %v648 = vadd.f32 %v646, 1.0
      %v649 = vmul.f32 %v641, %v647
      %v650 = vmul.f32 %v642, %v648
      %v651 = vld [vmem:[%s5] sm:$0xf]
      %v652 = vld [vmem:[%s6] sm:$0xf]
      %654 = vset.pattern.permute.xlu0 0
      %655 = vperm.xlu0 %654, %v652
      %v656 = vpop.permute.xlu0 %655
      %vm658 = vcmask 64512
      %v660 = vsel %vm658, %v651, 0
      %662 = vmatprep.subr.mxu0 0.0
      %663 = vmatpush1.msra.mxu0 0.0
      %664 = vmatprep.subr.mxu0 0.0
      %665 = vmatpush1.msra.mxu0 0.0
      %666 = vmatprep.subr.mxu0 0.0
      %667 = vmatpush1.msra.mxu0 0.0
      %668 = vmatprep.subr.mxu0 0.0
      %669 = vmatpush1.msra.mxu0 0.0
      %670 = vmatprep.subr.mxu0 0.0
      %671 = vmatpush1.msra.mxu0 0.0
      %672 = vmatprep.subr.mxu0 0.0
      %673 = vmatpush1.msra.mxu0 0.0
      %674 = vmatprep.subr.mxu0 0.0
      %675 = vmatpush1.msra.mxu0 0.0
      %676 = vmatprep.subr.mxu0 0.0
      %677 = vmatpush1.msra.mxu0 0.0
      %678 = vmatprep.subr.mxu0 0.0
      %679 = vmatpush1.msra.mxu0 0.0
      %680 = vmatprep.subr.mxu0 0.0
      %681 = vmatpush1.msra.mxu0 0.0
      %682 = vmatprep.subr.mxu0 0.0
      %683 = vmatpush1.msra.mxu0 0.0
      %684 = vmatprep.subr.mxu0 0.0
      %685 = vmatpush1.msra.mxu0 0.0
      %686 = vmatprep.subr.mxu0 0.0
      %687 = vmatpush1.msra.mxu0 0.0
      %688 = vmatprep.subr.mxu0 0.0
      %689 = vmatpush1.msra.mxu0 0.0
      %690 = vmatprep.subr.mxu0 0.0
      %691 = vmatpush1.msra.mxu0 0.0
      %692 = vmatprep.subr.mxu0 %v650
      %693 = vmatpush1.msra.mxu0 %v649
      %694 = vmatprep.subr.mxu0 0.0
      %695 = vmatpush2.msra.mxu0 0.0
      %696 = vmatprep.subr.mxu0 0.0
      %697 = vmatpush2.msra.mxu0 0.0
      %698 = vmatprep.subr.mxu0 0.0
      %699 = vmatpush2.msra.mxu0 0.0
      %700 = vmatprep.subr.mxu0 0.0
      %701 = vmatpush2.msra.mxu0 0.0
      %702 = vmatprep.subr.mxu0 0.0
      %703 = vmatpush2.msra.mxu0 0.0
      %704 = vmatprep.subr.mxu0 0.0
      %705 = vmatpush2.msra.mxu0 0.0
      %706 = vmatprep.subr.mxu0 0.0
      %707 = vmatpush2.msra.mxu0 0.0
      %708 = vmatprep.subr.mxu0 0.0
      %709 = vmatpush2.msra.mxu0 0.0
      %710 = vmatprep.subr.mxu0 0.0
      %711 = vmatpush2.msra.mxu0 0.0
      %712 = vmatprep.subr.mxu0 0.0
      %713 = vmatpush2.msra.mxu0 0.0
      %714 = vmatprep.subr.mxu0 0.0
      %715 = vmatpush2.msra.mxu0 0.0
      %716 = vmatprep.subr.mxu0 0.0
      %717 = vmatpush2.msra.mxu0 0.0
      %718 = vmatprep.subr.mxu0 0.0
      %719 = vmatpush2.msra.mxu0 0.0
      %720 = vmatprep.subr.mxu0 0.0
      %721 = vmatpush2.msra.mxu0 0.0
      %722 = vmatprep.subr.mxu0 0.0
      %723 = vmatpush2.msra.mxu0 0.0
      %724 = vmatprep.subr.mxu0 0.0
      %725 = vmatpush2.msra.mxu0 0.0
      %726 = vmatprep.mubr.f32.mxu0 0.0
      %727 = vmatmul.mubr.f32.gmra.mxu0 %v660
      %v728 = vpop.f32.mrf.mxu0
      %v729 = vadd.f32 %v656, %v728
      %v730 = vpop.f32.mrf.mxu0
      %v731 = vadd.f32 %v656, %v730
      %732 = vdwg.mxu0
      %v733 = vmul.f32 %v729, 0.5
      %v734 = vmul.f32 %v731, 0.5
      %v735 = vmul.f32 %v729, 0.70710677
      %v736 = vmul.f32 %v731, 0.70710677
      %v737 = verf.f32.pop %v735
      %v738 = verf.f32.pop %v736
      %v739 = vadd.f32 %v737, 1.0
      %v740 = vadd.f32 %v738, 1.0
      %v741 = vmul.f32 %v733, %v739
      %v742 = vmul.f32 %v734, %v740
      %v743 = vld [vmem:[%s7] sm:$0xf]
      %v744 = vld [vmem:[%s8] sm:$0xf]
      %746 = vset.pattern.permute.xlu0 0
      %747 = vperm.xlu0 %746, %v744
      %v748 = vpop.permute.xlu0 %747
      %v751 = vsel %vm658, %v743, 0
      %753 = vmatprep.subr.mxu0 0.0
      %754 = vmatpush1.msra.mxu0 0.0
      %755 = vmatprep.subr.mxu0 0.0
      %756 = vmatpush1.msra.mxu0 0.0
      %757 = vmatprep.subr.mxu0 0.0
      %758 = vmatpush1.msra.mxu0 0.0
      %759 = vmatprep.subr.mxu0 0.0
      %760 = vmatpush1.msra.mxu0 0.0
      %761 = vmatprep.subr.mxu0 0.0
      %762 = vmatpush1.msra.mxu0 0.0
      %763 = vmatprep.subr.mxu0 0.0
      %764 = vmatpush1.msra.mxu0 0.0
      %765 = vmatprep.subr.mxu0 0.0
      %766 = vmatpush1.msra.mxu0 0.0
      %767 = vmatprep.subr.mxu0 0.0
      %768 = vmatpush1.msra.mxu0 0.0
      %769 = vmatprep.subr.mxu0 0.0
      %770 = vmatpush1.msra.mxu0 0.0
      %771 = vmatprep.subr.mxu0 0.0
      %772 = vmatpush1.msra.mxu0 0.0
      %773 = vmatprep.subr.mxu0 0.0
      %774 = vmatpush1.msra.mxu0 0.0
      %775 = vmatprep.subr.mxu0 0.0
      %776 = vmatpush1.msra.mxu0 0.0
      %777 = vmatprep.subr.mxu0 0.0
      %778 = vmatpush1.msra.mxu0 0.0
      %779 = vmatprep.subr.mxu0 0.0
      %780 = vmatpush1.msra.mxu0 0.0
      %781 = vmatprep.subr.mxu0 0.0
      %782 = vmatpush1.msra.mxu0 0.0
      %783 = vmatprep.subr.mxu0 %v650
      %784 = vmatpush1.msra.mxu0 %v649
      %785 = vmatprep.subr.mxu0 0.0
      %786 = vmatpush2.msra.mxu0 0.0
      %787 = vmatprep.subr.mxu0 0.0
      %788 = vmatpush2.msra.mxu0 0.0
      %789 = vmatprep.subr.mxu0 0.0
      %790 = vmatpush2.msra.mxu0 0.0
      %791 = vmatprep.subr.mxu0 0.0
      %792 = vmatpush2.msra.mxu0 0.0
      %793 = vmatprep.subr.mxu0 0.0
      %794 = vmatpush2.msra.mxu0 0.0
      %795 = vmatprep.subr.mxu0 0.0
      %796 = vmatpush2.msra.mxu0 0.0
      %797 = vmatprep.subr.mxu0 0.0
      %798 = vmatpush2.msra.mxu0 0.0
      %799 = vmatprep.subr.mxu0 0.0
      %800 = vmatpush2.msra.mxu0 0.0
      %801 = vmatprep.subr.mxu0 0.0
      %802 = vmatpush2.msra.mxu0 0.0
      %803 = vmatprep.subr.mxu0 0.0
      %804 = vmatpush2.msra.mxu0 0.0
      %805 = vmatprep.subr.mxu0 0.0
      %806 = vmatpush2.msra.mxu0 0.0
      %807 = vmatprep.subr.mxu0 0.0
      %808 = vmatpush2.msra.mxu0 0.0
      %809 = vmatprep.subr.mxu0 0.0
      %810 = vmatpush2.msra.mxu0 0.0
      %811 = vmatprep.subr.mxu0 0.0
      %812 = vmatpush2.msra.mxu0 0.0
      %813 = vmatprep.subr.mxu0 0.0
      %814 = vmatpush2.msra.mxu0 0.0
      %815 = vmatprep.subr.mxu0 0.0
      %816 = vmatpush2.msra.mxu0 0.0
      %817 = vmatprep.mubr.f32.mxu0 0.0
      %818 = vmatmul.mubr.f32.gmra.mxu0 %v751
      %v819 = vpop.f32.mrf.mxu0
      %v820 = vadd.f32 %v748, %v819
      %v821 = vpop.f32.mrf.mxu0
      %v822 = vadd.f32 %v748, %v821
      %823 = vdwg.mxu0
      %v824 = vmul.f32 %v820, 0.5
      %v825 = vmul.f32 %v822, 0.5
      %v826 = vmul.f32 %v820, 0.70710677
      %v827 = vmul.f32 %v822, 0.70710677
      %v828 = verf.f32.pop %v826
      %v829 = verf.f32.pop %v827
      %v830 = vadd.f32 %v828, 1.0
      %v831 = vadd.f32 %v829, 1.0
      %v832 = vmul.f32 %v824, %v830
      %v833 = vmul.f32 %v825, %v831
      %834 = vst [vmem:[#allocation2] sm:$0xf] 0.0
      %835 = vst [vmem:[#allocation2 + $0xc] sm:$0xf] 0.0
      %v838 = vcombine.low %v832, %v833
      %840 = vst [vmem:[#allocation2 + $0x4] sm:$0xff] %v838
      %v841 = vld [vmem:[#allocation2] sm:$0xff]
      %v842 = vld [vmem:[#allocation2 + $0x8] sm:$0xf]
      %v844 = vlaneseq
      %v845 = vshrl.u32 %v844, 7
      %v846 = vsub.s32 0, %v845
      %v847 = vrot.slane %v550, %v846
      %v848 = vlaneseq
      %v849 = vshrl.u32 %v848, 7
      %v850 = vsub.s32 1, %v849
      %v851 = vrot.slane %v550, %v850
      %v852 = vcombine.low %v847, %v851
      %853 = vrot.lane.b32.xlu0 %v852, 111
      %v854 = vpop.permute.xlu0 %853
      %v855 = vrot.slane %v854, 4
      %vm856 = vcmask 908288
      %v857 = vsel %vm856, %v855, %v854
      %v860 = vmul.f32 %v841, %v857
      %v861 = vmul.f32 %v842, %v855
      %v862 = vld [vmem:[%s9] sm:$0xf]
      %s863 = scalar_lea.vmem %s9, 4
      %v864 = vld [vmem:[%s863] sm:$0xf]
      %v867 = vcombine.high %v841, %v841
      %868 = vrot.lane.b32.xlu0 %v841, 16
      %v869 = vpop.permute.xlu0 %868
      %870 = vrot.lane.b32.xlu0 %v867, 16
      %v871 = vpop.permute.xlu0 %870
      %872 = vrot.lane.b32.xlu0 %v842, 16
      %v873 = vpop.permute.xlu0 %872
      %vm874 = vcmask 130048
      %v875 = vsel %vm874, %v869, %v871
      %v876 = vsel %vm874, %v871, %v873
      %v878 = vsel %vm561, %v864, 0
      %v880 = vsel %vm565, %v875, 0
      %v882 = vsel %vm565, %v876, 0
      %884 = vmatprep.subr.mxu0 0.0
      %885 = vmatpush1.msra.mxu0 0.0
      %886 = vmatprep.subr.mxu0 0.0
      %887 = vmatpush1.msra.mxu0 0.0
      %888 = vmatprep.subr.mxu0 0.0
      %889 = vmatpush1.msra.mxu0 0.0
      %890 = vmatprep.subr.mxu0 0.0
      %891 = vmatpush1.msra.mxu0 0.0
      %892 = vmatprep.subr.mxu0 0.0
      %893 = vmatpush1.msra.mxu0 0.0
      %894 = vmatprep.subr.mxu0 0.0
      %895 = vmatpush1.msra.mxu0 0.0
      %896 = vmatprep.subr.mxu0 0.0
      %897 = vmatpush1.msra.mxu0 0.0
      %898 = vmatprep.subr.mxu0 0.0
      %899 = vmatpush1.msra.mxu0 0.0
      %900 = vmatprep.subr.mxu0 0.0
      %901 = vmatpush1.msra.mxu0 0.0
      %902 = vmatprep.subr.mxu0 0.0
      %903 = vmatpush1.msra.mxu0 0.0
      %904 = vmatprep.subr.mxu0 0.0
      %905 = vmatpush1.msra.mxu0 0.0
      %906 = vmatprep.subr.mxu0 0.0
      %907 = vmatpush1.msra.mxu0 0.0
      %908 = vmatprep.subr.mxu0 0.0
      %909 = vmatpush1.msra.mxu0 0.0
      %910 = vmatprep.subr.mxu0 0.0
      %911 = vmatpush1.msra.mxu0 0.0
      %912 = vmatprep.subr.mxu0 0.0
      %913 = vmatpush1.msra.mxu0 0.0
      %914 = vmatprep.subr.mxu0 %v882
      %915 = vmatpush1.msra.mxu0 %v880
      %916 = vmatprep.subr.mxu0 0.0
      %917 = vmatpush2.msra.mxu0 0.0
      %918 = vmatprep.subr.mxu0 0.0
      %919 = vmatpush2.msra.mxu0 0.0
      %920 = vmatprep.subr.mxu0 0.0
      %921 = vmatpush2.msra.mxu0 0.0
      %922 = vmatprep.subr.mxu0 0.0
      %923 = vmatpush2.msra.mxu0 0.0
      %924 = vmatprep.subr.mxu0 0.0
      %925 = vmatpush2.msra.mxu0 0.0
      %926 = vmatprep.subr.mxu0 0.0
      %927 = vmatpush2.msra.mxu0 0.0
      %928 = vmatprep.subr.mxu0 0.0
      %929 = vmatpush2.msra.mxu0 0.0
      %930 = vmatprep.subr.mxu0 0.0
      %931 = vmatpush2.msra.mxu0 0.0
      %932 = vmatprep.subr.mxu0 0.0
      %933 = vmatpush2.msra.mxu0 0.0
      %934 = vmatprep.subr.mxu0 0.0
      %935 = vmatpush2.msra.mxu0 0.0
      %936 = vmatprep.subr.mxu0 0.0
      %937 = vmatpush2.msra.mxu0 0.0
      %938 = vmatprep.subr.mxu0 0.0
      %939 = vmatpush2.msra.mxu0 0.0
      %940 = vmatprep.subr.mxu0 0.0
      %941 = vmatpush2.msra.mxu0 0.0
      %942 = vmatprep.subr.mxu0 0.0
      %943 = vmatpush2.msra.mxu0 0.0
      %944 = vmatprep.subr.mxu0 0.0
      %945 = vmatpush2.msra.mxu0 0.0
      %946 = vmatprep.subr.mxu0 0.0
      %947 = vmatpush2.msra.mxu0 0.0
      %948 = vmatprep.mubr.f32.mxu0 0.0
      %949 = vmatmul.mubr.f32.gmra.mxu0 %v878
      %v950 = vpop.f32.mrf.mxu0
      %v951 = vadd.f32 0.0, %v950
      %v952 = vpop.f32.mrf.mxu0
      %v953 = vadd.f32 0.0, %v952
      %954 = vdwg.mxu0
      %v957 = vcombine.high %v860, %v860
      %958 = vrot.lane.b32.xlu0 %v860, 17
      %v959 = vpop.permute.xlu0 %958
      %960 = vrot.lane.b32.xlu0 %v957, 17
      %v961 = vpop.permute.xlu0 %960
      %962 = vrot.lane.b32.xlu0 %v861, 17
      %v963 = vpop.permute.xlu0 %962
      %vm964 = vcmask 138240
      %v965 = vsel %vm964, %v959, %v961
      %v966 = vsel %vm964, %v961, %v963
      %v968 = vsel %vm561, %v862, 0
      %v970 = vsel %vm565, %v965, 0
      %v972 = vsel %vm565, %v966, 0
      %974 = vmatprep.subr.mxu0 0.0
      %975 = vmatpush1.msra.mxu0 0.0
      %976 = vmatprep.subr.mxu0 0.0
      %977 = vmatpush1.msra.mxu0 0.0
      %978 = vmatprep.subr.mxu0 0.0
      %979 = vmatpush1.msra.mxu0 0.0
      %980 = vmatprep.subr.mxu0 0.0
      %981 = vmatpush1.msra.mxu0 0.0
      %982 = vmatprep.subr.mxu0 0.0
      %983 = vmatpush1.msra.mxu0 0.0
      %984 = vmatprep.subr.mxu0 0.0
      %985 = vmatpush1.msra.mxu0 0.0
      %986 = vmatprep.subr.mxu0 0.0
      %987 = vmatpush1.msra.mxu0 0.0
      %988 = vmatprep.subr.mxu0 0.0
      %989 = vmatpush1.msra.mxu0 0.0
      %990 = vmatprep.subr.mxu0 0.0
      %991 = vmatpush1.msra.mxu0 0.0
      %992 = vmatprep.subr.mxu0 0.0
      %993 = vmatpush1.msra.mxu0 0.0
      %994 = vmatprep.subr.mxu0 0.0
      %995 = vmatpush1.msra.mxu0 0.0
      %996 = vmatprep.subr.mxu0 0.0
      %997 = vmatpush1.msra.mxu0 0.0
      %998 = vmatprep.subr.mxu0 0.0
      %999 = vmatpush1.msra.mxu0 0.0
      %1000 = vmatprep.subr.mxu0 0.0
      %1001 = vmatpush1.msra.mxu0 0.0
      %1002 = vmatprep.subr.mxu0 0.0
      %1003 = vmatpush1.msra.mxu0 0.0
      %1004 = vmatprep.subr.mxu0 %v972
      %1005 = vmatpush1.msra.mxu0 %v970
      %1006 = vmatprep.subr.mxu0 0.0
      %1007 = vmatpush2.msra.mxu0 0.0
      %1008 = vmatprep.subr.mxu0 0.0
      %1009 = vmatpush2.msra.mxu0 0.0
      %1010 = vmatprep.subr.mxu0 0.0
      %1011 = vmatpush2.msra.mxu0 0.0
      %1012 = vmatprep.subr.mxu0 0.0
      %1013 = vmatpush2.msra.mxu0 0.0
      %1014 = vmatprep.subr.mxu0 0.0
      %1015 = vmatpush2.msra.mxu0 0.0
      %1016 = vmatprep.subr.mxu0 0.0
      %1017 = vmatpush2.msra.mxu0 0.0
      %1018 = vmatprep.subr.mxu0 0.0
      %1019 = vmatpush2.msra.mxu0 0.0
      %1020 = vmatprep.subr.mxu0 0.0
      %1021 = vmatpush2.msra.mxu0 0.0
      %1022 = vmatprep.subr.mxu0 0.0
      %1023 = vmatpush2.msra.mxu0 0.0
      %1024 = vmatprep.subr.mxu0 0.0
      %1025 = vmatpush2.msra.mxu0 0.0
      %1026 = vmatprep.subr.mxu0 0.0
      %1027 = vmatpush2.msra.mxu0 0.0
      %1028 = vmatprep.subr.mxu0 0.0
      %1029 = vmatpush2.msra.mxu0 0.0
      %1030 = vmatprep.subr.mxu0 0.0
      %1031 = vmatpush2.msra.mxu0 0.0
      %1032 = vmatprep.subr.mxu0 0.0
      %1033 = vmatpush2.msra.mxu0 0.0
      %1034 = vmatprep.subr.mxu0 0.0
      %1035 = vmatpush2.msra.mxu0 0.0
      %1036 = vmatprep.subr.mxu0 0.0
      %1037 = vmatpush2.msra.mxu0 0.0
      %1038 = vmatprep.mubr.f32.mxu0 0.0
      %1039 = vmatmul.mubr.f32.gmra.mxu0 %v968
      %v1040 = vpop.f32.mrf.mxu0
      %v1041 = vadd.f32 %v951, %v1040
      %v1042 = vpop.f32.mrf.mxu0
      %v1043 = vadd.f32 %v953, %v1042
      %1044 = vdwg.mxu0
      %v1045 = vld [vmem:[#allocation2] sm:$0xff]
      %v1046 = vld [vmem:[#allocation2 + $0x8] sm:$0xf]
      %v1048 = vlaneseq
      %v1049 = vshrl.u32 %v1048, 7
      %v1050 = vsub.s32 0, %v1049
      %v1051 = vrot.slane %v551, %v1050
      %v1052 = vlaneseq
      %v1053 = vshrl.u32 %v1052, 7
      %v1054 = vsub.s32 1, %v1053
      %v1055 = vrot.slane %v551, %v1054
      %v1056 = vcombine.low %v1051, %v1055
      %1057 = vrot.lane.b32.xlu0 %v1056, 113
      %v1058 = vpop.permute.xlu0 %1057
      %v1059 = vrot.slane %v1058, 4
      %vm1060 = vcmask 924672
      %v1061 = vsel %vm1060, %v1059, %v1058
      %v1064 = vmul.f32 %v1045, %v1061
      %v1065 = vmul.f32 %v1046, %v1059
      %s1066 = scalar_lea.vmem %s9, 8
      %v1067 = vld [vmem:[%s1066] sm:$0xf]
      %v1070 = vcombine.high %v1064, %v1064
      %1071 = vrot.lane.b32.xlu0 %v1064, 15
      %v1072 = vpop.permute.xlu0 %1071
      %1073 = vrot.lane.b32.xlu0 %v1070, 15
      %v1074 = vpop.permute.xlu0 %1073
      %1075 = vrot.lane.b32.xlu0 %v1065, 15
      %v1076 = vpop.permute.xlu0 %1075
      %vm1077 = vcmask 121856
      %v1078 = vsel %vm1077, %v1072, %v1074
      %v1079 = vsel %vm1077, %v1074, %v1076
      %v1081 = vsel %vm561, %v1067, 0
      %v1083 = vsel %vm565, %v1078, 0
      %v1085 = vsel %vm565, %v1079, 0
      %1087 = vmatprep.subr.mxu0 0.0
      %1088 = vmatpush1.msra.mxu0 0.0
      %1089 = vmatprep.subr.mxu0 0.0
      %1090 = vmatpush1.msra.mxu0 0.0
      %1091 = vmatprep.subr.mxu0 0.0
      %1092 = vmatpush1.msra.mxu0 0.0
      %1093 = vmatprep.subr.mxu0 0.0
      %1094 = vmatpush1.msra.mxu0 0.0
      %1095 = vmatprep.subr.mxu0 0.0
      %1096 = vmatpush1.msra.mxu0 0.0
      %1097 = vmatprep.subr.mxu0 0.0
      %1098 = vmatpush1.msra.mxu0 0.0
      %1099 = vmatprep.subr.mxu0 0.0
      %1100 = vmatpush1.msra.mxu0 0.0
      %1101 = vmatprep.subr.mxu0 0.0
      %1102 = vmatpush1.msra.mxu0 0.0
      %1103 = vmatprep.subr.mxu0 0.0
      %1104 = vmatpush1.msra.mxu0 0.0
      %1105 = vmatprep.subr.mxu0 0.0
      %1106 = vmatpush1.msra.mxu0 0.0
      %1107 = vmatprep.subr.mxu0 0.0
      %1108 = vmatpush1.msra.mxu0 0.0
      %1109 = vmatprep.subr.mxu0 0.0
      %1110 = vmatpush1.msra.mxu0 0.0
      %1111 = vmatprep.subr.mxu0 0.0
      %1112 = vmatpush1.msra.mxu0 0.0
      %1113 = vmatprep.subr.mxu0 0.0
      %1114 = vmatpush1.msra.mxu0 0.0
      %1115 = vmatprep.subr.mxu0 0.0
      %1116 = vmatpush1.msra.mxu0 0.0
      %1117 = vmatprep.subr.mxu0 %v1085
      %1118 = vmatpush1.msra.mxu0 %v1083
      %1119 = vmatprep.subr.mxu0 0.0
      %1120 = vmatpush2.msra.mxu0 0.0
      %1121 = vmatprep.subr.mxu0 0.0
      %1122 = vmatpush2.msra.mxu0 0.0
      %1123 = vmatprep.subr.mxu0 0.0
      %1124 = vmatpush2.msra.mxu0 0.0
      %1125 = vmatprep.subr.mxu0 0.0
      %1126 = vmatpush2.msra.mxu0 0.0
      %1127 = vmatprep.subr.mxu0 0.0
      %1128 = vmatpush2.msra.mxu0 0.0
      %1129 = vmatprep.subr.mxu0 0.0
      %1130 = vmatpush2.msra.mxu0 0.0
      %1131 = vmatprep.subr.mxu0 0.0
      %1132 = vmatpush2.msra.mxu0 0.0
      %1133 = vmatprep.subr.mxu0 0.0
      %1134 = vmatpush2.msra.mxu0 0.0
      %1135 = vmatprep.subr.mxu0 0.0
      %1136 = vmatpush2.msra.mxu0 0.0
      %1137 = vmatprep.subr.mxu0 0.0
      %1138 = vmatpush2.msra.mxu0 0.0
      %1139 = vmatprep.subr.mxu0 0.0
      %1140 = vmatpush2.msra.mxu0 0.0
      %1141 = vmatprep.subr.mxu0 0.0
      %1142 = vmatpush2.msra.mxu0 0.0
      %1143 = vmatprep.subr.mxu0 0.0
      %1144 = vmatpush2.msra.mxu0 0.0
      %1145 = vmatprep.subr.mxu0 0.0
      %1146 = vmatpush2.msra.mxu0 0.0
      %1147 = vmatprep.subr.mxu0 0.0
      %1148 = vmatpush2.msra.mxu0 0.0
      %1149 = vmatprep.subr.mxu0 0.0
      %1150 = vmatpush2.msra.mxu0 0.0
      %1151 = vmatprep.mubr.f32.mxu0 0.0
      %1152 = vmatmul.mubr.f32.gmra.mxu0 %v1081
      %v1153 = vpop.f32.mrf.mxu0
      %v1154 = vadd.f32 0.0, %v1153
      %v1155 = vpop.f32.mrf.mxu0
      %v1156 = vadd.f32 0.0, %v1155
      %1157 = vdwg.mxu0
      %v1158 = vadd.f32 %v1041, %v1154
      %v1159 = vadd.f32 %v1043, %v1156
      %v1160 = vld [vmem:[#allocation2] sm:$0xff]
      %v1161 = vld [vmem:[#allocation2 + $0x8] sm:$0xf]
      %1162 = vrot.lane.b32.xlu0 %v852, 127
      %v1163 = vpop.permute.xlu0 %1162
      %v1164 = vrot.slane %v1163, 4
      %vm1165 = vcmask 1039360
      %v1166 = vsel %vm1165, %v1164, %v1163
      %v1169 = vmul.f32 %v1160, %v1166
      %v1170 = vmul.f32 %v1161, %v1164
      %s1171 = scalar_lea.vmem %s9, 12
      %v1172 = vld [vmem:[%s1171] sm:$0xf]
      %v1175 = vcombine.high %v1169, %v1169
      %1176 = vrot.lane.b32.xlu0 %v1169, 1
      %v1177 = vpop.permute.xlu0 %1176
      %1178 = vrot.lane.b32.xlu0 %v1175, 1
      %v1179 = vpop.permute.xlu0 %1178
      %1180 = vrot.lane.b32.xlu0 %v1170, 1
      %v1181 = vpop.permute.xlu0 %1180
      %vm1182 = vcmask 7168
      %v1183 = vsel %vm1182, %v1177, %v1179
      %v1184 = vsel %vm1182, %v1179, %v1181
      %v1186 = vsel %vm561, %v1172, 0
      %v1188 = vsel %vm565, %v1183, 0
      %v1190 = vsel %vm565, %v1184, 0
      %1192 = vmatprep.subr.mxu0 0.0
      %1193 = vmatpush1.msra.mxu0 0.0
      %1194 = vmatprep.subr.mxu0 0.0
      %1195 = vmatpush1.msra.mxu0 0.0
      %1196 = vmatprep.subr.mxu0 0.0
      %1197 = vmatpush1.msra.mxu0 0.0
      %1198 = vmatprep.subr.mxu0 0.0
      %1199 = vmatpush1.msra.mxu0 0.0
      %1200 = vmatprep.subr.mxu0 0.0
      %1201 = vmatpush1.msra.mxu0 0.0
      %1202 = vmatprep.subr.mxu0 0.0
      %1203 = vmatpush1.msra.mxu0 0.0
      %1204 = vmatprep.subr.mxu0 0.0
      %1205 = vmatpush1.msra.mxu0 0.0
      %1206 = vmatprep.subr.mxu0 0.0
      %1207 = vmatpush1.msra.mxu0 0.0
      %1208 = vmatprep.subr.mxu0 0.0
      %1209 = vmatpush1.msra.mxu0 0.0
      %1210 = vmatprep.subr.mxu0 0.0
      %1211 = vmatpush1.msra.mxu0 0.0
      %1212 = vmatprep.subr.mxu0 0.0
      %1213 = vmatpush1.msra.mxu0 0.0
      %1214 = vmatprep.subr.mxu0 0.0
      %1215 = vmatpush1.msra.mxu0 0.0
      %1216 = vmatprep.subr.mxu0 0.0
      %1217 = vmatpush1.msra.mxu0 0.0
      %1218 = vmatprep.subr.mxu0 0.0
      %1219 = vmatpush1.msra.mxu0 0.0
      %1220 = vmatprep.subr.mxu0 0.0
      %1221 = vmatpush1.msra.mxu0 0.0
      %1222 = vmatprep.subr.mxu0 %v1190
      %1223 = vmatpush1.msra.mxu0 %v1188
      %1224 = vmatprep.subr.mxu0 0.0
      %1225 = vmatpush2.msra.mxu0 0.0
      %1226 = vmatprep.subr.mxu0 0.0
      %1227 = vmatpush2.msra.mxu0 0.0
      %1228 = vmatprep.subr.mxu0 0.0
      %1229 = vmatpush2.msra.mxu0 0.0
      %1230 = vmatprep.subr.mxu0 0.0
      %1231 = vmatpush2.msra.mxu0 0.0
      %1232 = vmatprep.subr.mxu0 0.0
      %1233 = vmatpush2.msra.mxu0 0.0
      %1234 = vmatprep.subr.mxu0 0.0
      %1235 = vmatpush2.msra.mxu0 0.0
      %1236 = vmatprep.subr.mxu0 0.0
      %1237 = vmatpush2.msra.mxu0 0.0
      %1238 = vmatprep.subr.mxu0 0.0
      %1239 = vmatpush2.msra.mxu0 0.0
      %1240 = vmatprep.subr.mxu0 0.0
      %1241 = vmatpush2.msra.mxu0 0.0
      %1242 = vmatprep.subr.mxu0 0.0
      %1243 = vmatpush2.msra.mxu0 0.0
      %1244 = vmatprep.subr.mxu0 0.0
      %1245 = vmatpush2.msra.mxu0 0.0
      %1246 = vmatprep.subr.mxu0 0.0
      %1247 = vmatpush2.msra.mxu0 0.0
      %1248 = vmatprep.subr.mxu0 0.0
      %1249 = vmatpush2.msra.mxu0 0.0
      %1250 = vmatprep.subr.mxu0 0.0
      %1251 = vmatpush2.msra.mxu0 0.0
      %1252 = vmatprep.subr.mxu0 0.0
      %1253 = vmatpush2.msra.mxu0 0.0
      %1254 = vmatprep.subr.mxu0 0.0
      %1255 = vmatpush2.msra.mxu0 0.0
      %1256 = vmatprep.mubr.f32.mxu0 0.0
      %1257 = vmatmul.mubr.f32.gmra.mxu0 %v1186
      %v1258 = vpop.f32.mrf.mxu0
      %v1259 = vadd.f32 0.0, %v1258
      %v1260 = vpop.f32.mrf.mxu0
      %v1261 = vadd.f32 0.0, %v1260
      %1262 = vdwg.mxu0
      %v1263 = vadd.f32 %v1158, %v1259
      %v1264 = vadd.f32 %v1159, %v1261
      %v1265 = vld [vmem:[#allocation2 + $0x4] sm:$0xff]
      %s1266 = scalar_lea.vmem %s9, 16
      %v1267 = vld [vmem:[%s1266] sm:$0xf]
      %v1269 = vcombine.high %v1265, %v1265
      %v1271 = vsel %vm561, %v1267, 0
      %v1273 = vsel %vm565, %v1265, 0
      %v1275 = vsel %vm565, %v1269, 0
      %1277 = vmatprep.subr.mxu0 0.0
      %1278 = vmatpush1.msra.mxu0 0.0
      %1279 = vmatprep.subr.mxu0 0.0
      %1280 = vmatpush1.msra.mxu0 0.0
      %1281 = vmatprep.subr.mxu0 0.0
      %1282 = vmatpush1.msra.mxu0 0.0
      %1283 = vmatprep.subr.mxu0 0.0
      %1284 = vmatpush1.msra.mxu0 0.0
      %1285 = vmatprep.subr.mxu0 0.0
      %1286 = vmatpush1.msra.mxu0 0.0
      %1287 = vmatprep.subr.mxu0 0.0
      %1288 = vmatpush1.msra.mxu0 0.0
      %1289 = vmatprep.subr.mxu0 0.0
      %1290 = vmatpush1.msra.mxu0 0.0
      %1291 = vmatprep.subr.mxu0 0.0
      %1292 = vmatpush1.msra.mxu0 0.0
      %1293 = vmatprep.subr.mxu0 0.0
      %1294 = vmatpush1.msra.mxu0 0.0
      %1295 = vmatprep.subr.mxu0 0.0
      %1296 = vmatpush1.msra.mxu0 0.0
      %1297 = vmatprep.subr.mxu0 0.0
      %1298 = vmatpush1.msra.mxu0 0.0
      %1299 = vmatprep.subr.mxu0 0.0
      %1300 = vmatpush1.msra.mxu0 0.0
      %1301 = vmatprep.subr.mxu0 0.0
      %1302 = vmatpush1.msra.mxu0 0.0
      %1303 = vmatprep.subr.mxu0 0.0
      %1304 = vmatpush1.msra.mxu0 0.0
      %1305 = vmatprep.subr.mxu0 0.0
      %1306 = vmatpush1.msra.mxu0 0.0
      %1307 = vmatprep.subr.mxu0 %v1275
      %1308 = vmatpush1.msra.mxu0 %v1273
      %1309 = vmatprep.subr.mxu0 0.0
      %1310 = vmatpush2.msra.mxu0 0.0
      %1311 = vmatprep.subr.mxu0 0.0
      %1312 = vmatpush2.msra.mxu0 0.0
      %1313 = vmatprep.subr.mxu0 0.0
      %1314 = vmatpush2.msra.mxu0 0.0
      %1315 = vmatprep.subr.mxu0 0.0
      %1316 = vmatpush2.msra.mxu0 0.0
      %1317 = vmatprep.subr.mxu0 0.0
      %1318 = vmatpush2.msra.mxu0 0.0
      %1319 = vmatprep.subr.mxu0 0.0
      %1320 = vmatpush2.msra.mxu0 0.0
      %1321 = vmatprep.subr.mxu0 0.0
      %1322 = vmatpush2.msra.mxu0 0.0
      %1323 = vmatprep.subr.mxu0 0.0
      %1324 = vmatpush2.msra.mxu0 0.0
      %1325 = vmatprep.subr.mxu0 0.0
      %1326 = vmatpush2.msra.mxu0 0.0
      %1327 = vmatprep.subr.mxu0 0.0
      %1328 = vmatpush2.msra.mxu0 0.0
      %1329 = vmatprep.subr.mxu0 0.0
      %1330 = vmatpush2.msra.mxu0 0.0
      %1331 = vmatprep.subr.mxu0 0.0
      %1332 = vmatpush2.msra.mxu0 0.0
      %1333 = vmatprep.subr.mxu0 0.0
      %1334 = vmatpush2.msra.mxu0 0.0
      %1335 = vmatprep.subr.mxu0 0.0
      %1336 = vmatpush2.msra.mxu0 0.0
      %1337 = vmatprep.subr.mxu0 0.0
      %1338 = vmatpush2.msra.mxu0 0.0
      %1339 = vmatprep.subr.mxu0 0.0
      %1340 = vmatpush2.msra.mxu0 0.0
      %1341 = vmatprep.mubr.f32.mxu0 0.0
      %1342 = vmatmul.mubr.f32.gmra.mxu0 %v1271
      %v1343 = vpop.f32.mrf.mxu0
      %v1344 = vadd.f32 0.0, %v1343
      %v1345 = vpop.f32.mrf.mxu0
      %v1346 = vadd.f32 0.0, %v1345
      %1347 = vdwg.mxu0
      %v1348 = vadd.f32 %v1263, %v1344
      %v1349 = vadd.f32 %v1264, %v1346
      %v1350 = vld [vmem:[#allocation2 + $0x4] sm:$0xff]
      %v1351 = vld [vmem:[#allocation2 + $0xc] sm:$0xf]
      %1352 = vrot.lane.b32.xlu0 %v1056, 1
      %v1353 = vpop.permute.xlu0 %1352
      %v1354 = vrot.slane %v1353, 4
      %v1355 = vsel %vm1182, %v1354, %v1353
      %v1358 = vmul.f32 %v1350, %v1355
      %v1359 = vmul.f32 %v1351, %v1354
      %s1360 = scalar_lea.vmem %s9, 20
      %v1361 = vld [vmem:[%s1360] sm:$0xf]
      %v1364 = vcombine.high %v1358, %v1358
      %1365 = vrot.lane.b32.xlu0 %v1358, 127
      %v1366 = vpop.permute.xlu0 %1365
      %1367 = vrot.lane.b32.xlu0 %v1364, 127
      %v1368 = vpop.permute.xlu0 %1367
      %1369 = vrot.lane.b32.xlu0 %v1359, 127
      %v1370 = vpop.permute.xlu0 %1369
      %v1371 = vsel %vm1165, %v1366, %v1368
      %v1372 = vsel %vm1165, %v1368, %v1370
      %v1374 = vsel %vm561, %v1361, 0
      %v1376 = vsel %vm565, %v1371, 0
      %v1378 = vsel %vm565, %v1372, 0
      %1380 = vmatprep.subr.mxu0 0.0
      %1381 = vmatpush1.msra.mxu0 0.0
      %1382 = vmatprep.subr.mxu0 0.0
      %1383 = vmatpush1.msra.mxu0 0.0
      %1384 = vmatprep.subr.mxu0 0.0
      %1385 = vmatpush1.msra.mxu0 0.0
      %1386 = vmatprep.subr.mxu0 0.0
      %1387 = vmatpush1.msra.mxu0 0.0
      %1388 = vmatprep.subr.mxu0 0.0
      %1389 = vmatpush1.msra.mxu0 0.0
      %1390 = vmatprep.subr.mxu0 0.0
      %1391 = vmatpush1.msra.mxu0 0.0
      %1392 = vmatprep.subr.mxu0 0.0
      %1393 = vmatpush1.msra.mxu0 0.0
      %1394 = vmatprep.subr.mxu0 0.0
      %1395 = vmatpush1.msra.mxu0 0.0
      %1396 = vmatprep.subr.mxu0 0.0
      %1397 = vmatpush1.msra.mxu0 0.0
      %1398 = vmatprep.subr.mxu0 0.0
      %1399 = vmatpush1.msra.mxu0 0.0
      %1400 = vmatprep.subr.mxu0 0.0
      %1401 = vmatpush1.msra.mxu0 0.0
      %1402 = vmatprep.subr.mxu0 0.0
      %1403 = vmatpush1.msra.mxu0 0.0
      %1404 = vmatprep.subr.mxu0 0.0
      %1405 = vmatpush1.msra.mxu0 0.0
      %1406 = vmatprep.subr.mxu0 0.0
      %1407 = vmatpush1.msra.mxu0 0.0
      %1408 = vmatprep.subr.mxu0 0.0
      %1409 = vmatpush1.msra.mxu0 0.0
      %1410 = vmatprep.subr.mxu0 %v1378
      %1411 = vmatpush1.msra.mxu0 %v1376
      %1412 = vmatprep.subr.mxu0 0.0
      %1413 = vmatpush2.msra.mxu0 0.0
      %1414 = vmatprep.subr.mxu0 0.0
      %1415 = vmatpush2.msra.mxu0 0.0
      %1416 = vmatprep.subr.mxu0 0.0
      %1417 = vmatpush2.msra.mxu0 0.0
      %1418 = vmatprep.subr.mxu0 0.0
      %1419 = vmatpush2.msra.mxu0 0.0
      %1420 = vmatprep.subr.mxu0 0.0
      %1421 = vmatpush2.msra.mxu0 0.0
      %1422 = vmatprep.subr.mxu0 0.0
      %1423 = vmatpush2.msra.mxu0 0.0
      %1424 = vmatprep.subr.mxu0 0.0
      %1425 = vmatpush2.msra.mxu0 0.0
      %1426 = vmatprep.subr.mxu0 0.0
      %1427 = vmatpush2.msra.mxu0 0.0
      %1428 = vmatprep.subr.mxu0 0.0
      %1429 = vmatpush2.msra.mxu0 0.0
      %1430 = vmatprep.subr.mxu0 0.0
      %1431 = vmatpush2.msra.mxu0 0.0
      %1432 = vmatprep.subr.mxu0 0.0
      %1433 = vmatpush2.msra.mxu0 0.0
      %1434 = vmatprep.subr.mxu0 0.0
      %1435 = vmatpush2.msra.mxu0 0.0
      %1436 = vmatprep.subr.mxu0 0.0
      %1437 = vmatpush2.msra.mxu0 0.0
      %1438 = vmatprep.subr.mxu0 0.0
      %1439 = vmatpush2.msra.mxu0 0.0
      %1440 = vmatprep.subr.mxu0 0.0
      %1441 = vmatpush2.msra.mxu0 0.0
      %1442 = vmatprep.subr.mxu0 0.0
      %1443 = vmatpush2.msra.mxu0 0.0
      %1444 = vmatprep.mubr.f32.mxu0 0.0
      %1445 = vmatmul.mubr.f32.gmra.mxu0 %v1374
      %v1446 = vpop.f32.mrf.mxu0
      %v1447 = vadd.f32 0.0, %v1446
      %v1448 = vpop.f32.mrf.mxu0
      %v1449 = vadd.f32 0.0, %v1448
      %1450 = vdwg.mxu0
      %v1451 = vadd.f32 %v1348, %v1447
      %v1452 = vadd.f32 %v1349, %v1449
      %v1453 = vld [vmem:[#allocation2 + $0x4] sm:$0xff]
      %v1454 = vld [vmem:[#allocation2 + $0xc] sm:$0xf]
      %1455 = vrot.lane.b32.xlu0 %v852, 15
      %v1456 = vpop.permute.xlu0 %1455
      %v1457 = vrot.slane %v1456, 4
      %v1458 = vsel %vm1077, %v1457, %v1456
      %v1461 = vmul.f32 %v1453, %v1458
      %v1462 = vmul.f32 %v1454, %v1457
      %s1463 = scalar_lea.vmem %s9, 24
      %v1464 = vld [vmem:[%s1463] sm:$0xf]
      %v1467 = vcombine.high %v1461, %v1461
      %1468 = vrot.lane.b32.xlu0 %v1461, 113
      %v1469 = vpop.permute.xlu0 %1468
      %1470 = vrot.lane.b32.xlu0 %v1467, 113
      %v1471 = vpop.permute.xlu0 %1470
      %1472 = vrot.lane.b32.xlu0 %v1462, 113
      %v1473 = vpop.permute.xlu0 %1472
      %v1474 = vsel %vm1060, %v1469, %v1471
      %v1475 = vsel %vm1060, %v1471, %v1473
      %v1477 = vsel %vm561, %v1464, 0
      %v1479 = vsel %vm565, %v1474, 0
      %v1481 = vsel %vm565, %v1475, 0
      %1483 = vmatprep.subr.mxu0 0.0
      %1484 = vmatpush1.msra.mxu0 0.0
      %1485 = vmatprep.subr.mxu0 0.0
      %1486 = vmatpush1.msra.mxu0 0.0
      %1487 = vmatprep.subr.mxu0 0.0
      %1488 = vmatpush1.msra.mxu0 0.0
      %1489 = vmatprep.subr.mxu0 0.0
      %1490 = vmatpush1.msra.mxu0 0.0
      %1491 = vmatprep.subr.mxu0 0.0
      %1492 = vmatpush1.msra.mxu0 0.0
      %1493 = vmatprep.subr.mxu0 0.0
      %1494 = vmatpush1.msra.mxu0 0.0
      %1495 = vmatprep.subr.mxu0 0.0
      %1496 = vmatpush1.msra.mxu0 0.0
      %1497 = vmatprep.subr.mxu0 0.0
      %1498 = vmatpush1.msra.mxu0 0.0
      %1499 = vmatprep.subr.mxu0 0.0
      %1500 = vmatpush1.msra.mxu0 0.0
      %1501 = vmatprep.subr.mxu0 0.0
      %1502 = vmatpush1.msra.mxu0 0.0
      %1503 = vmatprep.subr.mxu0 0.0
      %1504 = vmatpush1.msra.mxu0 0.0
      %1505 = vmatprep.subr.mxu0 0.0
      %1506 = vmatpush1.msra.mxu0 0.0
      %1507 = vmatprep.subr.mxu0 0.0
      %1508 = vmatpush1.msra.mxu0 0.0
      %1509 = vmatprep.subr.mxu0 0.0
      %1510 = vmatpush1.msra.mxu0 0.0
      %1511 = vmatprep.subr.mxu0 0.0
      %1512 = vmatpush1.msra.mxu0 0.0
      %1513 = vmatprep.subr.mxu0 %v1481
      %1514 = vmatpush1.msra.mxu0 %v1479
      %1515 = vmatprep.subr.mxu0 0.0
      %1516 = vmatpush2.msra.mxu0 0.0
      %1517 = vmatprep.subr.mxu0 0.0
      %1518 = vmatpush2.msra.mxu0 0.0
      %1519 = vmatprep.subr.mxu0 0.0
      %1520 = vmatpush2.msra.mxu0 0.0
      %1521 = vmatprep.subr.mxu0 0.0
      %1522 = vmatpush2.msra.mxu0 0.0
      %1523 = vmatprep.subr.mxu0 0.0
      %1524 = vmatpush2.msra.mxu0 0.0
      %1525 = vmatprep.subr.mxu0 0.0
      %1526 = vmatpush2.msra.mxu0 0.0
      %1527 = vmatprep.subr.mxu0 0.0
      %1528 = vmatpush2.msra.mxu0 0.0
      %1529 = vmatprep.subr.mxu0 0.0
      %1530 = vmatpush2.msra.mxu0 0.0
      %1531 = vmatprep.subr.mxu0 0.0
      %1532 = vmatpush2.msra.mxu0 0.0
      %1533 = vmatprep.subr.mxu0 0.0
      %1534 = vmatpush2.msra.mxu0 0.0
      %1535 = vmatprep.subr.mxu0 0.0
      %1536 = vmatpush2.msra.mxu0 0.0
      %1537 = vmatprep.subr.mxu0 0.0
      %1538 = vmatpush2.msra.mxu0 0.0
      %1539 = vmatprep.subr.mxu0 0.0
      %1540 = vmatpush2.msra.mxu0 0.0
      %1541 = vmatprep.subr.mxu0 0.0
      %1542 = vmatpush2.msra.mxu0 0.0
      %1543 = vmatprep.subr.mxu0 0.0
      %1544 = vmatpush2.msra.mxu0 0.0
      %1545 = vmatprep.subr.mxu0 0.0
      %1546 = vmatpush2.msra.mxu0 0.0
      %1547 = vmatprep.mubr.f32.mxu0 0.0
      %1548 = vmatmul.mubr.f32.gmra.mxu0 %v1477
      %v1549 = vpop.f32.mrf.mxu0
      %v1550 = vadd.f32 0.0, %v1549
      %v1551 = vpop.f32.mrf.mxu0
      %v1552 = vadd.f32 0.0, %v1551
      %1553 = vdwg.mxu0
      %v1554 = vadd.f32 %v1451, %v1550
      %v1555 = vadd.f32 %v1452, %v1552
      %v1556 = vld [vmem:[#allocation2 + $0x4] sm:$0xff]
      %v1557 = vld [vmem:[#allocation2 + $0xc] sm:$0xf]
      %s1558 = scalar_lea.vmem %s9, 28
      %v1559 = vld [vmem:[%s1558] sm:$0xf]
      %v1562 = vcombine.high %v1556, %v1556
      %1563 = vrot.lane.b32.xlu0 %v1556, 112
      %v1564 = vpop.permute.xlu0 %1563
      %1565 = vrot.lane.b32.xlu0 %v1562, 112
      %v1566 = vpop.permute.xlu0 %1565
      %1567 = vrot.lane.b32.xlu0 %v1557, 112
      %v1568 = vpop.permute.xlu0 %1567
      %vm1569 = vcmask 916480
      %v1570 = vsel %vm1569, %v1564, %v1566
      %v1571 = vsel %vm1569, %v1566, %v1568
      %v1573 = vsel %vm561, %v1559, 0
      %v1575 = vsel %vm565, %v1570, 0
      %v1577 = vsel %vm565, %v1571, 0
      %1579 = vmatprep.subr.mxu0 0.0
      %1580 = vmatpush1.msra.mxu0 0.0
      %1581 = vmatprep.subr.mxu0 0.0
      %1582 = vmatpush1.msra.mxu0 0.0
      %1583 = vmatprep.subr.mxu0 0.0
      %1584 = vmatpush1.msra.mxu0 0.0
      %1585 = vmatprep.subr.mxu0 0.0
      %1586 = vmatpush1.msra.mxu0 0.0
      %1587 = vmatprep.subr.mxu0 0.0
      %1588 = vmatpush1.msra.mxu0 0.0
      %1589 = vmatprep.subr.mxu0 0.0
      %1590 = vmatpush1.msra.mxu0 0.0
      %1591 = vmatprep.subr.mxu0 0.0
      %1592 = vmatpush1.msra.mxu0 0.0
      %1593 = vmatprep.subr.mxu0 0.0
      %1594 = vmatpush1.msra.mxu0 0.0
      %1595 = vmatprep.subr.mxu0 0.0
      %1596 = vmatpush1.msra.mxu0 0.0
      %1597 = vmatprep.subr.mxu0 0.0
      %1598 = vmatpush1.msra.mxu0 0.0
      %1599 = vmatprep.subr.mxu0 0.0
      %1600 = vmatpush1.msra.mxu0 0.0
      %1601 = vmatprep.subr.mxu0 0.0
      %1602 = vmatpush1.msra.mxu0 0.0
      %1603 = vmatprep.subr.mxu0 0.0
      %1604 = vmatpush1.msra.mxu0 0.0
      %1605 = vmatprep.subr.mxu0 0.0
      %1606 = vmatpush1.msra.mxu0 0.0
      %1607 = vmatprep.subr.mxu0 0.0
      %1608 = vmatpush1.msra.mxu0 0.0
      %1609 = vmatprep.subr.mxu0 %v1577
      %1610 = vmatpush1.msra.mxu0 %v1575
      %1611 = vmatprep.subr.mxu0 0.0
      %1612 = vmatpush2.msra.mxu0 0.0
      %1613 = vmatprep.subr.mxu0 0.0
      %1614 = vmatpush2.msra.mxu0 0.0
      %1615 = vmatprep.subr.mxu0 0.0
      %1616 = vmatpush2.msra.mxu0 0.0
      %1617 = vmatprep.subr.mxu0 0.0
      %1618 = vmatpush2.msra.mxu0 0.0
      %1619 = vmatprep.subr.mxu0 0.0
      %1620 = vmatpush2.msra.mxu0 0.0
      %1621 = vmatprep.subr.mxu0 0.0
      %1622 = vmatpush2.msra.mxu0 0.0
      %1623 = vmatprep.subr.mxu0 0.0
      %1624 = vmatpush2.msra.mxu0 0.0
      %1625 = vmatprep.subr.mxu0 0.0
      %1626 = vmatpush2.msra.mxu0 0.0
      %1627 = vmatprep.subr.mxu0 0.0
      %1628 = vmatpush2.msra.mxu0 0.0
      %1629 = vmatprep.subr.mxu0 0.0
      %1630 = vmatpush2.msra.mxu0 0.0
      %1631 = vmatprep.subr.mxu0 0.0
      %1632 = vmatpush2.msra.mxu0 0.0
      %1633 = vmatprep.subr.mxu0 0.0
      %1634 = vmatpush2.msra.mxu0 0.0
      %1635 = vmatprep.subr.mxu0 0.0
      %1636 = vmatpush2.msra.mxu0 0.0
      %1637 = vmatprep.subr.mxu0 0.0
      %1638 = vmatpush2.msra.mxu0 0.0
      %1639 = vmatprep.subr.mxu0 0.0
      %1640 = vmatpush2.msra.mxu0 0.0
      %1641 = vmatprep.subr.mxu0 0.0
      %1642 = vmatpush2.msra.mxu0 0.0
      %1643 = vmatprep.mubr.f32.mxu0 0.0
      %1644 = vmatmul.mubr.f32.gmra.mxu0 %v1573
      %v1645 = vpop.f32.mrf.mxu0
      %v1646 = vadd.f32 0.0, %v1645
      %v1647 = vpop.f32.mrf.mxu0
      %v1648 = vadd.f32 0.0, %v1647
      %1649 = vdwg.mxu0
      %v1650 = vadd.f32 %v1554, %v1646
      %v1651 = vadd.f32 %v1555, %v1648
      %v1652 = vld [vmem:[#allocation2 + $0x4] sm:$0xff]
      %v1653 = vld [vmem:[#allocation2 + $0xc] sm:$0xf]
      %1654 = vrot.lane.b32.xlu0 %v1056, 17
      %v1655 = vpop.permute.xlu0 %1654
      %v1656 = vrot.slane %v1655, 4
      %v1657 = vsel %vm964, %v1656, %v1655
      %v1660 = vmul.f32 %v1652, %v1657
      %v1661 = vmul.f32 %v1653, %v1656
      %s1662 = scalar_lea.vmem %s9, 32
      %v1663 = vld [vmem:[%s1662] sm:$0xf]
      %v1666 = vcombine.high %v1660, %v1660
      %1667 = vrot.lane.b32.xlu0 %v1660, 111
      %v1668 = vpop.permute.xlu0 %1667
      %1669 = vrot.lane.b32.xlu0 %v1666, 111
      %v1670 = vpop.permute.xlu0 %1669
      %1671 = vrot.lane.b32.xlu0 %v1661, 111
      %v1672 = vpop.permute.xlu0 %1671
      %v1673 = vsel %vm856, %v1668, %v1670
      %v1674 = vsel %vm856, %v1670, %v1672
      %v1676 = vsel %vm561, %v1663, 0
      %v1678 = vsel %vm565, %v1673, 0
      %v1680 = vsel %vm565, %v1674, 0
      %1682 = vmatprep.subr.mxu0 0.0
      %1683 = vmatpush1.msra.mxu0 0.0
      %1684 = vmatprep.subr.mxu0 0.0
      %1685 = vmatpush1.msra.mxu0 0.0
      %1686 = vmatprep.subr.mxu0 0.0
      %1687 = vmatpush1.msra.mxu0 0.0
      %1688 = vmatprep.subr.mxu0 0.0
      %1689 = vmatpush1.msra.mxu0 0.0
      %1690 = vmatprep.subr.mxu0 0.0
      %1691 = vmatpush1.msra.mxu0 0.0
      %1692 = vmatprep.subr.mxu0 0.0
      %1693 = vmatpush1.msra.mxu0 0.0
      %1694 = vmatprep.subr.mxu0 0.0
      %1695 = vmatpush1.msra.mxu0 0.0
      %1696 = vmatprep.subr.mxu0 0.0
      %1697 = vmatpush1.msra.mxu0 0.0
      %1698 = vmatprep.subr.mxu0 0.0
      %1699 = vmatpush1.msra.mxu0 0.0
      %1700 = vmatprep.subr.mxu0 0.0
      %1701 = vmatpush1.msra.mxu0 0.0
      %1702 = vmatprep.subr.mxu0 0.0
      %1703 = vmatpush1.msra.mxu0 0.0
      %1704 = vmatprep.subr.mxu0 0.0
      %1705 = vmatpush1.msra.mxu0 0.0
      %1706 = vmatprep.subr.mxu0 0.0
      %1707 = vmatpush1.msra.mxu0 0.0
      %1708 = vmatprep.subr.mxu0 0.0
      %1709 = vmatpush1.msra.mxu0 0.0
      %1710 = vmatprep.subr.mxu0 0.0
      %1711 = vmatpush1.msra.mxu0 0.0
      %1712 = vmatprep.subr.mxu0 %v1680
      %1713 = vmatpush1.msra.mxu0 %v1678
      %1714 = vmatprep.subr.mxu0 0.0
      %1715 = vmatpush2.msra.mxu0 0.0
      %1716 = vmatprep.subr.mxu0 0.0
      %1717 = vmatpush2.msra.mxu0 0.0
      %1718 = vmatprep.subr.mxu0 0.0
      %1719 = vmatpush2.msra.mxu0 0.0
      %1720 = vmatprep.subr.mxu0 0.0
      %1721 = vmatpush2.msra.mxu0 0.0
      %1722 = vmatprep.subr.mxu0 0.0
      %1723 = vmatpush2.msra.mxu0 0.0
      %1724 = vmatprep.subr.mxu0 0.0
      %1725 = vmatpush2.msra.mxu0 0.0
      %1726 = vmatprep.subr.mxu0 0.0
      %1727 = vmatpush2.msra.mxu0 0.0
      %1728 = vmatprep.subr.mxu0 0.0
      %1729 = vmatpush2.msra.mxu0 0.0
      %1730 = vmatprep.subr.mxu0 0.0
      %1731 = vmatpush2.msra.mxu0 0.0
      %1732 = vmatprep.subr.mxu0 0.0
      %1733 = vmatpush2.msra.mxu0 0.0
      %1734 = vmatprep.subr.mxu0 0.0
      %1735 = vmatpush2.msra.mxu0 0.0
      %1736 = vmatprep.subr.mxu0 0.0
      %1737 = vmatpush2.msra.mxu0 0.0
      %1738 = vmatprep.subr.mxu0 0.0
      %1739 = vmatpush2.msra.mxu0 0.0
      %1740 = vmatprep.subr.mxu0 0.0
      %1741 = vmatpush2.msra.mxu0 0.0
      %1742 = vmatprep.subr.mxu0 0.0
      %1743 = vmatpush2.msra.mxu0 0.0
      %1744 = vmatprep.subr.mxu0 0.0
      %1745 = vmatpush2.msra.mxu0 0.0
      %1746 = vmatprep.mubr.f32.mxu0 0.0
      %1747 = vmatmul.mubr.f32.gmra.mxu0 %v1676
      %v1748 = vpop.f32.mrf.mxu0
      %v1749 = vadd.f32 0.0, %v1748
      %v1750 = vpop.f32.mrf.mxu0
      %v1751 = vadd.f32 0.0, %v1750
      %1752 = vdwg.mxu0
      %v1753 = vadd.f32 %v1650, %v1749
      %v1754 = vadd.f32 %v1651, %v1751
      %v1755 = vld [vmem:[%s10] sm:$0xf]
      %1757 = vset.pattern.permute.xlu0 0
      %1758 = vperm.xlu0 %1757, %v1755
      %v1759 = vpop.permute.xlu0 %1758
      %v1761 = vadd.f32 %v1753, %v1759
      %v1762 = vadd.f32 %v1754, %v1759
      %v1763 = vmul.f32 %v1761, 0.5
      %v1764 = vmul.f32 %v1762, 0.5
      %v1765 = vmul.f32 %v1761, 0.70710677
      %v1766 = vmul.f32 %v1762, 0.70710677
      %v1767 = verf.f32.pop %v1765
      %v1768 = verf.f32.pop %v1766
      %v1769 = vadd.f32 %v1767, 1.0
      %v1770 = vadd.f32 %v1768, 1.0
      %v1771 = vmul.f32 %v1763, %v1769
      %v1772 = vmul.f32 %v1764, %v1770
      %v1775 = vcombine.low %v1771, %v1772
      %1777 = vst [vmem:[#allocation2 + $0x4] sm:$0xff] %v1775
      %v1778 = vld [vmem:[#allocation2] sm:$0xff]
      %v1779 = vld [vmem:[#allocation2 + $0x8] sm:$0xf]
      %v1780 = vmul.f32 %v1778, %v857
      %v1781 = vmul.f32 %v1779, %v855
      %v1782 = vld [vmem:[%s11] sm:$0xf]
      %s1783 = scalar_lea.vmem %s11, 4
      %v1784 = vld [vmem:[%s1783] sm:$0xf]
      %v1787 = vcombine.high %v1778, %v1778
      %1788 = vrot.lane.b32.xlu0 %v1778, 16
      %v1789 = vpop.permute.xlu0 %1788
      %1790 = vrot.lane.b32.xlu0 %v1787, 16
      %v1791 = vpop.permute.xlu0 %1790
      %1792 = vrot.lane.b32.xlu0 %v1779, 16
      %v1793 = vpop.permute.xlu0 %1792
      %v1794 = vsel %vm874, %v1789, %v1791
      %v1795 = vsel %vm874, %v1791, %v1793
      %v1797 = vsel %vm561, %v1784, 0
      %v1799 = vsel %vm565, %v1794, 0
      %v1801 = vsel %vm565, %v1795, 0
      %1803 = vmatprep.subr.mxu0 0.0
      %1804 = vmatpush1.msra.mxu0 0.0
      %1805 = vmatprep.subr.mxu0 0.0
      %1806 = vmatpush1.msra.mxu0 0.0
      %1807 = vmatprep.subr.mxu0 0.0
      %1808 = vmatpush1.msra.mxu0 0.0
      %1809 = vmatprep.subr.mxu0 0.0
      %1810 = vmatpush1.msra.mxu0 0.0
      %1811 = vmatprep.subr.mxu0 0.0
      %1812 = vmatpush1.msra.mxu0 0.0
      %1813 = vmatprep.subr.mxu0 0.0
      %1814 = vmatpush1.msra.mxu0 0.0
      %1815 = vmatprep.subr.mxu0 0.0
      %1816 = vmatpush1.msra.mxu0 0.0
      %1817 = vmatprep.subr.mxu0 0.0
      %1818 = vmatpush1.msra.mxu0 0.0
      %1819 = vmatprep.subr.mxu0 0.0
      %1820 = vmatpush1.msra.mxu0 0.0
      %1821 = vmatprep.subr.mxu0 0.0
      %1822 = vmatpush1.msra.mxu0 0.0
      %1823 = vmatprep.subr.mxu0 0.0
      %1824 = vmatpush1.msra.mxu0 0.0
      %1825 = vmatprep.subr.mxu0 0.0
      %1826 = vmatpush1.msra.mxu0 0.0
      %1827 = vmatprep.subr.mxu0 0.0
      %1828 = vmatpush1.msra.mxu0 0.0
      %1829 = vmatprep.subr.mxu0 0.0
      %1830 = vmatpush1.msra.mxu0 0.0
      %1831 = vmatprep.subr.mxu0 0.0
      %1832 = vmatpush1.msra.mxu0 0.0
      %1833 = vmatprep.subr.mxu0 %v1801
      %1834 = vmatpush1.msra.mxu0 %v1799
      %1835 = vmatprep.subr.mxu0 0.0
      %1836 = vmatpush2.msra.mxu0 0.0
      %1837 = vmatprep.subr.mxu0 0.0
      %1838 = vmatpush2.msra.mxu0 0.0
      %1839 = vmatprep.subr.mxu0 0.0
      %1840 = vmatpush2.msra.mxu0 0.0
      %1841 = vmatprep.subr.mxu0 0.0
      %1842 = vmatpush2.msra.mxu0 0.0
      %1843 = vmatprep.subr.mxu0 0.0
      %1844 = vmatpush2.msra.mxu0 0.0
      %1845 = vmatprep.subr.mxu0 0.0
      %1846 = vmatpush2.msra.mxu0 0.0
      %1847 = vmatprep.subr.mxu0 0.0
      %1848 = vmatpush2.msra.mxu0 0.0
      %1849 = vmatprep.subr.mxu0 0.0
      %1850 = vmatpush2.msra.mxu0 0.0
      %1851 = vmatprep.subr.mxu0 0.0
      %1852 = vmatpush2.msra.mxu0 0.0
      %1853 = vmatprep.subr.mxu0 0.0
      %1854 = vmatpush2.msra.mxu0 0.0
      %1855 = vmatprep.subr.mxu0 0.0
      %1856 = vmatpush2.msra.mxu0 0.0
      %1857 = vmatprep.subr.mxu0 0.0
      %1858 = vmatpush2.msra.mxu0 0.0
      %1859 = vmatprep.subr.mxu0 0.0
      %1860 = vmatpush2.msra.mxu0 0.0
      %1861 = vmatprep.subr.mxu0 0.0
      %1862 = vmatpush2.msra.mxu0 0.0
      %1863 = vmatprep.subr.mxu0 0.0
      %1864 = vmatpush2.msra.mxu0 0.0
      %1865 = vmatprep.subr.mxu0 0.0
      %1866 = vmatpush2.msra.mxu0 0.0
      %1867 = vmatprep.mubr.f32.mxu0 0.0
      %1868 = vmatmul.mubr.f32.gmra.mxu0 %v1797
      %v1869 = vpop.f32.mrf.mxu0
      %v1870 = vadd.f32 0.0, %v1869
      %v1871 = vpop.f32.mrf.mxu0
      %v1872 = vadd.f32 0.0, %v1871
      %1873 = vdwg.mxu0
      %v1876 = vcombine.high %v1780, %v1780
      %1877 = vrot.lane.b32.xlu0 %v1780, 17
      %v1878 = vpop.permute.xlu0 %1877
      %1879 = vrot.lane.b32.xlu0 %v1876, 17
      %v1880 = vpop.permute.xlu0 %1879
      %1881 = vrot.lane.b32.xlu0 %v1781, 17
      %v1882 = vpop.permute.xlu0 %1881
      %v1883 = vsel %vm964, %v1878, %v1880
      %v1884 = vsel %vm964, %v1880, %v1882
      %v1886 = vsel %vm561, %v1782, 0
      %v1888 = vsel %vm565, %v1883, 0
      %v1890 = vsel %vm565, %v1884, 0
      %1892 = vmatprep.subr.mxu0 0.0
      %1893 = vmatpush1.msra.mxu0 0.0
      %1894 = vmatprep.subr.mxu0 0.0
      %1895 = vmatpush1.msra.mxu0 0.0
      %1896 = vmatprep.subr.mxu0 0.0
      %1897 = vmatpush1.msra.mxu0 0.0
      %1898 = vmatprep.subr.mxu0 0.0
      %1899 = vmatpush1.msra.mxu0 0.0
      %1900 = vmatprep.subr.mxu0 0.0
      %1901 = vmatpush1.msra.mxu0 0.0
      %1902 = vmatprep.subr.mxu0 0.0
      %1903 = vmatpush1.msra.mxu0 0.0
      %1904 = vmatprep.subr.mxu0 0.0
      %1905 = vmatpush1.msra.mxu0 0.0
      %1906 = vmatprep.subr.mxu0 0.0
      %1907 = vmatpush1.msra.mxu0 0.0
      %1908 = vmatprep.subr.mxu0 0.0
      %1909 = vmatpush1.msra.mxu0 0.0
      %1910 = vmatprep.subr.mxu0 0.0
      %1911 = vmatpush1.msra.mxu0 0.0
      %1912 = vmatprep.subr.mxu0 0.0
      %1913 = vmatpush1.msra.mxu0 0.0
      %1914 = vmatprep.subr.mxu0 0.0
      %1915 = vmatpush1.msra.mxu0 0.0
      %1916 = vmatprep.subr.mxu0 0.0
      %1917 = vmatpush1.msra.mxu0 0.0
      %1918 = vmatprep.subr.mxu0 0.0
      %1919 = vmatpush1.msra.mxu0 0.0
      %1920 = vmatprep.subr.mxu0 0.0
      %1921 = vmatpush1.msra.mxu0 0.0
      %1922 = vmatprep.subr.mxu0 %v1890
      %1923 = vmatpush1.msra.mxu0 %v1888
      %1924 = vmatprep.subr.mxu0 0.0
      %1925 = vmatpush2.msra.mxu0 0.0
      %1926 = vmatprep.subr.mxu0 0.0
      %1927 = vmatpush2.msra.mxu0 0.0
      %1928 = vmatprep.subr.mxu0 0.0
      %1929 = vmatpush2.msra.mxu0 0.0
      %1930 = vmatprep.subr.mxu0 0.0
      %1931 = vmatpush2.msra.mxu0 0.0
      %1932 = vmatprep.subr.mxu0 0.0
      %1933 = vmatpush2.msra.mxu0 0.0
      %1934 = vmatprep.subr.mxu0 0.0
      %1935 = vmatpush2.msra.mxu0 0.0
      %1936 = vmatprep.subr.mxu0 0.0
      %1937 = vmatpush2.msra.mxu0 0.0
      %1938 = vmatprep.subr.mxu0 0.0
      %1939 = vmatpush2.msra.mxu0 0.0
      %1940 = vmatprep.subr.mxu0 0.0
      %1941 = vmatpush2.msra.mxu0 0.0
      %1942 = vmatprep.subr.mxu0 0.0
      %1943 = vmatpush2.msra.mxu0 0.0
      %1944 = vmatprep.subr.mxu0 0.0
      %1945 = vmatpush2.msra.mxu0 0.0
      %1946 = vmatprep.subr.mxu0 0.0
      %1947 = vmatpush2.msra.mxu0 0.0
      %1948 = vmatprep.subr.mxu0 0.0
      %1949 = vmatpush2.msra.mxu0 0.0
      %1950 = vmatprep.subr.mxu0 0.0
      %1951 = vmatpush2.msra.mxu0 0.0
      %1952 = vmatprep.subr.mxu0 0.0
      %1953 = vmatpush2.msra.mxu0 0.0
      %1954 = vmatprep.subr.mxu0 0.0
      %1955 = vmatpush2.msra.mxu0 0.0
      %1956 = vmatprep.mubr.f32.mxu0 0.0
      %1957 = vmatmul.mubr.f32.gmra.mxu0 %v1886
      %v1958 = vpop.f32.mrf.mxu0
      %v1959 = vadd.f32 %v1870, %v1958
      %v1960 = vpop.f32.mrf.mxu0
      %v1961 = vadd.f32 %v1872, %v1960
      %1962 = vdwg.mxu0
      %v1963 = vld [vmem:[#allocation2] sm:$0xff]
      %v1964 = vld [vmem:[#allocation2 + $0x8] sm:$0xf]
      %v1965 = vmul.f32 %v1963, %v1061
      %v1966 = vmul.f32 %v1964, %v1059
      %s1967 = scalar_lea.vmem %s11, 8
      %v1968 = vld [vmem:[%s1967] sm:$0xf]
      %v1971 = vcombine.high %v1965, %v1965
      %1972 = vrot.lane.b32.xlu0 %v1965, 15
      %v1973 = vpop.permute.xlu0 %1972
      %1974 = vrot.lane.b32.xlu0 %v1971, 15
      %v1975 = vpop.permute.xlu0 %1974
      %1976 = vrot.lane.b32.xlu0 %v1966, 15
      %v1977 = vpop.permute.xlu0 %1976
      %v1978 = vsel %vm1077, %v1973, %v1975
      %v1979 = vsel %vm1077, %v1975, %v1977
      %v1981 = vsel %vm561, %v1968, 0
      %v1983 = vsel %vm565, %v1978, 0
      %v1985 = vsel %vm565, %v1979, 0
      %1987 = vmatprep.subr.mxu0 0.0
      %1988 = vmatpush1.msra.mxu0 0.0
      %1989 = vmatprep.subr.mxu0 0.0
      %1990 = vmatpush1.msra.mxu0 0.0
      %1991 = vmatprep.subr.mxu0 0.0
      %1992 = vmatpush1.msra.mxu0 0.0
      %1993 = vmatprep.subr.mxu0 0.0
      %1994 = vmatpush1.msra.mxu0 0.0
      %1995 = vmatprep.subr.mxu0 0.0
      %1996 = vmatpush1.msra.mxu0 0.0
      %1997 = vmatprep.subr.mxu0 0.0
      %1998 = vmatpush1.msra.mxu0 0.0
      %1999 = vmatprep.subr.mxu0 0.0
      %2000 = vmatpush1.msra.mxu0 0.0
      %2001 = vmatprep.subr.mxu0 0.0
      %2002 = vmatpush1.msra.mxu0 0.0
      %2003 = vmatprep.subr.mxu0 0.0
      %2004 = vmatpush1.msra.mxu0 0.0
      %2005 = vmatprep.subr.mxu0 0.0
      %2006 = vmatpush1.msra.mxu0 0.0
      %2007 = vmatprep.subr.mxu0 0.0
      %2008 = vmatpush1.msra.mxu0 0.0
      %2009 = vmatprep.subr.mxu0 0.0
      %2010 = vmatpush1.msra.mxu0 0.0
      %2011 = vmatprep.subr.mxu0 0.0
      %2012 = vmatpush1.msra.mxu0 0.0
      %2013 = vmatprep.subr.mxu0 0.0
      %2014 = vmatpush1.msra.mxu0 0.0
      %2015 = vmatprep.subr.mxu0 0.0
      %2016 = vmatpush1.msra.mxu0 0.0
      %2017 = vmatprep.subr.mxu0 %v1985
      %2018 = vmatpush1.msra.mxu0 %v1983
      %2019 = vmatprep.subr.mxu0 0.0
      %2020 = vmatpush2.msra.mxu0 0.0
      %2021 = vmatprep.subr.mxu0 0.0
      %2022 = vmatpush2.msra.mxu0 0.0
      %2023 = vmatprep.subr.mxu0 0.0
      %2024 = vmatpush2.msra.mxu0 0.0
      %2025 = vmatprep.subr.mxu0 0.0
      %2026 = vmatpush2.msra.mxu0 0.0
      %2027 = vmatprep.subr.mxu0 0.0
      %2028 = vmatpush2.msra.mxu0 0.0
      %2029 = vmatprep.subr.mxu0 0.0
      %2030 = vmatpush2.msra.mxu0 0.0
      %2031 = vmatprep.subr.mxu0 0.0
      %2032 = vmatpush2.msra.mxu0 0.0
      %2033 = vmatprep.subr.mxu0 0.0
      %2034 = vmatpush2.msra.mxu0 0.0
      %2035 = vmatprep.subr.mxu0 0.0
      %2036 = vmatpush2.msra.mxu0 0.0
      %2037 = vmatprep.subr.mxu0 0.0
      %2038 = vmatpush2.msra.mxu0 0.0
      %2039 = vmatprep.subr.mxu0 0.0
      %2040 = vmatpush2.msra.mxu0 0.0
      %2041 = vmatprep.subr.mxu0 0.0
      %2042 = vmatpush2.msra.mxu0 0.0
      %2043 = vmatprep.subr.mxu0 0.0
      %2044 = vmatpush2.msra.mxu0 0.0
      %2045 = vmatprep.subr.mxu0 0.0
      %2046 = vmatpush2.msra.mxu0 0.0
      %2047 = vmatprep.subr.mxu0 0.0
      %2048 = vmatpush2.msra.mxu0 0.0
      %2049 = vmatprep.subr.mxu0 0.0
      %2050 = vmatpush2.msra.mxu0 0.0
      %2051 = vmatprep.mubr.f32.mxu0 0.0
      %2052 = vmatmul.mubr.f32.gmra.mxu0 %v1981
      %v2053 = vpop.f32.mrf.mxu0
      %v2054 = vadd.f32 0.0, %v2053
      %v2055 = vpop.f32.mrf.mxu0
      %v2056 = vadd.f32 0.0, %v2055
      %2057 = vdwg.mxu0
      %v2058 = vadd.f32 %v1959, %v2054
      %v2059 = vadd.f32 %v1961, %v2056
      %v2060 = vld [vmem:[#allocation2] sm:$0xff]
      %v2061 = vld [vmem:[#allocation2 + $0x8] sm:$0xf]
      %v2062 = vmul.f32 %v2060, %v1166
      %v2063 = vmul.f32 %v2061, %v1164
      %s2064 = scalar_lea.vmem %s11, 12
      %v2065 = vld [vmem:[%s2064] sm:$0xf]
      %v2068 = vcombine.high %v2062, %v2062
      %2069 = vrot.lane.b32.xlu0 %v2062, 1
      %v2070 = vpop.permute.xlu0 %2069
      %2071 = vrot.lane.b32.xlu0 %v2068, 1
      %v2072 = vpop.permute.xlu0 %2071
      %2073 = vrot.lane.b32.xlu0 %v2063, 1
      %v2074 = vpop.permute.xlu0 %2073
      %v2075 = vsel %vm1182, %v2070, %v2072
      %v2076 = vsel %vm1182, %v2072, %v2074
      %v2078 = vsel %vm561, %v2065, 0
      %v2080 = vsel %vm565, %v2075, 0
      %v2082 = vsel %vm565, %v2076, 0
      %2084 = vmatprep.subr.mxu0 0.0
      %2085 = vmatpush1.msra.mxu0 0.0
      %2086 = vmatprep.subr.mxu0 0.0
      %2087 = vmatpush1.msra.mxu0 0.0
      %2088 = vmatprep.subr.mxu0 0.0
      %2089 = vmatpush1.msra.mxu0 0.0
      %2090 = vmatprep.subr.mxu0 0.0
      %2091 = vmatpush1.msra.mxu0 0.0
      %2092 = vmatprep.subr.mxu0 0.0
      %2093 = vmatpush1.msra.mxu0 0.0
      %2094 = vmatprep.subr.mxu0 0.0
      %2095 = vmatpush1.msra.mxu0 0.0
      %2096 = vmatprep.subr.mxu0 0.0
      %2097 = vmatpush1.msra.mxu0 0.0
      %2098 = vmatprep.subr.mxu0 0.0
      %2099 = vmatpush1.msra.mxu0 0.0
      %2100 = vmatprep.subr.mxu0 0.0
      %2101 = vmatpush1.msra.mxu0 0.0
      %2102 = vmatprep.subr.mxu0 0.0
      %2103 = vmatpush1.msra.mxu0 0.0
      %2104 = vmatprep.subr.mxu0 0.0
      %2105 = vmatpush1.msra.mxu0 0.0
      %2106 = vmatprep.subr.mxu0 0.0
      %2107 = vmatpush1.msra.mxu0 0.0
      %2108 = vmatprep.subr.mxu0 0.0
      %2109 = vmatpush1.msra.mxu0 0.0
      %2110 = vmatprep.subr.mxu0 0.0
      %2111 = vmatpush1.msra.mxu0 0.0
      %2112 = vmatprep.subr.mxu0 0.0
      %2113 = vmatpush1.msra.mxu0 0.0
      %2114 = vmatprep.subr.mxu0 %v2082
      %2115 = vmatpush1.msra.mxu0 %v2080
      %2116 = vmatprep.subr.mxu0 0.0
      %2117 = vmatpush2.msra.mxu0 0.0
      %2118 = vmatprep.subr.mxu0 0.0
      %2119 = vmatpush2.msra.mxu0 0.0
      %2120 = vmatprep.subr.mxu0 0.0
      %2121 = vmatpush2.msra.mxu0 0.0
      %2122 = vmatprep.subr.mxu0 0.0
      %2123 = vmatpush2.msra.mxu0 0.0
      %2124 = vmatprep.subr.mxu0 0.0
      %2125 = vmatpush2.msra.mxu0 0.0
      %2126 = vmatprep.subr.mxu0 0.0
      %2127 = vmatpush2.msra.mxu0 0.0
      %2128 = vmatprep.subr.mxu0 0.0
      %2129 = vmatpush2.msra.mxu0 0.0
      %2130 = vmatprep.subr.mxu0 0.0
      %2131 = vmatpush2.msra.mxu0 0.0
      %2132 = vmatprep.subr.mxu0 0.0
      %2133 = vmatpush2.msra.mxu0 0.0
      %2134 = vmatprep.subr.mxu0 0.0
      %2135 = vmatpush2.msra.mxu0 0.0
      %2136 = vmatprep.subr.mxu0 0.0
      %2137 = vmatpush2.msra.mxu0 0.0
      %2138 = vmatprep.subr.mxu0 0.0
      %2139 = vmatpush2.msra.mxu0 0.0
      %2140 = vmatprep.subr.mxu0 0.0
      %2141 = vmatpush2.msra.mxu0 0.0
      %2142 = vmatprep.subr.mxu0 0.0
      %2143 = vmatpush2.msra.mxu0 0.0
      %2144 = vmatprep.subr.mxu0 0.0
      %2145 = vmatpush2.msra.mxu0 0.0
      %2146 = vmatprep.subr.mxu0 0.0
      %2147 = vmatpush2.msra.mxu0 0.0
      %2148 = vmatprep.mubr.f32.mxu0 0.0
      %2149 = vmatmul.mubr.f32.gmra.mxu0 %v2078
      %v2150 = vpop.f32.mrf.mxu0
      %v2151 = vadd.f32 0.0, %v2150
      %v2152 = vpop.f32.mrf.mxu0
      %v2153 = vadd.f32 0.0, %v2152
      %2154 = vdwg.mxu0
      %v2155 = vadd.f32 %v2058, %v2151
      %v2156 = vadd.f32 %v2059, %v2153
      %v2157 = vld [vmem:[#allocation2 + $0x4] sm:$0xff]
      %s2158 = scalar_lea.vmem %s11, 16
      %v2159 = vld [vmem:[%s2158] sm:$0xf]
      %v2161 = vcombine.high %v2157, %v2157
      %v2163 = vsel %vm561, %v2159, 0
      %v2165 = vsel %vm565, %v2157, 0
      %v2167 = vsel %vm565, %v2161, 0
      %2169 = vmatprep.subr.mxu0 0.0
      %2170 = vmatpush1.msra.mxu0 0.0
      %2171 = vmatprep.subr.mxu0 0.0
      %2172 = vmatpush1.msra.mxu0 0.0
      %2173 = vmatprep.subr.mxu0 0.0
      %2174 = vmatpush1.msra.mxu0 0.0
      %2175 = vmatprep.subr.mxu0 0.0
      %2176 = vmatpush1.msra.mxu0 0.0
      %2177 = vmatprep.subr.mxu0 0.0
      %2178 = vmatpush1.msra.mxu0 0.0
      %2179 = vmatprep.subr.mxu0 0.0
      %2180 = vmatpush1.msra.mxu0 0.0
      %2181 = vmatprep.subr.mxu0 0.0
      %2182 = vmatpush1.msra.mxu0 0.0
      %2183 = vmatprep.subr.mxu0 0.0
      %2184 = vmatpush1.msra.mxu0 0.0
      %2185 = vmatprep.subr.mxu0 0.0
      %2186 = vmatpush1.msra.mxu0 0.0
      %2187 = vmatprep.subr.mxu0 0.0
      %2188 = vmatpush1.msra.mxu0 0.0
      %2189 = vmatprep.subr.mxu0 0.0
      %2190 = vmatpush1.msra.mxu0 0.0
      %2191 = vmatprep.subr.mxu0 0.0
      %2192 = vmatpush1.msra.mxu0 0.0
      %2193 = vmatprep.subr.mxu0 0.0
      %2194 = vmatpush1.msra.mxu0 0.0
      %2195 = vmatprep.subr.mxu0 0.0
      %2196 = vmatpush1.msra.mxu0 0.0
      %2197 = vmatprep.subr.mxu0 0.0
      %2198 = vmatpush1.msra.mxu0 0.0
      %2199 = vmatprep.subr.mxu0 %v2167
      %2200 = vmatpush1.msra.mxu0 %v2165
      %2201 = vmatprep.subr.mxu0 0.0
      %2202 = vmatpush2.msra.mxu0 0.0
      %2203 = vmatprep.subr.mxu0 0.0
      %2204 = vmatpush2.msra.mxu0 0.0
      %2205 = vmatprep.subr.mxu0 0.0
      %2206 = vmatpush2.msra.mxu0 0.0
      %2207 = vmatprep.subr.mxu0 0.0
      %2208 = vmatpush2.msra.mxu0 0.0
      %2209 = vmatprep.subr.mxu0 0.0
      %2210 = vmatpush2.msra.mxu0 0.0
      %2211 = vmatprep.subr.mxu0 0.0
      %2212 = vmatpush2.msra.mxu0 0.0
      %2213 = vmatprep.subr.mxu0 0.0
      %2214 = vmatpush2.msra.mxu0 0.0
      %2215 = vmatprep.subr.mxu0 0.0
      %2216 = vmatpush2.msra.mxu0 0.0
      %2217 = vmatprep.subr.mxu0 0.0
      %2218 = vmatpush2.msra.mxu0 0.0
      %2219 = vmatprep.subr.mxu0 0.0
      %2220 = vmatpush2.msra.mxu0 0.0
      %2221 = vmatprep.subr.mxu0 0.0
      %2222 = vmatpush2.msra.mxu0 0.0
      %2223 = vmatprep.subr.mxu0 0.0
      %2224 = vmatpush2.msra.mxu0 0.0
      %2225 = vmatprep.subr.mxu0 0.0
      %2226 = vmatpush2.msra.mxu0 0.0
      %2227 = vmatprep.subr.mxu0 0.0
      %2228 = vmatpush2.msra.mxu0 0.0
      %2229 = vmatprep.subr.mxu0 0.0
      %2230 = vmatpush2.msra.mxu0 0.0
      %2231 = vmatprep.subr.mxu0 0.0
      %2232 = vmatpush2.msra.mxu0 0.0
      %2233 = vmatprep.mubr.f32.mxu0 0.0
      %2234 = vmatmul.mubr.f32.gmra.mxu0 %v2163
      %v2235 = vpop.f32.mrf.mxu0
      %v2236 = vadd.f32 0.0, %v2235
      %v2237 = vpop.f32.mrf.mxu0
      %v2238 = vadd.f32 0.0, %v2237
      %2239 = vdwg.mxu0
      %v2240 = vadd.f32 %v2155, %v2236
      %v2241 = vadd.f32 %v2156, %v2238
      %v2242 = vld [vmem:[#allocation2 + $0x4] sm:$0xff]
      %v2243 = vld [vmem:[#allocation2 + $0xc] sm:$0xf]
      %v2244 = vmul.f32 %v2242, %v1355
      %v2245 = vmul.f32 %v2243, %v1354
      %s2246 = scalar_lea.vmem %s11, 20
      %v2247 = vld [vmem:[%s2246] sm:$0xf]
      %v2250 = vcombine.high %v2244, %v2244
      %2251 = vrot.lane.b32.xlu0 %v2244, 127
      %v2252 = vpop.permute.xlu0 %2251
      %2253 = vrot.lane.b32.xlu0 %v2250, 127
      %v2254 = vpop.permute.xlu0 %2253
      %2255 = vrot.lane.b32.xlu0 %v2245, 127
      %v2256 = vpop.permute.xlu0 %2255
      %v2257 = vsel %vm1165, %v2252, %v2254
      %v2258 = vsel %vm1165, %v2254, %v2256
      %v2260 = vsel %vm561, %v2247, 0
      %v2262 = vsel %vm565, %v2257, 0
      %v2264 = vsel %vm565, %v2258, 0
      %2266 = vmatprep.subr.mxu0 0.0
      %2267 = vmatpush1.msra.mxu0 0.0
      %2268 = vmatprep.subr.mxu0 0.0
      %2269 = vmatpush1.msra.mxu0 0.0
      %2270 = vmatprep.subr.mxu0 0.0
      %2271 = vmatpush1.msra.mxu0 0.0
      %2272 = vmatprep.subr.mxu0 0.0
      %2273 = vmatpush1.msra.mxu0 0.0
      %2274 = vmatprep.subr.mxu0 0.0
      %2275 = vmatpush1.msra.mxu0 0.0
      %2276 = vmatprep.subr.mxu0 0.0
      %2277 = vmatpush1.msra.mxu0 0.0
      %2278 = vmatprep.subr.mxu0 0.0
      %2279 = vmatpush1.msra.mxu0 0.0
      %2280 = vmatprep.subr.mxu0 0.0
      %2281 = vmatpush1.msra.mxu0 0.0
      %2282 = vmatprep.subr.mxu0 0.0
      %2283 = vmatpush1.msra.mxu0 0.0
      %2284 = vmatprep.subr.mxu0 0.0
      %2285 = vmatpush1.msra.mxu0 0.0
      %2286 = vmatprep.subr.mxu0 0.0
      %2287 = vmatpush1.msra.mxu0 0.0
      %2288 = vmatprep.subr.mxu0 0.0
      %2289 = vmatpush1.msra.mxu0 0.0
      %2290 = vmatprep.subr.mxu0 0.0
      %2291 = vmatpush1.msra.mxu0 0.0
      %2292 = vmatprep.subr.mxu0 0.0
      %2293 = vmatpush1.msra.mxu0 0.0
      %2294 = vmatprep.subr.mxu0 0.0
      %2295 = vmatpush1.msra.mxu0 0.0
      %2296 = vmatprep.subr.mxu0 %v2264
      %2297 = vmatpush1.msra.mxu0 %v2262
      %2298 = vmatprep.subr.mxu0 0.0
      %2299 = vmatpush2.msra.mxu0 0.0
      %2300 = vmatprep.subr.mxu0 0.0
      %2301 = vmatpush2.msra.mxu0 0.0
      %2302 = vmatprep.subr.mxu0 0.0
      %2303 = vmatpush2.msra.mxu0 0.0
      %2304 = vmatprep.subr.mxu0 0.0
      %2305 = vmatpush2.msra.mxu0 0.0
      %2306 = vmatprep.subr.mxu0 0.0
      %2307 = vmatpush2.msra.mxu0 0.0
      %2308 = vmatprep.subr.mxu0 0.0
      %2309 = vmatpush2.msra.mxu0 0.0
      %2310 = vmatprep.subr.mxu0 0.0
      %2311 = vmatpush2.msra.mxu0 0.0
      %2312 = vmatprep.subr.mxu0 0.0
      %2313 = vmatpush2.msra.mxu0 0.0
      %2314 = vmatprep.subr.mxu0 0.0
      %2315 = vmatpush2.msra.mxu0 0.0
      %2316 = vmatprep.subr.mxu0 0.0
      %2317 = vmatpush2.msra.mxu0 0.0
      %2318 = vmatprep.subr.mxu0 0.0
      %2319 = vmatpush2.msra.mxu0 0.0
      %2320 = vmatprep.subr.mxu0 0.0
      %2321 = vmatpush2.msra.mxu0 0.0
      %2322 = vmatprep.subr.mxu0 0.0
      %2323 = vmatpush2.msra.mxu0 0.0
      %2324 = vmatprep.subr.mxu0 0.0
      %2325 = vmatpush2.msra.mxu0 0.0
      %2326 = vmatprep.subr.mxu0 0.0
      %2327 = vmatpush2.msra.mxu0 0.0
      %2328 = vmatprep.subr.mxu0 0.0
      %2329 = vmatpush2.msra.mxu0 0.0
      %2330 = vmatprep.mubr.f32.mxu0 0.0
      %2331 = vmatmul.mubr.f32.gmra.mxu0 %v2260
      %v2332 = vpop.f32.mrf.mxu0
      %v2333 = vadd.f32 0.0, %v2332
      %v2334 = vpop.f32.mrf.mxu0
      %v2335 = vadd.f32 0.0, %v2334
      %2336 = vdwg.mxu0
      %v2337 = vadd.f32 %v2240, %v2333
      %v2338 = vadd.f32 %v2241, %v2335
      %v2339 = vld [vmem:[#allocation2 + $0x4] sm:$0xff]
      %v2340 = vld [vmem:[#allocation2 + $0xc] sm:$0xf]
      %v2341 = vmul.f32 %v2339, %v1458
      %v2342 = vmul.f32 %v2340, %v1457
      %s2343 = scalar_lea.vmem %s11, 24
      %v2344 = vld [vmem:[%s2343] sm:$0xf]
      %v2347 = vcombine.high %v2341, %v2341
      %2348 = vrot.lane.b32.xlu0 %v2341, 113
      %v2349 = vpop.permute.xlu0 %2348
      %2350 = vrot.lane.b32.xlu0 %v2347, 113
      %v2351 = vpop.permute.xlu0 %2350
      %2352 = vrot.lane.b32.xlu0 %v2342, 113
      %v2353 = vpop.permute.xlu0 %2352
      %v2354 = vsel %vm1060, %v2349, %v2351
      %v2355 = vsel %vm1060, %v2351, %v2353
      %v2357 = vsel %vm561, %v2344, 0
      %v2359 = vsel %vm565, %v2354, 0
      %v2361 = vsel %vm565, %v2355, 0
      %2363 = vmatprep.subr.mxu0 0.0
      %2364 = vmatpush1.msra.mxu0 0.0
      %2365 = vmatprep.subr.mxu0 0.0
      %2366 = vmatpush1.msra.mxu0 0.0
      %2367 = vmatprep.subr.mxu0 0.0
      %2368 = vmatpush1.msra.mxu0 0.0
      %2369 = vmatprep.subr.mxu0 0.0
      %2370 = vmatpush1.msra.mxu0 0.0
      %2371 = vmatprep.subr.mxu0 0.0
      %2372 = vmatpush1.msra.mxu0 0.0
      %2373 = vmatprep.subr.mxu0 0.0
      %2374 = vmatpush1.msra.mxu0 0.0
      %2375 = vmatprep.subr.mxu0 0.0
      %2376 = vmatpush1.msra.mxu0 0.0
      %2377 = vmatprep.subr.mxu0 0.0
      %2378 = vmatpush1.msra.mxu0 0.0
      %2379 = vmatprep.subr.mxu0 0.0
      %2380 = vmatpush1.msra.mxu0 0.0
      %2381 = vmatprep.subr.mxu0 0.0
      %2382 = vmatpush1.msra.mxu0 0.0
      %2383 = vmatprep.subr.mxu0 0.0
      %2384 = vmatpush1.msra.mxu0 0.0
      %2385 = vmatprep.subr.mxu0 0.0
      %2386 = vmatpush1.msra.mxu0 0.0
      %2387 = vmatprep.subr.mxu0 0.0
      %2388 = vmatpush1.msra.mxu0 0.0
      %2389 = vmatprep.subr.mxu0 0.0
      %2390 = vmatpush1.msra.mxu0 0.0
      %2391 = vmatprep.subr.mxu0 0.0
      %2392 = vmatpush1.msra.mxu0 0.0
      %2393 = vmatprep.subr.mxu0 %v2361
      %2394 = vmatpush1.msra.mxu0 %v2359
      %2395 = vmatprep.subr.mxu0 0.0
      %2396 = vmatpush2.msra.mxu0 0.0
      %2397 = vmatprep.subr.mxu0 0.0
      %2398 = vmatpush2.msra.mxu0 0.0
      %2399 = vmatprep.subr.mxu0 0.0
      %2400 = vmatpush2.msra.mxu0 0.0
      %2401 = vmatprep.subr.mxu0 0.0
      %2402 = vmatpush2.msra.mxu0 0.0
      %2403 = vmatprep.subr.mxu0 0.0
      %2404 = vmatpush2.msra.mxu0 0.0
      %2405 = vmatprep.subr.mxu0 0.0
      %2406 = vmatpush2.msra.mxu0 0.0
      %2407 = vmatprep.subr.mxu0 0.0
      %2408 = vmatpush2.msra.mxu0 0.0
      %2409 = vmatprep.subr.mxu0 0.0
      %2410 = vmatpush2.msra.mxu0 0.0
      %2411 = vmatprep.subr.mxu0 0.0
      %2412 = vmatpush2.msra.mxu0 0.0
      %2413 = vmatprep.subr.mxu0 0.0
      %2414 = vmatpush2.msra.mxu0 0.0
      %2415 = vmatprep.subr.mxu0 0.0
      %2416 = vmatpush2.msra.mxu0 0.0
      %2417 = vmatprep.subr.mxu0 0.0
      %2418 = vmatpush2.msra.mxu0 0.0
      %2419 = vmatprep.subr.mxu0 0.0
      %2420 = vmatpush2.msra.mxu0 0.0
      %2421 = vmatprep.subr.mxu0 0.0
      %2422 = vmatpush2.msra.mxu0 0.0
      %2423 = vmatprep.subr.mxu0 0.0
      %2424 = vmatpush2.msra.mxu0 0.0
      %2425 = vmatprep.subr.mxu0 0.0
      %2426 = vmatpush2.msra.mxu0 0.0
      %2427 = vmatprep.mubr.f32.mxu0 0.0
      %2428 = vmatmul.mubr.f32.gmra.mxu0 %v2357
      %v2429 = vpop.f32.mrf.mxu0
      %v2430 = vadd.f32 0.0, %v2429
      %v2431 = vpop.f32.mrf.mxu0
      %v2432 = vadd.f32 0.0, %v2431
      %2433 = vdwg.mxu0
      %v2434 = vadd.f32 %v2337, %v2430
      %v2435 = vadd.f32 %v2338, %v2432
      %v2436 = vld [vmem:[#allocation2 + $0x4] sm:$0xff]
      %v2437 = vld [vmem:[#allocation2 + $0xc] sm:$0xf]
      %s2438 = scalar_lea.vmem %s11, 28
      %v2439 = vld [vmem:[%s2438] sm:$0xf]
      %v2442 = vcombine.high %v2436, %v2436
      %2443 = vrot.lane.b32.xlu0 %v2436, 112
      %v2444 = vpop.permute.xlu0 %2443
      %2445 = vrot.lane.b32.xlu0 %v2442, 112
      %v2446 = vpop.permute.xlu0 %2445
      %2447 = vrot.lane.b32.xlu0 %v2437, 112
      %v2448 = vpop.permute.xlu0 %2447
      %v2449 = vsel %vm1569, %v2444, %v2446
      %v2450 = vsel %vm1569, %v2446, %v2448
      %v2452 = vsel %vm561, %v2439, 0
      %v2454 = vsel %vm565, %v2449, 0
      %v2456 = vsel %vm565, %v2450, 0
      %2458 = vmatprep.subr.mxu0 0.0
      %2459 = vmatpush1.msra.mxu0 0.0
      %2460 = vmatprep.subr.mxu0 0.0
      %2461 = vmatpush1.msra.mxu0 0.0
      %2462 = vmatprep.subr.mxu0 0.0
      %2463 = vmatpush1.msra.mxu0 0.0
      %2464 = vmatprep.subr.mxu0 0.0
      %2465 = vmatpush1.msra.mxu0 0.0
      %2466 = vmatprep.subr.mxu0 0.0
      %2467 = vmatpush1.msra.mxu0 0.0
      %2468 = vmatprep.subr.mxu0 0.0
      %2469 = vmatpush1.msra.mxu0 0.0
      %2470 = vmatprep.subr.mxu0 0.0
      %2471 = vmatpush1.msra.mxu0 0.0
      %2472 = vmatprep.subr.mxu0 0.0
      %2473 = vmatpush1.msra.mxu0 0.0
      %2474 = vmatprep.subr.mxu0 0.0
      %2475 = vmatpush1.msra.mxu0 0.0
      %2476 = vmatprep.subr.mxu0 0.0
      %2477 = vmatpush1.msra.mxu0 0.0
      %2478 = vmatprep.subr.mxu0 0.0
      %2479 = vmatpush1.msra.mxu0 0.0
      %2480 = vmatprep.subr.mxu0 0.0
      %2481 = vmatpush1.msra.mxu0 0.0
      %2482 = vmatprep.subr.mxu0 0.0
      %2483 = vmatpush1.msra.mxu0 0.0
      %2484 = vmatprep.subr.mxu0 0.0
      %2485 = vmatpush1.msra.mxu0 0.0
      %2486 = vmatprep.subr.mxu0 0.0
      %2487 = vmatpush1.msra.mxu0 0.0
      %2488 = vmatprep.subr.mxu0 %v2456
      %2489 = vmatpush1.msra.mxu0 %v2454
      %2490 = vmatprep.subr.mxu0 0.0
      %2491 = vmatpush2.msra.mxu0 0.0
      %2492 = vmatprep.subr.mxu0 0.0
      %2493 = vmatpush2.msra.mxu0 0.0
      %2494 = vmatprep.subr.mxu0 0.0
      %2495 = vmatpush2.msra.mxu0 0.0
      %2496 = vmatprep.subr.mxu0 0.0
      %2497 = vmatpush2.msra.mxu0 0.0
      %2498 = vmatprep.subr.mxu0 0.0
      %2499 = vmatpush2.msra.mxu0 0.0
      %2500 = vmatprep.subr.mxu0 0.0
      %2501 = vmatpush2.msra.mxu0 0.0
      %2502 = vmatprep.subr.mxu0 0.0
      %2503 = vmatpush2.msra.mxu0 0.0
      %2504 = vmatprep.subr.mxu0 0.0
      %2505 = vmatpush2.msra.mxu0 0.0
      %2506 = vmatprep.subr.mxu0 0.0
      %2507 = vmatpush2.msra.mxu0 0.0
      %2508 = vmatprep.subr.mxu0 0.0
      %2509 = vmatpush2.msra.mxu0 0.0
      %2510 = vmatprep.subr.mxu0 0.0
      %2511 = vmatpush2.msra.mxu0 0.0
      %2512 = vmatprep.subr.mxu0 0.0
      %2513 = vmatpush2.msra.mxu0 0.0
      %2514 = vmatprep.subr.mxu0 0.0
      %2515 = vmatpush2.msra.mxu0 0.0
      %2516 = vmatprep.subr.mxu0 0.0
      %2517 = vmatpush2.msra.mxu0 0.0
      %2518 = vmatprep.subr.mxu0 0.0
      %2519 = vmatpush2.msra.mxu0 0.0
      %2520 = vmatprep.subr.mxu0 0.0
      %2521 = vmatpush2.msra.mxu0 0.0
      %2522 = vmatprep.mubr.f32.mxu0 0.0
      %2523 = vmatmul.mubr.f32.gmra.mxu0 %v2452
      %v2524 = vpop.f32.mrf.mxu0
      %v2525 = vadd.f32 0.0, %v2524
      %v2526 = vpop.f32.mrf.mxu0
      %v2527 = vadd.f32 0.0, %v2526
      %2528 = vdwg.mxu0
      %v2529 = vadd.f32 %v2434, %v2525
      %v2530 = vadd.f32 %v2435, %v2527
      %v2531 = vld [vmem:[#allocation2 + $0x4] sm:$0xff]
      %v2532 = vld [vmem:[#allocation2 + $0xc] sm:$0xf]
      %v2533 = vmul.f32 %v2531, %v1657
      %v2534 = vmul.f32 %v2532, %v1656
      %s2535 = scalar_lea.vmem %s11, 32
      %v2536 = vld [vmem:[%s2535] sm:$0xf]
      %v2539 = vcombine.high %v2533, %v2533
      %2540 = vrot.lane.b32.xlu0 %v2533, 111
      %v2541 = vpop.permute.xlu0 %2540
      %2542 = vrot.lane.b32.xlu0 %v2539, 111
      %v2543 = vpop.permute.xlu0 %2542
      %2544 = vrot.lane.b32.xlu0 %v2534, 111
      %v2545 = vpop.permute.xlu0 %2544
      %v2546 = vsel %vm856, %v2541, %v2543
      %v2547 = vsel %vm856, %v2543, %v2545
      %v2549 = vsel %vm561, %v2536, 0
      %v2551 = vsel %vm565, %v2546, 0
      %v2553 = vsel %vm565, %v2547, 0
      %2555 = vmatprep.subr.mxu0 0.0
      %2556 = vmatpush1.msra.mxu0 0.0
      %2557 = vmatprep.subr.mxu0 0.0
      %2558 = vmatpush1.msra.mxu0 0.0
      %2559 = vmatprep.subr.mxu0 0.0
      %2560 = vmatpush1.msra.mxu0 0.0
      %2561 = vmatprep.subr.mxu0 0.0
      %2562 = vmatpush1.msra.mxu0 0.0
      %2563 = vmatprep.subr.mxu0 0.0
      %2564 = vmatpush1.msra.mxu0 0.0
      %2565 = vmatprep.subr.mxu0 0.0
      %2566 = vmatpush1.msra.mxu0 0.0
      %2567 = vmatprep.subr.mxu0 0.0
      %2568 = vmatpush1.msra.mxu0 0.0
      %2569 = vmatprep.subr.mxu0 0.0
      %2570 = vmatpush1.msra.mxu0 0.0
      %2571 = vmatprep.subr.mxu0 0.0
      %2572 = vmatpush1.msra.mxu0 0.0
      %2573 = vmatprep.subr.mxu0 0.0
      %2574 = vmatpush1.msra.mxu0 0.0
      %2575 = vmatprep.subr.mxu0 0.0
      %2576 = vmatpush1.msra.mxu0 0.0
      %2577 = vmatprep.subr.mxu0 0.0
      %2578 = vmatpush1.msra.mxu0 0.0
      %2579 = vmatprep.subr.mxu0 0.0
      %2580 = vmatpush1.msra.mxu0 0.0
      %2581 = vmatprep.subr.mxu0 0.0
      %2582 = vmatpush1.msra.mxu0 0.0
      %2583 = vmatprep.subr.mxu0 0.0
      %2584 = vmatpush1.msra.mxu0 0.0
      %2585 = vmatprep.subr.mxu0 %v2553
      %2586 = vmatpush1.msra.mxu0 %v2551
      %2587 = vmatprep.subr.mxu0 0.0
      %2588 = vmatpush2.msra.mxu0 0.0
      %2589 = vmatprep.subr.mxu0 0.0
      %2590 = vmatpush2.msra.mxu0 0.0
      %2591 = vmatprep.subr.mxu0 0.0
      %2592 = vmatpush2.msra.mxu0 0.0
      %2593 = vmatprep.subr.mxu0 0.0
      %2594 = vmatpush2.msra.mxu0 0.0
      %2595 = vmatprep.subr.mxu0 0.0
      %2596 = vmatpush2.msra.mxu0 0.0
      %2597 = vmatprep.subr.mxu0 0.0
      %2598 = vmatpush2.msra.mxu0 0.0
      %2599 = vmatprep.subr.mxu0 0.0
      %2600 = vmatpush2.msra.mxu0 0.0
      %2601 = vmatprep.subr.mxu0 0.0
      %2602 = vmatpush2.msra.mxu0 0.0
      %2603 = vmatprep.subr.mxu0 0.0
      %2604 = vmatpush2.msra.mxu0 0.0
      %2605 = vmatprep.subr.mxu0 0.0
      %2606 = vmatpush2.msra.mxu0 0.0
      %2607 = vmatprep.subr.mxu0 0.0
      %2608 = vmatpush2.msra.mxu0 0.0
      %2609 = vmatprep.subr.mxu0 0.0
      %2610 = vmatpush2.msra.mxu0 0.0
      %2611 = vmatprep.subr.mxu0 0.0
      %2612 = vmatpush2.msra.mxu0 0.0
      %2613 = vmatprep.subr.mxu0 0.0
      %2614 = vmatpush2.msra.mxu0 0.0
      %2615 = vmatprep.subr.mxu0 0.0
      %2616 = vmatpush2.msra.mxu0 0.0
      %2617 = vmatprep.subr.mxu0 0.0
      %2618 = vmatpush2.msra.mxu0 0.0
      %2619 = vmatprep.mubr.f32.mxu0 0.0
      %2620 = vmatmul.mubr.f32.gmra.mxu0 %v2549
      %v2621 = vpop.f32.mrf.mxu0
      %v2622 = vadd.f32 0.0, %v2621
      %v2623 = vpop.f32.mrf.mxu0
      %v2624 = vadd.f32 0.0, %v2623
      %2625 = vdwg.mxu0
      %v2626 = vadd.f32 %v2529, %v2622
      %v2627 = vadd.f32 %v2530, %v2624
      %v2628 = vld [vmem:[%s12] sm:$0xf]
      %2630 = vset.pattern.permute.xlu0 0
      %2631 = vperm.xlu0 %2630, %v2628
      %v2632 = vpop.permute.xlu0 %2631
      %v2634 = vadd.f32 %v2626, %v2632
      %v2635 = vadd.f32 %v2627, %v2632
      %v2636 = vmul.f32 %v2634, 0.5
      %v2637 = vmul.f32 %v2635, 0.5
      %v2638 = vmul.f32 %v2634, 0.70710677
      %v2639 = vmul.f32 %v2635, 0.70710677
      %v2640 = verf.f32.pop %v2638
      %v2641 = verf.f32.pop %v2639
      %v2642 = vadd.f32 %v2640, 1.0
      %v2643 = vadd.f32 %v2641, 1.0
      %v2644 = vmul.f32 %v2636, %v2642
      %v2645 = vmul.f32 %v2637, %v2643
      %v2646 = vld [vmem:[%s13] sm:$0xff]
      %v2647 = vld [vmem:[%s14] sm:$0xff]
      %v2649 = vsel %vm561, %v2647, 0
      %v2651 = vsel %vm565, %v832, 0
      %v2653 = vsel %vm565, %v833, 0
      %2655 = vmatprep.subr.mxu0 0.0
      %2656 = vmatpush1.msra.mxu0 0.0
      %2657 = vmatprep.subr.mxu0 0.0
      %2658 = vmatpush1.msra.mxu0 0.0
      %2659 = vmatprep.subr.mxu0 0.0
      %2660 = vmatpush1.msra.mxu0 0.0
      %2661 = vmatprep.subr.mxu0 0.0
      %2662 = vmatpush1.msra.mxu0 0.0
      %2663 = vmatprep.subr.mxu0 0.0
      %2664 = vmatpush1.msra.mxu0 0.0
      %2665 = vmatprep.subr.mxu0 0.0
      %2666 = vmatpush1.msra.mxu0 0.0
      %2667 = vmatprep.subr.mxu0 0.0
      %2668 = vmatpush1.msra.mxu0 0.0
      %2669 = vmatprep.subr.mxu0 0.0
      %2670 = vmatpush1.msra.mxu0 0.0
      %2671 = vmatprep.subr.mxu0 0.0
      %2672 = vmatpush1.msra.mxu0 0.0
      %2673 = vmatprep.subr.mxu0 0.0
      %2674 = vmatpush1.msra.mxu0 0.0
      %2675 = vmatprep.subr.mxu0 0.0
      %2676 = vmatpush1.msra.mxu0 0.0
      %2677 = vmatprep.subr.mxu0 0.0
      %2678 = vmatpush1.msra.mxu0 0.0
      %2679 = vmatprep.subr.mxu0 0.0
      %2680 = vmatpush1.msra.mxu0 0.0
      %2681 = vmatprep.subr.mxu0 0.0
      %2682 = vmatpush1.msra.mxu0 0.0
      %2683 = vmatprep.subr.mxu0 0.0
      %2684 = vmatpush1.msra.mxu0 0.0
      %2685 = vmatprep.subr.mxu0 %v2653
      %2686 = vmatpush1.msra.mxu0 %v2651
      %2687 = vmatprep.subr.mxu0 0.0
      %2688 = vmatpush2.msra.mxu0 0.0
      %2689 = vmatprep.subr.mxu0 0.0
      %2690 = vmatpush2.msra.mxu0 0.0
      %2691 = vmatprep.subr.mxu0 0.0
      %2692 = vmatpush2.msra.mxu0 0.0
      %2693 = vmatprep.subr.mxu0 0.0
      %2694 = vmatpush2.msra.mxu0 0.0
      %2695 = vmatprep.subr.mxu0 0.0
      %2696 = vmatpush2.msra.mxu0 0.0
      %2697 = vmatprep.subr.mxu0 0.0
      %2698 = vmatpush2.msra.mxu0 0.0
      %2699 = vmatprep.subr.mxu0 0.0
      %2700 = vmatpush2.msra.mxu0 0.0
      %2701 = vmatprep.subr.mxu0 0.0
      %2702 = vmatpush2.msra.mxu0 0.0
      %2703 = vmatprep.subr.mxu0 0.0
      %2704 = vmatpush2.msra.mxu0 0.0
      %2705 = vmatprep.subr.mxu0 0.0
      %2706 = vmatpush2.msra.mxu0 0.0
      %2707 = vmatprep.subr.mxu0 0.0
      %2708 = vmatpush2.msra.mxu0 0.0
      %2709 = vmatprep.subr.mxu0 0.0
      %2710 = vmatpush2.msra.mxu0 0.0
      %2711 = vmatprep.subr.mxu0 0.0
      %2712 = vmatpush2.msra.mxu0 0.0
      %2713 = vmatprep.subr.mxu0 0.0
      %2714 = vmatpush2.msra.mxu0 0.0
      %2715 = vmatprep.subr.mxu0 0.0
      %2716 = vmatpush2.msra.mxu0 0.0
      %2717 = vmatprep.subr.mxu0 0.0
      %2718 = vmatpush2.msra.mxu0 0.0
      %2719 = vmatprep.mubr.f32.mxu0 0.0
      %2720 = vmatmul.mubr.f32.gmra.mxu0 %v2649
      %v2721 = vpop.f32.mrf.mxu0
      %v2722 = vadd.f32 0.0, %v2721
      %v2723 = vpop.f32.mrf.mxu0
      %v2724 = vadd.f32 0.0, %v2723
      %2725 = vdwg.mxu0
      %v2727 = vsel %vm561, %v2646, 0
      %v2730 = vsel %vm565, %v741, 0
      %v2733 = vsel %vm565, %v742, 0
      %2735 = vmatprep.subr.mxu0 0.0
      %2736 = vmatpush1.msra.mxu0 0.0
      %2737 = vmatprep.subr.mxu0 0.0
      %2738 = vmatpush1.msra.mxu0 0.0
      %2739 = vmatprep.subr.mxu0 0.0
      %2740 = vmatpush1.msra.mxu0 0.0
      %2741 = vmatprep.subr.mxu0 0.0
      %2742 = vmatpush1.msra.mxu0 0.0
      %2743 = vmatprep.subr.mxu0 0.0
      %2744 = vmatpush1.msra.mxu0 0.0
      %2745 = vmatprep.subr.mxu0 0.0
      %2746 = vmatpush1.msra.mxu0 0.0
      %2747 = vmatprep.subr.mxu0 0.0
      %2748 = vmatpush1.msra.mxu0 0.0
      %2749 = vmatprep.subr.mxu0 0.0
      %2750 = vmatpush1.msra.mxu0 0.0
      %2751 = vmatprep.subr.mxu0 0.0
      %2752 = vmatpush1.msra.mxu0 0.0
      %2753 = vmatprep.subr.mxu0 0.0
      %2754 = vmatpush1.msra.mxu0 0.0
      %2755 = vmatprep.subr.mxu0 0.0
      %2756 = vmatpush1.msra.mxu0 0.0
      %2757 = vmatprep.subr.mxu0 0.0
      %2758 = vmatpush1.msra.mxu0 0.0
      %2759 = vmatprep.subr.mxu0 0.0
      %2760 = vmatpush1.msra.mxu0 0.0
      %2761 = vmatprep.subr.mxu0 0.0
      %2762 = vmatpush1.msra.mxu0 0.0
      %2763 = vmatprep.subr.mxu0 0.0
      %2764 = vmatpush1.msra.mxu0 0.0
      %2765 = vmatprep.subr.mxu0 %v2733
      %2766 = vmatpush1.msra.mxu0 %v2730
      %2767 = vmatprep.subr.mxu0 0.0
      %2768 = vmatpush2.msra.mxu0 0.0
      %2769 = vmatprep.subr.mxu0 0.0
      %2770 = vmatpush2.msra.mxu0 0.0
      %2771 = vmatprep.subr.mxu0 0.0
      %2772 = vmatpush2.msra.mxu0 0.0
      %2773 = vmatprep.subr.mxu0 0.0
      %2774 = vmatpush2.msra.mxu0 0.0
      %2775 = vmatprep.subr.mxu0 0.0
      %2776 = vmatpush2.msra.mxu0 0.0
      %2777 = vmatprep.subr.mxu0 0.0
      %2778 = vmatpush2.msra.mxu0 0.0
      %2779 = vmatprep.subr.mxu0 0.0
      %2780 = vmatpush2.msra.mxu0 0.0
      %2781 = vmatprep.subr.mxu0 0.0
      %2782 = vmatpush2.msra.mxu0 0.0
      %2783 = vmatprep.subr.mxu0 0.0
      %2784 = vmatpush2.msra.mxu0 0.0
      %2785 = vmatprep.subr.mxu0 0.0
      %2786 = vmatpush2.msra.mxu0 0.0
      %2787 = vmatprep.subr.mxu0 0.0
      %2788 = vmatpush2.msra.mxu0 0.0
      %2789 = vmatprep.subr.mxu0 0.0
      %2790 = vmatpush2.msra.mxu0 0.0
      %2791 = vmatprep.subr.mxu0 0.0
      %2792 = vmatpush2.msra.mxu0 0.0
      %2793 = vmatprep.subr.mxu0 0.0
      %2794 = vmatpush2.msra.mxu0 0.0
      %2795 = vmatprep.subr.mxu0 0.0
      %2796 = vmatpush2.msra.mxu0 0.0
      %2797 = vmatprep.subr.mxu0 0.0
      %2798 = vmatpush2.msra.mxu0 0.0
      %2799 = vmatprep.mubr.f32.mxu0 0.0
      %2800 = vmatmul.mubr.f32.gmra.mxu0 %v2727
      %v2801 = vpop.f32.mrf.mxu0
      %v2802 = vadd.f32 %v2722, %v2801
      %v2803 = vpop.f32.mrf.mxu0
      %v2804 = vadd.f32 %v2724, %v2803
      %2805 = vdwg.mxu0
      %v2806 = vld [vmem:[%s15] sm:$0xff]
      %v2808 = vsel %vm561, %v2806, 0
      %v2811 = vsel %vm565, %v2644, 0
      %v2814 = vsel %vm565, %v2645, 0
      %2816 = vmatprep.subr.mxu0 0.0
      %2817 = vmatpush1.msra.mxu0 0.0
      %2818 = vmatprep.subr.mxu0 0.0
      %2819 = vmatpush1.msra.mxu0 0.0
      %2820 = vmatprep.subr.mxu0 0.0
      %2821 = vmatpush1.msra.mxu0 0.0
      %2822 = vmatprep.subr.mxu0 0.0
      %2823 = vmatpush1.msra.mxu0 0.0
      %2824 = vmatprep.subr.mxu0 0.0
      %2825 = vmatpush1.msra.mxu0 0.0
      %2826 = vmatprep.subr.mxu0 0.0
      %2827 = vmatpush1.msra.mxu0 0.0
      %2828 = vmatprep.subr.mxu0 0.0
      %2829 = vmatpush1.msra.mxu0 0.0
      %2830 = vmatprep.subr.mxu0 0.0
      %2831 = vmatpush1.msra.mxu0 0.0
      %2832 = vmatprep.subr.mxu0 0.0
      %2833 = vmatpush1.msra.mxu0 0.0
      %2834 = vmatprep.subr.mxu0 0.0
      %2835 = vmatpush1.msra.mxu0 0.0
      %2836 = vmatprep.subr.mxu0 0.0
      %2837 = vmatpush1.msra.mxu0 0.0
      %2838 = vmatprep.subr.mxu0 0.0
      %2839 = vmatpush1.msra.mxu0 0.0
      %2840 = vmatprep.subr.mxu0 0.0
      %2841 = vmatpush1.msra.mxu0 0.0
      %2842 = vmatprep.subr.mxu0 0.0
      %2843 = vmatpush1.msra.mxu0 0.0
      %2844 = vmatprep.subr.mxu0 0.0
      %2845 = vmatpush1.msra.mxu0 0.0
      %2846 = vmatprep.subr.mxu0 %v2814
      %2847 = vmatpush1.msra.mxu0 %v2811
      %2848 = vmatprep.subr.mxu0 0.0
      %2849 = vmatpush2.msra.mxu0 0.0
      %2850 = vmatprep.subr.mxu0 0.0
      %2851 = vmatpush2.msra.mxu0 0.0
      %2852 = vmatprep.subr.mxu0 0.0
      %2853 = vmatpush2.msra.mxu0 0.0
      %2854 = vmatprep.subr.mxu0 0.0
      %2855 = vmatpush2.msra.mxu0 0.0
      %2856 = vmatprep.subr.mxu0 0.0
      %2857 = vmatpush2.msra.mxu0 0.0
      %2858 = vmatprep.subr.mxu0 0.0
      %2859 = vmatpush2.msra.mxu0 0.0
      %2860 = vmatprep.subr.mxu0 0.0
      %2861 = vmatpush2.msra.mxu0 0.0
      %2862 = vmatprep.subr.mxu0 0.0
      %2863 = vmatpush2.msra.mxu0 0.0
      %2864 = vmatprep.subr.mxu0 0.0
      %2865 = vmatpush2.msra.mxu0 0.0
      %2866 = vmatprep.subr.mxu0 0.0
      %2867 = vmatpush2.msra.mxu0 0.0
      %2868 = vmatprep.subr.mxu0 0.0
      %2869 = vmatpush2.msra.mxu0 0.0
      %2870 = vmatprep.subr.mxu0 0.0
      %2871 = vmatpush2.msra.mxu0 0.0
      %2872 = vmatprep.subr.mxu0 0.0
      %2873 = vmatpush2.msra.mxu0 0.0
      %2874 = vmatprep.subr.mxu0 0.0
      %2875 = vmatpush2.msra.mxu0 0.0
      %2876 = vmatprep.subr.mxu0 0.0
      %2877 = vmatpush2.msra.mxu0 0.0
      %2878 = vmatprep.subr.mxu0 0.0
      %2879 = vmatpush2.msra.mxu0 0.0
      %2880 = vmatprep.mubr.f32.mxu0 0.0
      %2881 = vmatmul.mubr.f32.gmra.mxu0 %v2808
      %v2882 = vpop.f32.mrf.mxu0
      %v2883 = vadd.f32 0.0, %v2882
      %v2884 = vpop.f32.mrf.mxu0
      %v2885 = vadd.f32 0.0, %v2884
      %2886 = vdwg.mxu0
      %v2887 = vadd.f32 %v2802, %v2883
      %v2888 = vadd.f32 %v2804, %v2885
      %v2889 = vld [vmem:[%s16] sm:$0xff]
      %2891 = vset.pattern.permute.xlu0 0
      %2892 = vperm.xlu0 %2891, %v2889
      %v2893 = vpop.permute.xlu0 %2892
      %v2895 = vadd.f32 %v2887, %v2893
      %v2896 = vadd.f32 %v2888, %v2893
      %v2897 = vmul.f32 %v2895, 0.5
      %v2898 = vmul.f32 %v2896, 0.5
      %v2899 = vmul.f32 %v2895, 0.70710677
      %v2900 = vmul.f32 %v2896, 0.70710677
      %v2901 = verf.f32.pop %v2899
      %v2902 = verf.f32.pop %v2900
      %v2903 = vadd.f32 %v2901, 1.0
      %v2904 = vadd.f32 %v2902, 1.0
      %v2905 = vmul.f32 %v2897, %v2903
      %v2906 = vmul.f32 %v2898, %v2904
      %2907 = vst [vmem:[%s548] sm:$0xff] %v2905
      %2908 = vst [vmem:[%s548 + $0x8] sm:$0xff] %v2906
      %p2909 = scmp.lt.s32.totalorder %s28, 1
      %s2910 = scalar_select %p2909, %s28, 1
      %s2911 = smul.addr %s2910, 2
      %s2912 = smul.addr %s2911, 8
      %s2913 = scalar_lea.vmem %s17, %s2912
      // Predicated region
      $region89: #{crack_bottleneck_forward.1} parent=87 // pred_check
        %p2914 = pneg %p408
      $region90: #{crack_bottleneck_forward.1} parent=87 // pred_check_branch
        %2916 = sbr.rel (%p2914) target = $region92
      $region91: #{crack_bottleneck_forward.1} parent=87 // pred_region
        _
      $region92: #{crack_bottleneck_forward.1} parent=87 // pred_fallthru
        _
    $region88: #{crack_bottleneck_forward.1} parent=5 // pred_fallthru
      _
    %p2917 = scmp.le.s32.totalorder 2, %s23
    // Predicated region
    $region93: #{crack_bottleneck_forward.1} parent=5 // pred_check
      %p2918 = pneg %p2917
    $region94: #{crack_bottleneck_forward.1} parent=5 // pred_check_branch
      %2920 = sbr.rel (%p2918) target = $region96
    $region95: #{crack_bottleneck_forward.1} parent=5 // pred_region
      %s2921 = ssub.s32 %s23, 2
      // Predicated region
      $region97: #{crack_bottleneck_forward.1} parent=95 // pred_check
        %p2922 = pneg %p414
      $region98: #{crack_bottleneck_forward.1} parent=95 // pred_check_branch
        %2924 = sbr.rel (%p2922) target = $region100
      $region99: #{crack_bottleneck_forward.1} parent=95 // pred_region
        %p2925 = scmp.lt.s32.totalorder %s29, 1
        %s2926 = scalar_select %p2925, %s29, 1
        %s2927 = smul.addr %s2926, 2
        %s2928 = smul.addr %s2927, 8
        %s2929 = scalar_lea.vmem %s17, %s2928
      $region100: #{crack_bottleneck_forward.1} parent=95 // pred_fallthru
        _
    $region96: #{crack_bottleneck_forward.1} parent=5 // pred_fallthru
      _
  $region6: #{crack_bottleneck_forward.1} parent=0 // loop_footer
    %s27 = sadd.s32 1, %s23
  $region7: #{crack_bottleneck_forward.1} parent=0 // loop_footer_branch
    %22 = sbr.rel target = $region3
  $region8: #{crack_bottleneck_forward.1} parent=0 // loop_exit
    _

</llo_original>
